<compile_context>
chip_gen: v7x
topology: tpu7x:2x2x1
jax: 0.10.0
libtpu: 0.0.40
codegen_flags: <defaults>
</compile_context>

<pallas_src>
import functools

import jax
import jax.numpy as jnp
from jax.experimental import pallas as pl
from jax.experimental.pallas import tpu as pltpu


def _sage_fused_kernel(*refs, num_layers, reassoc):
    """All SAGE layers fused, one graph per grid step.

    refs = (a_ref, invdeg_ref, x_ref,
            w_l0, w_r0, b0, ..., w_l{L-1}, w_r{L-1}, b{L-1},
            o_ref)

    Per layer:
      reassoc[l] == False :  awl = (A @ h) @ W_l
      reassoc[l] == True  :  awl = A @ (h @ W_l)        (cheaper when d_out < d_in)
      out = inv_deg * awl + h @ W_r + b                  (mean-norm in f32, VPU)
    ReLU after every layer but the last.
    """
    a_ref, d_ref, x_ref = refs[0], refs[1], refs[2]
    param_refs = refs[3:3 + 3 * num_layers]
    o_ref = refs[3 + 3 * num_layers]

    a = a_ref[0]                      # bf16 (N, N), exact {0, 1}
    inv_deg = d_ref[0]                # f32  (N, 1)
    h = x_ref[0]                      # bf16 (N, C_in)

    out = None
    for li in range(num_layers):
        w_l = param_refs[3 * li][...]        # bf16 (d_in, d_out)
        w_r = param_refs[3 * li + 1][...]    # bf16 (d_in, d_out)
        b = param_refs[3 * li + 2][...]      # f32  (1, d_out)

        if reassoc[li]:
            # A @ (h @ W_l): shrink the N^2 matmul width to d_out.
            hwl = jnp.dot(h, w_l, preferred_element_type=jnp.float32)
            awl = jnp.dot(a, hwl.astype(jnp.bfloat16),
                          preferred_element_type=jnp.float32)
        else:
            # (A @ h) @ W_l
            ah = jnp.dot(a, h, preferred_element_type=jnp.float32)
            awl = jnp.dot(ah.astype(jnp.bfloat16), w_l,
                          preferred_element_type=jnp.float32)

        # Mean aggregation = row-scale by 1/deg; a left-diagonal scale commutes
        # with the right-multiply by W_l, so applying it here (f32, VPU) is
        # exactly equivalent and keeps 1/deg un-quantized.
        out = inv_deg * awl + jnp.dot(h, w_r,
                                      preferred_element_type=jnp.float32) + b

        if li != num_layers - 1:
            out = jnp.maximum(out, 0.0)       # ReLU in f32
            # F.dropout(p, training=False) == identity at inference.
        h = out.astype(jnp.bfloat16)          # next layer input, stays on-chip

    o_ref[0] = out.astype(o_ref.dtype)


def prepare_sage_params(params):
    """One-time cast/reshape of parameters (hoisted out of the forward call).

    params = [(w_l, w_r, b), ...] with w_* of shape (d_in, d_out).
    Returns (flat_params, reassoc) where flat_params is
    [w_l0_bf16, w_r0_bf16, b0_f32, ...].
    """
    flat, reassoc = [], []
    for (w_l, w_r, b) in params:
        d_in, d_out = w_l.shape
        reassoc.append(d_out < d_in)
        flat.append(w_l.astype(jnp.bfloat16))
        flat.append(w_r.astype(jnp.bfloat16))
        flat.append(jnp.reshape(b, (1, d_out)).astype(jnp.float32))
    return flat, tuple(reassoc)


def prepare_graphs(adj, x):
    """One-time graph prep: exact bf16 {0,1} adjacency, f32 inverse degrees,
    bf16 features.  adj: (G, N, N), x: (G, N, C)."""
    deg = adj.sum(axis=-1, keepdims=True)
    inv_deg = jnp.where(deg > 0, 1.0 / deg, 0.0).astype(jnp.float32)
    return adj.astype(jnp.bfloat16), inv_deg, x.astype(jnp.bfloat16)


def sage_forward(a_b, inv_deg, x_b, flat_params, reassoc, out_dtype=jnp.float32):
    """Fused forward over a batch of G graphs (grid axis over graphs)."""
    g, n, _ = a_b.shape
    c_in = x_b.shape[-1]
    num_layers = len(flat_params) // 3
    out_dim = flat_params[-1].shape[-1]

    kernel = functools.partial(
        _sage_fused_kernel, num_layers=num_layers, reassoc=reassoc)

    # Per-graph operands walk the grid; weights/biases use a constant block
    # index so they are fetched once and stay VMEM-resident across graphs.
    in_specs = [
        pl.BlockSpec((1, n, n), lambda i: (i, 0, 0)),      # A (bf16)
        pl.BlockSpec((1, n, 1), lambda i: (i, 0, 0)),      # inv_deg (f32)
        pl.BlockSpec((1, n, c_in), lambda i: (i, 0, 0)),   # X (bf16)
    ]
    for p in flat_params:
        in_specs.append(pl.BlockSpec(p.shape, lambda i: (0, 0)))

    return pl.pallas_call(
        kernel,
        out_shape=jax.ShapeDtypeStruct((g, n, out_dim), out_dtype),
        grid=(g,),
        in_specs=in_specs,
        out_specs=pl.BlockSpec((1, n, out_dim), lambda i: (i, 0, 0)),
        compiler_params=pltpu.CompilerParams(
            dimension_semantics=("parallel",),   # shard graphs across TCs (v7x)
        ),
    )(a_b, inv_deg, x_b, *flat_params)


def init_sage_params(key, in_channels, hidden_channels, out_channels, num_layers):
    """Deterministic parameter init; weights stored as (in_dim, out_dim)."""
    dims = [in_channels] + [hidden_channels] * (num_layers - 1) + [out_channels]
    params = []
    for li in range(num_layers):
        d_in, d_out = dims[li], dims[li + 1]
        key, k1, k2, k3 = jax.random.split(key, 4)
        scale = 1.0 / jnp.sqrt(jnp.float32(d_in))
        w_l = jax.random.uniform(k1, (d_in, d_out), jnp.float32, -scale, scale)
        w_r = jax.random.uniform(k2, (d_in, d_out), jnp.float32, -scale, scale)
        b = jax.random.uniform(k3, (1, d_out), jnp.float32, -scale, scale)
        params.append((w_l, w_r, b))
    return params


def sage_reference_bf16(adj, x, params, reassoc):
    """Pure-JAX mirror of the kernel math (bf16 inputs, f32 accumulate,
    f32 inv_deg scaling in the same place) for a single graph."""
    deg = adj.sum(axis=-1, keepdims=True)
    inv_deg = jnp.where(deg > 0, 1.0 / deg, 0.0).astype(jnp.float32)
    a = adj.astype(jnp.bfloat16)
    h = x.astype(jnp.bfloat16)
    out = None
    for li, (w_l, w_r, b) in enumerate(params):
        wl = w_l.astype(jnp.bfloat16)
        wr = w_r.astype(jnp.bfloat16)
        if reassoc[li]:
            hwl = jnp.dot(h, wl, preferred_element_type=jnp.float32)
            awl = jnp.dot(a, hwl.astype(jnp.bfloat16),
                          preferred_element_type=jnp.float32)
        else:
            ah = jnp.dot(a, h, preferred_element_type=jnp.float32)
            awl = jnp.dot(ah.astype(jnp.bfloat16), wl,
                          preferred_element_type=jnp.float32)
        out = inv_deg * awl + jnp.dot(h, wr,
                                      preferred_element_type=jnp.float32) + b
        if li != len(params) - 1:
            out = jnp.maximum(out, 0.0)
        h = out.astype(jnp.bfloat16)
    return out


def sage_reference_f32(adj, x, params):
    """Pure f32 reference (true PyG SAGEConv mean-aggregation semantics)."""
    deg = adj.sum(axis=-1, keepdims=True)
    inv_deg = jnp.where(deg > 0, 1.0 / deg, 0.0)
    h = x
    for li, (w_l, w_r, b) in enumerate(params):
        agg = inv_deg * (adj @ h)
        out = agg @ w_l + h @ w_r + b
        if li != len(params) - 1:
            out = jnp.maximum(out, 0.0)
        h = out
    return h


if __name__ == "__main__":
    # Demo shapes: G graphs batched into one call; all dims multiples of 128,
    # N = 256 fills the 256x256 MXU of v6e/v7x.  Last layer (256 -> 128)
    # exercises the reassociated A @ (h @ W_l) path.
    G = 2              # graphs per call (grid axis, 'parallel' across TCs)
    N = 256            # nodes per graph
    IN_C = 256         # in_channels
    HID_C = 256        # hidden_channels
    OUT_C = 128        # out_channels
    NUM_LAYERS = 3
    # dropout p is irrelevant at inference (training=False).

    key = jax.random.PRNGKey(0)
    k_x, k_adj, k_params = jax.random.split(key, 3)

    x = jax.random.normal(k_x, (G, N, IN_C), dtype=jnp.float32)
    # Random sparse-ish binary adjacency (row i = incoming neighbors of i).
    adj = (jax.random.uniform(k_adj, (G, N, N)) < 0.1).astype(jnp.float32)

    params = init_sage_params(k_params, IN_C, HID_C, OUT_C, NUM_LAYERS)

    # One-time prep (hoisted casts; no per-call XLA concats/casts).
    flat_params, reassoc = prepare_sage_params(params)
    a_b, inv_deg, x_b = prepare_graphs(adj, x)

    out = sage_forward(a_b, inv_deg, x_b, flat_params, reassoc)
    out = jax.block_until_ready(out)
    assert out.shape == (G, N, OUT_C)

    # Check 1: kernel matches a bf16-mirrored pure-JAX reference tightly.
    for gi in range(G):
        ref_bf16 = sage_reference_bf16(adj[gi], x[gi], params, reassoc)
        assert jnp.allclose(out[gi], ref_bf16, atol=1e-2, rtol=1e-2), (
            "bf16-mirror mismatch", float(jnp.max(jnp.abs(out[gi] - ref_bf16))))

    # Check 2: kernel stays close to the true f32 SAGEConv semantics
    # (loose tolerance: inputs are bf16-rounded, accumulation is f32).
    for gi in range(G):
        ref_f32 = sage_reference_f32(adj[gi], x[gi], params)
        assert jnp.allclose(out[gi], ref_f32, atol=1e-1, rtol=1e-1), (
            "f32 mismatch", float(jnp.max(jnp.abs(out[gi] - ref_f32))))

    print("KERNEL_OK")
</pallas_src>

<mosaic_0001>
module attributes {stable_mosaic.version = 11 : i64} {
  func.func @_sage_fused_kernel(%arg0: i32, %arg1: memref<1x256x256xbf16, #tpu.memory_space<vmem>>, %arg2: memref<1x256x1xf32, #tpu.memory_space<vmem>>, %arg3: memref<1x256x256xbf16, #tpu.memory_space<vmem>>, %arg4: memref<256x256xbf16, #tpu.memory_space<vmem>>, %arg5: memref<256x256xbf16, #tpu.memory_space<vmem>>, %arg6: memref<1x256xf32, #tpu.memory_space<vmem>>, %arg7: memref<256x256xbf16, #tpu.memory_space<vmem>>, %arg8: memref<256x256xbf16, #tpu.memory_space<vmem>>, %arg9: memref<1x256xf32, #tpu.memory_space<vmem>>, %arg10: memref<256x128xbf16, #tpu.memory_space<vmem>>, %arg11: memref<256x128xbf16, #tpu.memory_space<vmem>>, %arg12: memref<1x128xf32, #tpu.memory_space<vmem>>, %arg13: memref<1x256x128xf32, #tpu.memory_space<vmem>>) attributes {dimension_semantics = [#tpu.dimension_semantics<parallel>], iteration_bounds = array<i64: 2>, scalar_prefetch = 0 : i64, scratch_operands = 0 : i64, tpu.core_type = #tpu.core_type<tc>, window_params = [{transform_indices = @transform_0, window_bounds = array<i64: 1, 256, 256>}, {transform_indices = @transform_1, window_bounds = array<i64: 1, 256, 1>}, {transform_indices = @transform_2, window_bounds = array<i64: 1, 256, 256>}, {pipeline_mode = #tpu.pipeline_mode<synchronous>, transform_indices = @transform_3, window_bounds = array<i64: 256, 256>}, {pipeline_mode = #tpu.pipeline_mode<synchronous>, transform_indices = @transform_4, window_bounds = array<i64: 256, 256>}, {pipeline_mode = #tpu.pipeline_mode<synchronous>, transform_indices = @transform_5, window_bounds = array<i64: 1, 256>}, {pipeline_mode = #tpu.pipeline_mode<synchronous>, transform_indices = @transform_6, window_bounds = array<i64: 256, 256>}, {pipeline_mode = #tpu.pipeline_mode<synchronous>, transform_indices = @transform_7, window_bounds = array<i64: 256, 256>}, {pipeline_mode = #tpu.pipeline_mode<synchronous>, transform_indices = @transform_8, window_bounds = array<i64: 1, 256>}, {pipeline_mode = #tpu.pipeline_mode<synchronous>, transform_indices = @transform_9, window_bounds = array<i64: 256, 128>}, {pipeline_mode = #tpu.pipeline_mode<synchronous>, transform_indices = @transform_10, window_bounds = array<i64: 256, 128>}, {pipeline_mode = #tpu.pipeline_mode<synchronous>, transform_indices = @transform_11, window_bounds = array<i64: 1, 128>}, {transform_indices = @transform_12, window_bounds = array<i64: 1, 256, 128>}]} {
    %c0 = arith.constant 0 : index
    %c0_0 = arith.constant 0 : index
    %c0_1 = arith.constant 0 : index
    %0 = vector.load %arg1[%c0, %c0_0, %c0_1] : memref<1x256x256xbf16, #tpu.memory_space<vmem>>, vector<1x256x256xbf16>
    %1 = vector.shape_cast %0 : vector<1x256x256xbf16> to vector<256x256xbf16>
    %c0_2 = arith.constant 0 : index
    %c0_3 = arith.constant 0 : index
    %c0_4 = arith.constant 0 : index
    %2 = vector.load %arg2[%c0_2, %c0_3, %c0_4] : memref<1x256x1xf32, #tpu.memory_space<vmem>>, vector<1x256x1xf32>
    %3 = vector.shape_cast %2 : vector<1x256x1xf32> to vector<256x1xf32>
    %c0_5 = arith.constant 0 : index
    %c0_6 = arith.constant 0 : index
    %c0_7 = arith.constant 0 : index
    %4 = vector.load %arg3[%c0_5, %c0_6, %c0_7] : memref<1x256x256xbf16, #tpu.memory_space<vmem>>, vector<1x256x256xbf16>
    %5 = vector.shape_cast %4 : vector<1x256x256xbf16> to vector<256x256xbf16>
    %c0_8 = arith.constant 0 : index
    %c0_9 = arith.constant 0 : index
    %6 = vector.load %arg4[%c0_8, %c0_9] : memref<256x256xbf16, #tpu.memory_space<vmem>>, vector<256x256xbf16>
    %c0_10 = arith.constant 0 : index
    %c0_11 = arith.constant 0 : index
    %7 = vector.load %arg5[%c0_10, %c0_11] : memref<256x256xbf16, #tpu.memory_space<vmem>>, vector<256x256xbf16>
    %c0_12 = arith.constant 0 : index
    %c0_13 = arith.constant 0 : index
    %8 = vector.load %arg6[%c0_12, %c0_13] : memref<1x256xf32, #tpu.memory_space<vmem>>, vector<1x256xf32>
    %cst = arith.constant dense<0.000000e+00> : vector<256x256xf32>
    %9 = tpu.matmul %1, %5, %cst {dimension_numbers = #tpu.dot_dimension_numbers<[1], [0], [0], [1], [0, 0, 1, 1], [], []>} : vector<256x256xbf16>, vector<256x256xbf16>, vector<256x256xf32> -> vector<256x256xf32>
    %10 = arith.truncf %9 : vector<256x256xf32> to vector<256x256xbf16>
    %cst_14 = arith.constant dense<0.000000e+00> : vector<256x256xf32>
    %11 = tpu.matmul %10, %6, %cst_14 {dimension_numbers = #tpu.dot_dimension_numbers<[1], [0], [0], [1], [0, 0, 1, 1], [], []>} : vector<256x256xbf16>, vector<256x256xbf16>, vector<256x256xf32> -> vector<256x256xf32>
    %12 = vector.broadcast %3 : vector<256x1xf32> to vector<256x256xf32>
    %13 = arith.mulf %12, %11 : vector<256x256xf32>
    %cst_15 = arith.constant dense<0.000000e+00> : vector<256x256xf32>
    %14 = tpu.matmul %5, %7, %cst_15 {dimension_numbers = #tpu.dot_dimension_numbers<[1], [0], [0], [1], [0, 0, 1, 1], [], []>} : vector<256x256xbf16>, vector<256x256xbf16>, vector<256x256xf32> -> vector<256x256xf32>
    %15 = arith.addf %13, %14 : vector<256x256xf32>
    %16 = vector.broadcast %8 : vector<1x256xf32> to vector<256x256xf32>
    %17 = arith.addf %15, %16 : vector<256x256xf32>
    %cst_16 = arith.constant 0.000000e+00 : f32
    %18 = vector.broadcast %cst_16 : f32 to vector<256x256xf32>
    %19 = arith.maximumf %17, %18 : vector<256x256xf32>
    %20 = arith.truncf %19 : vector<256x256xf32> to vector<256x256xbf16>
    %c0_17 = arith.constant 0 : index
    %c0_18 = arith.constant 0 : index
    %21 = vector.load %arg7[%c0_17, %c0_18] : memref<256x256xbf16, #tpu.memory_space<vmem>>, vector<256x256xbf16>
    %c0_19 = arith.constant 0 : index
    %c0_20 = arith.constant 0 : index
    %22 = vector.load %arg8[%c0_19, %c0_20] : memref<256x256xbf16, #tpu.memory_space<vmem>>, vector<256x256xbf16>
    %c0_21 = arith.constant 0 : index
    %c0_22 = arith.constant 0 : index
    %23 = vector.load %arg9[%c0_21, %c0_22] : memref<1x256xf32, #tpu.memory_space<vmem>>, vector<1x256xf32>
    %cst_23 = arith.constant dense<0.000000e+00> : vector<256x256xf32>
    %24 = tpu.matmul %1, %20, %cst_23 {dimension_numbers = #tpu.dot_dimension_numbers<[1], [0], [0], [1], [0, 0, 1, 1], [], []>} : vector<256x256xbf16>, vector<256x256xbf16>, vector<256x256xf32> -> vector<256x256xf32>
    %25 = arith.truncf %24 : vector<256x256xf32> to vector<256x256xbf16>
    %cst_24 = arith.constant dense<0.000000e+00> : vector<256x256xf32>
    %26 = tpu.matmul %25, %21, %cst_24 {dimension_numbers = #tpu.dot_dimension_numbers<[1], [0], [0], [1], [0, 0, 1, 1], [], []>} : vector<256x256xbf16>, vector<256x256xbf16>, vector<256x256xf32> -> vector<256x256xf32>
    %27 = vector.broadcast %3 : vector<256x1xf32> to vector<256x256xf32>
    %28 = arith.mulf %27, %26 : vector<256x256xf32>
    %cst_25 = arith.constant dense<0.000000e+00> : vector<256x256xf32>
    %29 = tpu.matmul %20, %22, %cst_25 {dimension_numbers = #tpu.dot_dimension_numbers<[1], [0], [0], [1], [0, 0, 1, 1], [], []>} : vector<256x256xbf16>, vector<256x256xbf16>, vector<256x256xf32> -> vector<256x256xf32>
    %30 = arith.addf %28, %29 : vector<256x256xf32>
    %31 = vector.broadcast %23 : vector<1x256xf32> to vector<256x256xf32>
    %32 = arith.addf %30, %31 : vector<256x256xf32>
    %cst_26 = arith.constant 0.000000e+00 : f32
    %33 = vector.broadcast %cst_26 : f32 to vector<256x256xf32>
    %34 = arith.maximumf %32, %33 : vector<256x256xf32>
    %35 = arith.truncf %34 : vector<256x256xf32> to vector<256x256xbf16>
    %c0_27 = arith.constant 0 : index
    %c0_28 = arith.constant 0 : index
    %36 = vector.load %arg10[%c0_27, %c0_28] : memref<256x128xbf16, #tpu.memory_space<vmem>>, vector<256x128xbf16>
    %c0_29 = arith.constant 0 : index
    %c0_30 = arith.constant 0 : index
    %37 = vector.load %arg11[%c0_29, %c0_30] : memref<256x128xbf16, #tpu.memory_space<vmem>>, vector<256x128xbf16>
    %c0_31 = arith.constant 0 : index
    %c0_32 = arith.constant 0 : index
    %38 = vector.load %arg12[%c0_31, %c0_32] : memref<1x128xf32, #tpu.memory_space<vmem>>, vector<1x128xf32>
    %cst_33 = arith.constant dense<0.000000e+00> : vector<256x128xf32>
    %39 = tpu.matmul %35, %36, %cst_33 {dimension_numbers = #tpu.dot_dimension_numbers<[1], [0], [0], [1], [0, 0, 1, 1], [], []>} : vector<256x256xbf16>, vector<256x128xbf16>, vector<256x128xf32> -> vector<256x128xf32>
    %40 = arith.truncf %39 : vector<256x128xf32> to vector<256x128xbf16>
    %cst_34 = arith.constant dense<0.000000e+00> : vector<256x128xf32>
    %41 = tpu.matmul %1, %40, %cst_34 {dimension_numbers = #tpu.dot_dimension_numbers<[1], [0], [0], [1], [0, 0, 1, 1], [], []>} : vector<256x256xbf16>, vector<256x128xbf16>, vector<256x128xf32> -> vector<256x128xf32>
    %42 = vector.broadcast %3 : vector<256x1xf32> to vector<256x128xf32>
    %43 = arith.mulf %42, %41 : vector<256x128xf32>
    %cst_35 = arith.constant dense<0.000000e+00> : vector<256x128xf32>
    %44 = tpu.matmul %35, %37, %cst_35 {dimension_numbers = #tpu.dot_dimension_numbers<[1], [0], [0], [1], [0, 0, 1, 1], [], []>} : vector<256x256xbf16>, vector<256x128xbf16>, vector<256x128xf32> -> vector<256x128xf32>
    %45 = arith.addf %43, %44 : vector<256x128xf32>
    %46 = vector.broadcast %38 : vector<1x128xf32> to vector<256x128xf32>
    %47 = arith.addf %45, %46 : vector<256x128xf32>
    %c0_36 = arith.constant 0 : index
    %c0_37 = arith.constant 0 : index
    %c0_38 = arith.constant 0 : index
    %48 = vector.load %arg13[%c0_36, %c0_37, %c0_38] : memref<1x256x128xf32, #tpu.memory_space<vmem>>, vector<1x256x128xf32>
    %49 = vector.shape_cast %48 : vector<1x256x128xf32> to vector<256x128xf32>
    %50 = vector.shape_cast %47 : vector<256x128xf32> to vector<1x256x128xf32>
    tpu.vector_store %arg13[%c0_36, %c0_37, %c0_38], %50 {strides = array<i32>} : memref<1x256x128xf32, #tpu.memory_space<vmem>>, vector<1x256x128xf32>,
    return
  }
  func.func @transform_0(%arg0: i32) -> (i32, i32, i32) {
    %c0_i32 = arith.constant 0 : i32
    %c0_i32_0 = arith.constant 0 : i32
    %c0_i32_1 = arith.constant 0 : i32
    return %arg0, %c0_i32, %c0_i32_0 : i32, i32, i32
  }
  func.func @transform_1(%arg0: i32) -> (i32, i32, i32) {
    %c0_i32 = arith.constant 0 : i32
    %c0_i32_0 = arith.constant 0 : i32
    %c0_i32_1 = arith.constant 0 : i32
    return %arg0, %c0_i32, %c0_i32_0 : i32, i32, i32
  }
  func.func @transform_2(%arg0: i32) -> (i32, i32, i32) {
    %c0_i32 = arith.constant 0 : i32
    %c0_i32_0 = arith.constant 0 : i32
    %c0_i32_1 = arith.constant 0 : i32
    return %arg0, %c0_i32, %c0_i32_0 : i32, i32, i32
  }
  func.func @transform_3(%arg0: i32) -> (i32, i32) {
    %c0_i32 = arith.constant 0 : i32
    %c0_i32_0 = arith.constant 0 : i32
    %c0_i32_1 = arith.constant 0 : i32
    return %c0_i32, %c0_i32_0 : i32, i32
  }
  func.func @transform_4(%arg0: i32) -> (i32, i32) {
    %c0_i32 = arith.constant 0 : i32
    %c0_i32_0 = arith.constant 0 : i32
    %c0_i32_1 = arith.constant 0 : i32
    return %c0_i32, %c0_i32_0 : i32, i32
  }
  func.func @transform_5(%arg0: i32) -> (i32, i32) {
    %c0_i32 = arith.constant 0 : i32
    %c0_i32_0 = arith.constant 0 : i32
    %c0_i32_1 = arith.constant 0 : i32
    return %c0_i32, %c0_i32_0 : i32, i32
  }
  func.func @transform_6(%arg0: i32) -> (i32, i32) {
    %c0_i32 = arith.constant 0 : i32
    %c0_i32_0 = arith.constant 0 : i32
    %c0_i32_1 = arith.constant 0 : i32
    return %c0_i32, %c0_i32_0 : i32, i32
  }
  func.func @transform_7(%arg0: i32) -> (i32, i32) {
    %c0_i32 = arith.constant 0 : i32
    %c0_i32_0 = arith.constant 0 : i32
    %c0_i32_1 = arith.constant 0 : i32
    return %c0_i32, %c0_i32_0 : i32, i32
  }
  func.func @transform_8(%arg0: i32) -> (i32, i32) {
    %c0_i32 = arith.constant 0 : i32
    %c0_i32_0 = arith.constant 0 : i32
    %c0_i32_1 = arith.constant 0 : i32
    return %c0_i32, %c0_i32_0 : i32, i32
  }
  func.func @transform_9(%arg0: i32) -> (i32, i32) {
    %c0_i32 = arith.constant 0 : i32
    %c0_i32_0 = arith.constant 0 : i32
    %c0_i32_1 = arith.constant 0 : i32
    return %c0_i32, %c0_i32_0 : i32, i32
  }
  func.func @transform_10(%arg0: i32) -> (i32, i32) {
    %c0_i32 = arith.constant 0 : i32
    %c0_i32_0 = arith.constant 0 : i32
    %c0_i32_1 = arith.constant 0 : i32
    return %c0_i32, %c0_i32_0 : i32, i32
  }
  func.func @transform_11(%arg0: i32) -> (i32, i32) {
    %c0_i32 = arith.constant 0 : i32
    %c0_i32_0 = arith.constant 0 : i32
    %c0_i32_1 = arith.constant 0 : i32
    return %c0_i32, %c0_i32_0 : i32, i32
  }
  func.func @transform_12(%arg0: i32) -> (i32, i32, i32) {
    %c0_i32 = arith.constant 0 : i32
    %c0_i32_0 = arith.constant 0 : i32
    %c0_i32_1 = arith.constant 0 : i32
    return %arg0, %c0_i32, %c0_i32_0 : i32, i32, i32
  }
}

</mosaic_0001>

<llo_original>
// kernel: tpu_custom_call.1
$region0: #{tpu_custom_call.1}
  #allocation0 [shape = 'u32[]', space=smem, size = 0x4, offset = 0x4, fixed_abs, tag = 'smem constant byte address 0x4 - core index']
  #allocation1 [shape = 'u32[144,128]{1,0:T(1,128)}', space=vmem, size = 0x12000, scoped, tag = 'internal scratch']
  %s0 = inlined_call_operand.vmem [shape: bf16[2,256,256], index: 0, kind: input, shape index: {}]
  %s1 = inlined_call_operand.vmem [shape: f32[2,256,1], index: 1, kind: input, shape index: {}]
  %s2 = inlined_call_operand.hbm [shape: bf16[2,256,256], index: 2, kind: input, shape index: {}]
  %s3 = inlined_call_operand.hbm [shape: bf16[256,256], index: 3, kind: input, shape index: {}]
  %s4 = inlined_call_operand.hbm [shape: bf16[256,256], index: 4, kind: input, shape index: {}]
  %s5 = inlined_call_operand.vmem [shape: f32[1,256], index: 5, kind: input, shape index: {}]
  %s6 = inlined_call_operand.hbm [shape: bf16[256,256], index: 6, kind: input, shape index: {}]
  %s7 = inlined_call_operand.hbm [shape: bf16[256,256], index: 7, kind: input, shape index: {}]
  %s8 = inlined_call_operand.vmem [shape: f32[1,256], index: 8, kind: input, shape index: {}]
  %s9 = inlined_call_operand.hbm [shape: bf16[256,128], index: 9, kind: input, shape index: {}]
  %s10 = inlined_call_operand.hbm [shape: bf16[256,128], index: 10, kind: input, shape index: {}]
  %s11 = inlined_call_operand.vmem [shape: f32[1,128], index: 11, kind: input, shape index: {}]
  %s12 = inlined_call_operand.hbm [shape: f32[2,256,128], index: 12, kind: output, shape index: {}]
  %s13 = sld [smem:[#allocation0]]
  $region109: #{tpu_custom_call.1} parent=0
    _
  %s15 = ssub.s32 1, %s13
  %s16 = scalar_select 0, %s15, %s13
  $region1: #{tpu_custom_call.1} parent=0
    #allocation2 [shape = 'u8[262144]{0}', space=vmem, size = 0x40000, scoped, tag = 'input window, operand 2']
    #allocation3 [shape = 's32[2]{0}', space=sflag, size = 0x8, scoped, tag = 'scoped memory for tpu_custom_call.1']
    #allocation4 [shape = 's32[2]{0}', space=sflag, size = 0x8, scoped, tag = 'scoped memory for tpu_custom_call.1']
    #allocation5 [shape = 'u8[131072]{0}', space=vmem, size = 0x20000, scoped, tag = 'input window, operand 3, single buffered']
    #allocation6 [shape = 's32[1]{0}', space=sflag, size = 0x4, scoped, tag = 'scoped memory for tpu_custom_call.1']
    #allocation7 [shape = 'u8[131072]{0}', space=vmem, size = 0x20000, scoped, tag = 'input window, operand 4, single buffered']
    #allocation8 [shape = 'u8[131072]{0}', space=vmem, size = 0x20000, scoped, tag = 'input window, operand 6, single buffered']
    #allocation9 [shape = 's32[1]{0}', space=sflag, size = 0x4, scoped, tag = 'scoped memory for tpu_custom_call.1']
    #allocation10 [shape = 'u8[131072]{0}', space=vmem, size = 0x20000, scoped, tag = 'input window, operand 7, single buffered']
    #allocation11 [shape = 'u8[65536]{0}', space=vmem, size = 0x10000, scoped, tag = 'input window, operand 9, single buffered']
    #allocation12 [shape = 's32[1]{0}', space=sflag, size = 0x4, scoped, tag = 'scoped memory for tpu_custom_call.1']
    #allocation13 [shape = 'u8[65536]{0}', space=vmem, size = 0x10000, scoped, tag = 'input window, operand 10, single buffered']
    #allocation14 [shape = 'u8[262144]{0}', space=vmem, size = 0x40000, scoped, tag = 'output window, operand 0']
    %17 = vsyncpa [#allocation3], 0
    %s18 = scalar_lea.sflag [#allocation3], 1
    %19 = vsyncpa %s18, 0
    %20 = vsyncpa [#allocation6], 0
    %21 = vsyncpa [#allocation9], 0
    %22 = vsyncpa [#allocation12], 0
    %23 = vsyncpa [#allocation4], 0
    %s24 = scalar_lea.sflag [#allocation4], 1
    %25 = vsyncpa %s24, 0
    loop: start=0, step=1, limit=4
    $region2: #{tpu_custom_call.1} parent=1 // loop_pre_header
      _
    $region3: #{tpu_custom_call.1} parent=1 // loop_header
      %s27 = sphi 0, %s31
      %p28 = scmp.ge.s32.totalorder %s27, 4
      %s37 = sphi 0, %s39
      %s40 = sphi 0, %s37
      %s41 = sphi 0, %s40
      %s57 = sphi 0, %s41
      %s63 = sphi 0, %s65
      %s66 = sphi 0, %s63
      %s67 = sphi 0, %s66
      %s83 = sphi 0, %s67
      %s89 = sphi 0, %s91
      %s92 = sphi 0, %s89
      %s93 = sphi 0, %s92
      %s109 = sphi 0, %s93
      %s113 = sphi 0, %s113
      %s115 = sphi 0, %s113
      %s116 = sphi 0, %s115
      %s130 = sphi 0, %s116
      %s134 = sphi 0, %s134
      %s136 = sphi 0, %s134
      %s137 = sphi 0, %s136
      %s151 = sphi 0, %s137
      %s155 = sphi 0, %s155
      %s157 = sphi 0, %s155
      %s158 = sphi 0, %s157
      %s172 = sphi 0, %s158
      %s176 = sphi 0, %s176
      %s178 = sphi 0, %s176
      %s179 = sphi 0, %s178
      %s193 = sphi 0, %s179
      %s197 = sphi 0, %s197
      %s199 = sphi 0, %s197
      %s200 = sphi 0, %s199
      %s214 = sphi 0, %s200
      %s218 = sphi 0, %s218
      %s220 = sphi 0, %s218
      %s221 = sphi 0, %s220
      %s235 = sphi 0, %s221
      %s239 = sphi 0, %s239
      %s241 = sphi 0, %s239
      %s242 = sphi 0, %s241
      %s256 = sphi 0, %s242
      %s260 = sphi 0, %s260
      %s262 = sphi 0, %s260
      %s263 = sphi 0, %s262
      %s277 = sphi 0, %s263
      %s281 = sphi 0, %s281
      %s283 = sphi 0, %s281
      %s284 = sphi 0, %s283
      %s298 = sphi 0, %s284
      %s304 = sphi 0, %s306
      %s307 = sphi 0, %s304
      %s308 = sphi 0, %s307
      %s324 = sphi 0, %s308
    $region4: #{tpu_custom_call.1} parent=1 // loop_header_branch
      %30 = sbr.rel (%p28) target = $region8
    $region5: #{tpu_custom_call.1} parent=1 // loop_body
      %s32 = ssub.s32 %s27, 1
      %s33 = ssub.s32 %s27, 2
      %s34 = sadd.s32 %s27, 1
      %s35 = ssub.s32 %s27, %s34
      %p36 = scmp.eq.s32.totalorder %s35, 0
      %s38 = sadd.s32 %s37, 1
      %s39 = scalar_select %p36, %s37, %s38
      %p42 = pneg %p36
      %p43 = scmp.eq.s32.totalorder %s27, 1
      %p44 = por %p42, %p43
      %p45 = scmp.ne.s32.totalorder %s37, %s40
      %p46 = scmp.eq.s32.totalorder %s27, 0
      %p47 = por %p45, %p46
      %p48 = scmp.ne.s32.totalorder %s37, %s40
      %p49 = scmp.eq.s32.totalorder %s32, 1
      %p50 = por %p48, %p49
      %p51 = scmp.ne.s32.totalorder %s40, %s41
      %p52 = scmp.eq.s32.totalorder %s32, 0
      %p53 = por %p51, %p52
      %p54 = scmp.ne.s32.totalorder %s40, %s41
      %p55 = scmp.eq.s32.totalorder %s33, 1
      %p56 = por %p54, %p55
      %p58 = scmp.ne.s32.totalorder %s41, %s57
      %p59 = scmp.eq.s32.totalorder %s33, 0
      %p60 = por %p58, %p59
      %s61 = ssub.s32 %s27, %s34
      %p62 = scmp.eq.s32.totalorder %s61, 0
      %s64 = sadd.s32 %s63, 1
      %s65 = scalar_select %p62, %s63, %s64
      %p68 = pneg %p62
      %p69 = scmp.eq.s32.totalorder %s27, 1
      %p70 = por %p68, %p69
      %p71 = scmp.ne.s32.totalorder %s63, %s66
      %p72 = scmp.eq.s32.totalorder %s27, 0
      %p73 = por %p71, %p72
      %p74 = scmp.ne.s32.totalorder %s63, %s66
      %p75 = scmp.eq.s32.totalorder %s32, 1
      %p76 = por %p74, %p75
      %p77 = scmp.ne.s32.totalorder %s66, %s67
      %p78 = scmp.eq.s32.totalorder %s32, 0
      %p79 = por %p77, %p78
      %p80 = scmp.ne.s32.totalorder %s66, %s67
      %p81 = scmp.eq.s32.totalorder %s33, 1
      %p82 = por %p80, %p81
      %p84 = scmp.ne.s32.totalorder %s67, %s83
      %p85 = scmp.eq.s32.totalorder %s33, 0
      %p86 = por %p84, %p85
      %s87 = ssub.s32 %s27, %s34
      %p88 = scmp.eq.s32.totalorder %s87, 0
      %s90 = sadd.s32 %s89, 1
      %s91 = scalar_select %p88, %s89, %s90
      %p94 = pneg %p88
      %p95 = scmp.eq.s32.totalorder %s27, 1
      %p96 = por %p94, %p95
      %p97 = scmp.ne.s32.totalorder %s89, %s92
      %p98 = scmp.eq.s32.totalorder %s27, 0
      %p99 = por %p97, %p98
      %p100 = scmp.ne.s32.totalorder %s89, %s92
      %p101 = scmp.eq.s32.totalorder %s32, 1
      %p102 = por %p100, %p101
      %p103 = scmp.ne.s32.totalorder %s92, %s93
      %p104 = scmp.eq.s32.totalorder %s32, 0
      %p105 = por %p103, %p104
      %p106 = scmp.ne.s32.totalorder %s92, %s93
      %p107 = scmp.eq.s32.totalorder %s33, 1
      %p108 = por %p106, %p107
      %p110 = scmp.ne.s32.totalorder %s93, %s109
      %p111 = scmp.eq.s32.totalorder %s33, 0
      %p112 = por %p110, %p111
      %s114 = sadd.s32 %s113, 1
      %p117 = scmp.eq.s32.totalorder %s27, 1
      %p118 = scmp.ne.s32.totalorder %s113, %s115
      %p119 = scmp.eq.s32.totalorder %s27, 0
      %p120 = por %p118, %p119
      %p121 = scmp.ne.s32.totalorder %s113, %s115
      %p122 = scmp.eq.s32.totalorder %s32, 1
      %p123 = por %p121, %p122
      %p124 = scmp.ne.s32.totalorder %s115, %s116
      %p125 = scmp.eq.s32.totalorder %s32, 0
      %p126 = por %p124, %p125
      %p127 = scmp.ne.s32.totalorder %s115, %s116
      %p128 = scmp.eq.s32.totalorder %s33, 1
      %p129 = por %p127, %p128
      %p131 = scmp.ne.s32.totalorder %s116, %s130
      %p132 = scmp.eq.s32.totalorder %s33, 0
      %p133 = por %p131, %p132
      %s135 = sadd.s32 %s134, 1
      %p138 = scmp.eq.s32.totalorder %s27, 1
      %p139 = scmp.ne.s32.totalorder %s134, %s136
      %p140 = scmp.eq.s32.totalorder %s27, 0
      %p141 = por %p139, %p140
      %p142 = scmp.ne.s32.totalorder %s134, %s136
      %p143 = scmp.eq.s32.totalorder %s32, 1
      %p144 = por %p142, %p143
      %p145 = scmp.ne.s32.totalorder %s136, %s137
      %p146 = scmp.eq.s32.totalorder %s32, 0
      %p147 = por %p145, %p146
      %p148 = scmp.ne.s32.totalorder %s136, %s137
      %p149 = scmp.eq.s32.totalorder %s33, 1
      %p150 = por %p148, %p149
      %p152 = scmp.ne.s32.totalorder %s137, %s151
      %p153 = scmp.eq.s32.totalorder %s33, 0
      %p154 = por %p152, %p153
      %s156 = sadd.s32 %s155, 1
      %p159 = scmp.eq.s32.totalorder %s27, 1
      %p160 = scmp.ne.s32.totalorder %s155, %s157
      %p161 = scmp.eq.s32.totalorder %s27, 0
      %p162 = por %p160, %p161
      %p163 = scmp.ne.s32.totalorder %s155, %s157
      %p164 = scmp.eq.s32.totalorder %s32, 1
      %p165 = por %p163, %p164
      %p166 = scmp.ne.s32.totalorder %s157, %s158
      %p167 = scmp.eq.s32.totalorder %s32, 0
      %p168 = por %p166, %p167
      %p169 = scmp.ne.s32.totalorder %s157, %s158
      %p170 = scmp.eq.s32.totalorder %s33, 1
      %p171 = por %p169, %p170
      %p173 = scmp.ne.s32.totalorder %s158, %s172
      %p174 = scmp.eq.s32.totalorder %s33, 0
      %p175 = por %p173, %p174
      %s177 = sadd.s32 %s176, 1
      %p180 = scmp.eq.s32.totalorder %s27, 1
      %p181 = scmp.ne.s32.totalorder %s176, %s178
      %p182 = scmp.eq.s32.totalorder %s27, 0
      %p183 = por %p181, %p182
      %p184 = scmp.ne.s32.totalorder %s176, %s178
      %p185 = scmp.eq.s32.totalorder %s32, 1
      %p186 = por %p184, %p185
      %p187 = scmp.ne.s32.totalorder %s178, %s179
      %p188 = scmp.eq.s32.totalorder %s32, 0
      %p189 = por %p187, %p188
      %p190 = scmp.ne.s32.totalorder %s178, %s179
      %p191 = scmp.eq.s32.totalorder %s33, 1
      %p192 = por %p190, %p191
      %p194 = scmp.ne.s32.totalorder %s179, %s193
      %p195 = scmp.eq.s32.totalorder %s33, 0
      %p196 = por %p194, %p195
      %s198 = sadd.s32 %s197, 1
      %p201 = scmp.eq.s32.totalorder %s27, 1
      %p202 = scmp.ne.s32.totalorder %s197, %s199
      %p203 = scmp.eq.s32.totalorder %s27, 0
      %p204 = por %p202, %p203
      %p205 = scmp.ne.s32.totalorder %s197, %s199
      %p206 = scmp.eq.s32.totalorder %s32, 1
      %p207 = por %p205, %p206
      %p208 = scmp.ne.s32.totalorder %s199, %s200
      %p209 = scmp.eq.s32.totalorder %s32, 0
      %p210 = por %p208, %p209
      %p211 = scmp.ne.s32.totalorder %s199, %s200
      %p212 = scmp.eq.s32.totalorder %s33, 1
      %p213 = por %p211, %p212
      %p215 = scmp.ne.s32.totalorder %s200, %s214
      %p216 = scmp.eq.s32.totalorder %s33, 0
      %p217 = por %p215, %p216
      %s219 = sadd.s32 %s218, 1
      %p222 = scmp.eq.s32.totalorder %s27, 1
      %p223 = scmp.ne.s32.totalorder %s218, %s220
      %p224 = scmp.eq.s32.totalorder %s27, 0
      %p225 = por %p223, %p224
      %p226 = scmp.ne.s32.totalorder %s218, %s220
      %p227 = scmp.eq.s32.totalorder %s32, 1
      %p228 = por %p226, %p227
      %p229 = scmp.ne.s32.totalorder %s220, %s221
      %p230 = scmp.eq.s32.totalorder %s32, 0
      %p231 = por %p229, %p230
      %p232 = scmp.ne.s32.totalorder %s220, %s221
      %p233 = scmp.eq.s32.totalorder %s33, 1
      %p234 = por %p232, %p233
      %p236 = scmp.ne.s32.totalorder %s221, %s235
      %p237 = scmp.eq.s32.totalorder %s33, 0
      %p238 = por %p236, %p237
      %s240 = sadd.s32 %s239, 1
      %p243 = scmp.eq.s32.totalorder %s27, 1
      %p244 = scmp.ne.s32.totalorder %s239, %s241
      %p245 = scmp.eq.s32.totalorder %s27, 0
      %p246 = por %p244, %p245
      %p247 = scmp.ne.s32.totalorder %s239, %s241
      %p248 = scmp.eq.s32.totalorder %s32, 1
      %p249 = por %p247, %p248
      %p250 = scmp.ne.s32.totalorder %s241, %s242
      %p251 = scmp.eq.s32.totalorder %s32, 0
      %p252 = por %p250, %p251
      %p253 = scmp.ne.s32.totalorder %s241, %s242
      %p254 = scmp.eq.s32.totalorder %s33, 1
      %p255 = por %p253, %p254
      %p257 = scmp.ne.s32.totalorder %s242, %s256
      %p258 = scmp.eq.s32.totalorder %s33, 0
      %p259 = por %p257, %p258
      %s261 = sadd.s32 %s260, 1
      %p264 = scmp.eq.s32.totalorder %s27, 1
      %p265 = scmp.ne.s32.totalorder %s260, %s262
      %p266 = scmp.eq.s32.totalorder %s27, 0
      %p267 = por %p265, %p266
      %p268 = scmp.ne.s32.totalorder %s260, %s262
      %p269 = scmp.eq.s32.totalorder %s32, 1
      %p270 = por %p268, %p269
      %p271 = scmp.ne.s32.totalorder %s262, %s263
      %p272 = scmp.eq.s32.totalorder %s32, 0
      %p273 = por %p271, %p272
      %p274 = scmp.ne.s32.totalorder %s262, %s263
      %p275 = scmp.eq.s32.totalorder %s33, 1
      %p276 = por %p274, %p275
      %p278 = scmp.ne.s32.totalorder %s263, %s277
      %p279 = scmp.eq.s32.totalorder %s33, 0
      %p280 = por %p278, %p279
      %s282 = sadd.s32 %s281, 1
      %p285 = scmp.eq.s32.totalorder %s27, 1
      %p286 = scmp.ne.s32.totalorder %s281, %s283
      %p287 = scmp.eq.s32.totalorder %s27, 0
      %p288 = por %p286, %p287
      %p289 = scmp.ne.s32.totalorder %s281, %s283
      %p290 = scmp.eq.s32.totalorder %s32, 1
      %p291 = por %p289, %p290
      %p292 = scmp.ne.s32.totalorder %s283, %s284
      %p293 = scmp.eq.s32.totalorder %s32, 0
      %p294 = por %p292, %p293
      %p295 = scmp.ne.s32.totalorder %s283, %s284
      %p296 = scmp.eq.s32.totalorder %s33, 1
      %p297 = por %p295, %p296
      %p299 = scmp.ne.s32.totalorder %s284, %s298
      %p300 = scmp.eq.s32.totalorder %s33, 0
      %p301 = por %p299, %p300
      %s302 = ssub.s32 %s27, %s34
      %p303 = scmp.eq.s32.totalorder %s302, 0
      %s305 = sadd.s32 %s304, 1
      %s306 = scalar_select %p303, %s304, %s305
      %p309 = pneg %p303
      %p310 = scmp.eq.s32.totalorder %s27, 1
      %p311 = por %p309, %p310
      %p312 = scmp.ne.s32.totalorder %s304, %s307
      %p313 = scmp.eq.s32.totalorder %s27, 0
      %p314 = por %p312, %p313
      %p315 = scmp.ne.s32.totalorder %s304, %s307
      %p316 = scmp.eq.s32.totalorder %s32, 1
      %p317 = por %p315, %p316
      %p318 = scmp.ne.s32.totalorder %s307, %s308
      %p319 = scmp.eq.s32.totalorder %s32, 0
      %p320 = por %p318, %p319
      %p321 = scmp.ne.s32.totalorder %s307, %s308
      %p322 = scmp.eq.s32.totalorder %s33, 1
      %p323 = por %p321, %p322
      %p325 = scmp.ne.s32.totalorder %s308, %s324
      %p326 = scmp.eq.s32.totalorder %s33, 0
      %p327 = por %p325, %p326
      %p328 = scmp.le.s32.totalorder 1, %s27
      %p329 = scmp.lt.s32.totalorder %s27, 3
      %p330 = pnand %p328, %p329
      %p331 = pneg %p330
      // Predicated region
      $region9: #{tpu_custom_call.1} parent=5 // pred_check
        _
      $region10: #{tpu_custom_call.1} parent=5 // pred_check_branch
        %333 = sbr.rel (%p330) target = $region12
      $region11: #{tpu_custom_call.1} parent=5 // pred_region
        %s334 = ssub.s32 %s27, 1
        // Predicated region
        $region13: #{tpu_custom_call.1} parent=11 // pred_check
          %p335 = pneg %p126
        $region14: #{tpu_custom_call.1} parent=11 // pred_check_branch
          %337 = sbr.rel (%p335) target = $region16
        $region15: #{tpu_custom_call.1} parent=11 // pred_region
          %s339 = ssub.s32 4096, 4096
          %340 = vsyncadd [#allocation6], %s339
          %s341 = sshll.u32 [#allocation5], 4
          %s342 = int_to_ptr.vmem [resolvable:$true] %s341
          %347 = dma.hbm_to_vmem [thread:$0]  %s3, 4096, %s342, [#allocation6], 128, 128, 8
        $region16: #{tpu_custom_call.1} parent=11 // pred_fallthru
          _
        // Predicated region
        $region17: #{tpu_custom_call.1} parent=11 // pred_check
          %p348 = pneg %p147
        $region18: #{tpu_custom_call.1} parent=11 // pred_check_branch
          %350 = sbr.rel (%p348) target = $region20
        $region19: #{tpu_custom_call.1} parent=11 // pred_region
          %s352 = ssub.s32 4096, 4096
          %353 = vsyncadd [#allocation6], %s352
          %s354 = sshll.u32 [#allocation7], 4
          %s355 = int_to_ptr.vmem [resolvable:$true] %s354
          %360 = dma.hbm_to_vmem [thread:$0]  %s4, 4096, %s355, [#allocation6], 128, 128, 8
        $region20: #{tpu_custom_call.1} parent=11 // pred_fallthru
          _
        // Predicated region
        $region21: #{tpu_custom_call.1} parent=11 // pred_check
          %p361 = pneg %p168
        $region22: #{tpu_custom_call.1} parent=11 // pred_check_branch
          %363 = sbr.rel (%p361) target = $region24
        $region23: #{tpu_custom_call.1} parent=11 // pred_region
          _
        $region24: #{tpu_custom_call.1} parent=11 // pred_fallthru
          _
        // Predicated region
        $region25: #{tpu_custom_call.1} parent=11 // pred_check
          %p364 = pneg %p189
        $region26: #{tpu_custom_call.1} parent=11 // pred_check_branch
          %366 = sbr.rel (%p364) target = $region28
        $region27: #{tpu_custom_call.1} parent=11 // pred_region
          %s368 = ssub.s32 4096, 4096
          %369 = vsyncadd [#allocation9], %s368
          %s370 = sshll.u32 [#allocation8], 4
          %s371 = int_to_ptr.vmem [resolvable:$true] %s370
          %376 = dma.hbm_to_vmem [thread:$0]  %s6, 4096, %s371, [#allocation9], 128, 128, 8
        $region28: #{tpu_custom_call.1} parent=11 // pred_fallthru
          _
        // Predicated region
        $region29: #{tpu_custom_call.1} parent=11 // pred_check
          %p377 = pneg %p210
        $region30: #{tpu_custom_call.1} parent=11 // pred_check_branch
          %379 = sbr.rel (%p377) target = $region32
        $region31: #{tpu_custom_call.1} parent=11 // pred_region
          %s381 = ssub.s32 4096, 4096
          %382 = vsyncadd [#allocation9], %s381
          %s383 = sshll.u32 [#allocation10], 4
          %s384 = int_to_ptr.vmem [resolvable:$true] %s383
          %389 = dma.hbm_to_vmem [thread:$0]  %s7, 4096, %s384, [#allocation9], 128, 128, 8
        $region32: #{tpu_custom_call.1} parent=11 // pred_fallthru
          _
        // Predicated region
        $region33: #{tpu_custom_call.1} parent=11 // pred_check
          %p390 = pneg %p231
        $region34: #{tpu_custom_call.1} parent=11 // pred_check_branch
          %392 = sbr.rel (%p390) target = $region36
        $region35: #{tpu_custom_call.1} parent=11 // pred_region
          _
        $region36: #{tpu_custom_call.1} parent=11 // pred_fallthru
          _
        // Predicated region
        $region37: #{tpu_custom_call.1} parent=11 // pred_check
          %p393 = pneg %p252
        $region38: #{tpu_custom_call.1} parent=11 // pred_check_branch
          %395 = sbr.rel (%p393) target = $region40
        $region39: #{tpu_custom_call.1} parent=11 // pred_region
          %s397 = ssub.s32 2048, 2048
          %398 = vsyncadd [#allocation12], %s397
          %s399 = sshll.u32 [#allocation11], 4
          %s400 = int_to_ptr.vmem [resolvable:$true] %s399
          %405 = dma.hbm_to_vmem [thread:$0]  %s9, 2048, %s400, [#allocation12], 64, 64, 4
        $region40: #{tpu_custom_call.1} parent=11 // pred_fallthru
          _
        // Predicated region
        $region41: #{tpu_custom_call.1} parent=11 // pred_check
          %p406 = pneg %p273
        $region42: #{tpu_custom_call.1} parent=11 // pred_check_branch
          %408 = sbr.rel (%p406) target = $region44
        $region43: #{tpu_custom_call.1} parent=11 // pred_region
          %s410 = ssub.s32 2048, 2048
          %411 = vsyncadd [#allocation12], %s410
          %s412 = sshll.u32 [#allocation13], 4
          %s413 = int_to_ptr.vmem [resolvable:$true] %s412
          %418 = dma.hbm_to_vmem [thread:$0]  %s10, 2048, %s413, [#allocation12], 64, 64, 4
        $region44: #{tpu_custom_call.1} parent=11 // pred_fallthru
          _
        // Predicated region
        $region45: #{tpu_custom_call.1} parent=11 // pred_check
          %p419 = pneg %p294
        $region46: #{tpu_custom_call.1} parent=11 // pred_check_branch
          %421 = sbr.rel (%p419) target = $region48
        $region47: #{tpu_custom_call.1} parent=11 // pred_region
          _
        $region48: #{tpu_custom_call.1} parent=11 // pred_fallthru
          _
      $region12: #{tpu_custom_call.1} parent=5 // pred_fallthru
        _
      %p422 = scmp.lt.s32.totalorder %s27, 2
      // Predicated region
      $region49: #{tpu_custom_call.1} parent=5 // pred_check
        %p423 = pneg %p422
      $region50: #{tpu_custom_call.1} parent=5 // pred_check_branch
        %425 = sbr.rel (%p423) target = $region52
      $region51: #{tpu_custom_call.1} parent=5 // pred_region
        // Predicated region
        $region53: #{tpu_custom_call.1} parent=51 // pred_check
          %p426 = pneg %p47
        $region54: #{tpu_custom_call.1} parent=51 // pred_check_branch
          %428 = sbr.rel (%p426) target = $region56
        $region55: #{tpu_custom_call.1} parent=51 // pred_region
          %p429 = scmp.lt.s32.totalorder %s27, 1
          %s430 = scalar_select %p429, %s27, 1
          %s431 = smul.addr %s430, 64
          %s432 = smul.addr %s431, 4
          %s433 = scalar_lea.vmem %s0, %s432
        $region56: #{tpu_custom_call.1} parent=51 // pred_fallthru
          _
        // Predicated region
        $region57: #{tpu_custom_call.1} parent=51 // pred_check
          %p434 = pneg %p73
        $region58: #{tpu_custom_call.1} parent=51 // pred_check_branch
          %436 = sbr.rel (%p434) target = $region60
        $region59: #{tpu_custom_call.1} parent=51 // pred_region
          %p437 = scmp.lt.s32.totalorder %s27, 1
          %s438 = scalar_select %p437, %s27, 1
          %s439 = smul.addr %s438, 32
          %s440 = smul.addr %s439, 8
          %s441 = scalar_lea.vmem %s1, %s440
        $region60: #{tpu_custom_call.1} parent=51 // pred_fallthru
          _
        // Predicated region
        $region61: #{tpu_custom_call.1} parent=51 // pred_check
          %p442 = pneg %p99
        $region62: #{tpu_custom_call.1} parent=51 // pred_check_branch
          %444 = sbr.rel (%p442) target = $region64
        $region63: #{tpu_custom_call.1} parent=51 // pred_region
          %s445 = sand.u32 %s89, 1
          %s446 = scalar_lea.sflag [#allocation3], %s445
          %s447 = sand.u32 %s89, 1
          %s448 = smul.addr %s447, 256
          %s449 = scalar_lea.vmem [#allocation2], %s448
          %s451 = ssub.s32 4096, 4096
          %452 = vsyncadd %s446, %s451
          %s453 = smul.addr %s27, 64
          %s454 = smul.addr %s453, 64
          %s455 = scalar_lea.hbm %s2, %s454
          %s456 = sshll.u32 %s449, 4
          %s457 = int_to_ptr.vmem [resolvable:$true] %s456
          %462 = dma.hbm_to_vmem [thread:$0]  %s455, 4096, %s457, %s446, 128, 128, 8
        $region64: #{tpu_custom_call.1} parent=51 // pred_fallthru
          _
      $region52: #{tpu_custom_call.1} parent=5 // pred_fallthru
        _
      %p463 = scmp.le.s32.totalorder 1, %s27
      %p464 = scmp.lt.s32.totalorder %s27, 3
      %p465 = pnand %p463, %p464
      %p466 = pneg %p465
      // Predicated region
      $region65: #{tpu_custom_call.1} parent=5 // pred_check
        _
      $region66: #{tpu_custom_call.1} parent=5 // pred_check_branch
        %468 = sbr.rel (%p465) target = $region68
      $region67: #{tpu_custom_call.1} parent=5 // pred_region
        %s469 = ssub.s32 %s27, 1
        %s470 = sand.u32 %s92, 1
        %s471 = scalar_lea.sflag [#allocation3], %s470
        %s472 = sand.u32 %s92, 1
        %s473 = smul.addr %s472, 256
        %s474 = scalar_lea.vmem [#allocation2], %s473
        // Predicated region
        $region69: #{tpu_custom_call.1} parent=67 // pred_check
          %p475 = pneg %p105
        $region70: #{tpu_custom_call.1} parent=67 // pred_check_branch
          %477 = sbr.rel (%p475) target = $region72
        $region71: #{tpu_custom_call.1} parent=67 // pred_region
          %478 = dma.done %s471, 4096
        $region72: #{tpu_custom_call.1} parent=67 // pred_fallthru
          _
        // Predicated region
        $region73: #{tpu_custom_call.1} parent=67 // pred_check
          %p479 = pneg %p126
        $region74: #{tpu_custom_call.1} parent=67 // pred_check_branch
          %481 = sbr.rel (%p479) target = $region76
        $region75: #{tpu_custom_call.1} parent=67 // pred_region
          %482 = dma.done [#allocation6], 4096
        $region76: #{tpu_custom_call.1} parent=67 // pred_fallthru
          _
        // Predicated region
        $region77: #{tpu_custom_call.1} parent=67 // pred_check
          %p483 = pneg %p147
        $region78: #{tpu_custom_call.1} parent=67 // pred_check_branch
          %485 = sbr.rel (%p483) target = $region80
        $region79: #{tpu_custom_call.1} parent=67 // pred_region
          %486 = dma.done [#allocation6], 4096
        $region80: #{tpu_custom_call.1} parent=67 // pred_fallthru
          _
        // Predicated region
        $region81: #{tpu_custom_call.1} parent=67 // pred_check
          %p487 = pneg %p189
        $region82: #{tpu_custom_call.1} parent=67 // pred_check_branch
          %489 = sbr.rel (%p487) target = $region84
        $region83: #{tpu_custom_call.1} parent=67 // pred_region
          %490 = dma.done [#allocation9], 4096
        $region84: #{tpu_custom_call.1} parent=67 // pred_fallthru
          _
        // Predicated region
        $region85: #{tpu_custom_call.1} parent=67 // pred_check
          %p491 = pneg %p210
        $region86: #{tpu_custom_call.1} parent=67 // pred_check_branch
          %493 = sbr.rel (%p491) target = $region88
        $region87: #{tpu_custom_call.1} parent=67 // pred_region
          %494 = dma.done [#allocation9], 4096
        $region88: #{tpu_custom_call.1} parent=67 // pred_fallthru
          _
        // Predicated region
        $region89: #{tpu_custom_call.1} parent=67 // pred_check
          %p495 = pneg %p252
        $region90: #{tpu_custom_call.1} parent=67 // pred_check_branch
          %497 = sbr.rel (%p495) target = $region92
        $region91: #{tpu_custom_call.1} parent=67 // pred_region
          %498 = dma.done [#allocation12], 2048
        $region92: #{tpu_custom_call.1} parent=67 // pred_fallthru
          _
        // Predicated region
        $region93: #{tpu_custom_call.1} parent=67 // pred_check
          %p499 = pneg %p273
        $region94: #{tpu_custom_call.1} parent=67 // pred_check_branch
          %501 = sbr.rel (%p499) target = $region96
        $region95: #{tpu_custom_call.1} parent=67 // pred_region
          %502 = dma.done [#allocation12], 2048
        $region96: #{tpu_custom_call.1} parent=67 // pred_fallthru
          _
        %p503 = scmp.lt.s32.totalorder %s32, 1
        %s504 = scalar_select %p503, %s32, 1
        %s505 = smul.addr %s504, 64
        %s506 = smul.addr %s505, 4
        %s507 = scalar_lea.vmem %s0, %s506
        %p508 = pneg %p53
        %p509 = pneg %p50
        %p510 = scmp.lt.s32.totalorder %s32, 1
        %s511 = scalar_select %p510, %s32, 1
        %s512 = smul.addr %s511, 32
        %s513 = smul.addr %s512, 8
        %s514 = scalar_lea.vmem %s1, %s513
        %p515 = pneg %p79
        %p516 = pneg %p76
        %s517 = sand.u32 %s92, 1
        %s518 = scalar_lea.sflag [#allocation3], %s517
        %s519 = sand.u32 %s92, 1
        %s520 = smul.addr %s519, 256
        %s521 = scalar_lea.vmem [#allocation2], %s520
        %p522 = pneg %p105
        %p523 = pneg %p102
        %p524 = pneg %p126
        %p525 = pneg %p123
        %p526 = pneg %p147
        %p527 = pneg %p144
        %p528 = pneg %p168
        %p529 = pneg %p165
        %p530 = pneg %p189
        %p531 = pneg %p186
        %p532 = pneg %p210
        %p533 = pneg %p207
        %p534 = pneg %p231
        %p535 = pneg %p228
        %p536 = pneg %p252
        %p537 = pneg %p249
        %p538 = pneg %p273
        %p539 = pneg %p270
        %p540 = pneg %p294
        %p541 = pneg %p291
        %p542 = pneg %p320
        %p543 = pneg %p317
        %s544 = sand.u32 %s307, 1
        %s545 = scalar_lea.sflag [#allocation4], %s544
        %s546 = sand.u32 %s307, 1
        %s547 = smul.addr %s546, 256
        %s548 = scalar_lea.vmem [#allocation14], %s547
        %p549 = scmp.lt.s32.totalorder %s32, 1
        %s550 = scalar_select %p549, %s32, 1
        %s551 = smul.addr %s550, 64
        %s552 = smul.addr %s551, 4
        %s553 = scalar_lea.vmem %s0, %s552
        %p554 = scmp.lt.s32.totalorder %s32, 1
        %s555 = scalar_select %p554, %s32, 1
        %s556 = smul.addr %s555, 32
        %s557 = smul.addr %s556, 8
        %s558 = scalar_lea.vmem %s1, %s557
        %v560 = vld [vmem:[%s553] sm:$0xff]
        %v561 = vld [vmem:[%s553 + $0x8] sm:$0xff]
        %v562 = vld [vmem:[%s553 + $0x10] sm:$0xff]
        %v563 = vld [vmem:[%s553 + $0x18] sm:$0xff]
        %v564 = vld [vmem:[%s553 + $0x20] sm:$0xff]
        %v565 = vld [vmem:[%s553 + $0x28] sm:$0xff]
        %v566 = vld [vmem:[%s553 + $0x30] sm:$0xff]
        %v567 = vld [vmem:[%s553 + $0x38] sm:$0xff]
        %v568 = vld [vmem:[%s553 + $0x40] sm:$0xff]
        %v569 = vld [vmem:[%s553 + $0x48] sm:$0xff]
        %v570 = vld [vmem:[%s553 + $0x50] sm:$0xff]
        %v571 = vld [vmem:[%s553 + $0x58] sm:$0xff]
        %v572 = vld [vmem:[%s553 + $0x60] sm:$0xff]
        %v573 = vld [vmem:[%s553 + $0x68] sm:$0xff]
        %v574 = vld [vmem:[%s553 + $0x70] sm:$0xff]
        %v575 = vld [vmem:[%s553 + $0x78] sm:$0xff]
        %v576 = vld [vmem:[%s553 + $0x80] sm:$0xff]
        %v577 = vld [vmem:[%s553 + $0x88] sm:$0xff]
        %v578 = vld [vmem:[%s553 + $0x90] sm:$0xff]
        %v579 = vld [vmem:[%s553 + $0x98] sm:$0xff]
        %v580 = vld [vmem:[%s553 + $0xa0] sm:$0xff]
        %v581 = vld [vmem:[%s553 + $0xa8] sm:$0xff]
        %v582 = vld [vmem:[%s553 + $0xb0] sm:$0xff]
        %v583 = vld [vmem:[%s553 + $0xb8] sm:$0xff]
        %v584 = vld [vmem:[%s553 + $0xc0] sm:$0xff]
        %v585 = vld [vmem:[%s553 + $0xc8] sm:$0xff]
        %v586 = vld [vmem:[%s553 + $0xd0] sm:$0xff]
        %v587 = vld [vmem:[%s553 + $0xd8] sm:$0xff]
        %v588 = vld [vmem:[%s553 + $0xe0] sm:$0xff]
        %v589 = vld [vmem:[%s553 + $0xe8] sm:$0xff]
        %v590 = vld [vmem:[%s553 + $0xf0] sm:$0xff]
        %v591 = vld [vmem:[%s553 + $0xf8] sm:$0xff]
        %v592 = vld [vmem:[%s558] sm:$0xff]
        %v593 = vld [vmem:[%s558 + $0x8] sm:$0xff]
        %v594 = vld [vmem:[%s558 + $0x10] sm:$0xff]
        %v595 = vld [vmem:[%s558 + $0x18] sm:$0xff]
        %v596 = vld [vmem:[%s558 + $0x20] sm:$0xff]
        %v597 = vld [vmem:[%s558 + $0x28] sm:$0xff]
        %v598 = vld [vmem:[%s558 + $0x30] sm:$0xff]
        %v599 = vld [vmem:[%s558 + $0x38] sm:$0xff]
        %v600 = vld [vmem:[%s558 + $0x40] sm:$0xff]
        %v601 = vld [vmem:[%s558 + $0x48] sm:$0xff]
        %v602 = vld [vmem:[%s558 + $0x50] sm:$0xff]
        %v603 = vld [vmem:[%s558 + $0x58] sm:$0xff]
        %v604 = vld [vmem:[%s558 + $0x60] sm:$0xff]
        %v605 = vld [vmem:[%s558 + $0x68] sm:$0xff]
        %v606 = vld [vmem:[%s558 + $0x70] sm:$0xff]
        %v607 = vld [vmem:[%s558 + $0x78] sm:$0xff]
        %v608 = vld [vmem:[%s558 + $0x80] sm:$0xff]
        %v609 = vld [vmem:[%s558 + $0x88] sm:$0xff]
        %v610 = vld [vmem:[%s558 + $0x90] sm:$0xff]
        %v611 = vld [vmem:[%s558 + $0x98] sm:$0xff]
        %v612 = vld [vmem:[%s558 + $0xa0] sm:$0xff]
        %v613 = vld [vmem:[%s558 + $0xa8] sm:$0xff]
        %v614 = vld [vmem:[%s558 + $0xb0] sm:$0xff]
        %v615 = vld [vmem:[%s558 + $0xb8] sm:$0xff]
        %v616 = vld [vmem:[%s558 + $0xc0] sm:$0xff]
        %v617 = vld [vmem:[%s558 + $0xc8] sm:$0xff]
        %v618 = vld [vmem:[%s558 + $0xd0] sm:$0xff]
        %v619 = vld [vmem:[%s558 + $0xd8] sm:$0xff]
        %v620 = vld [vmem:[%s558 + $0xe0] sm:$0xff]
        %v621 = vld [vmem:[%s558 + $0xe8] sm:$0xff]
        %v622 = vld [vmem:[%s558 + $0xf0] sm:$0xff]
        %v623 = vld [vmem:[%s558 + $0xf8] sm:$0xff]
        %v624 = vld [vmem:[%s474] sm:$0xff]
        %v625 = vld [vmem:[%s474 + $0x8] sm:$0xff]
        %v626 = vld [vmem:[%s474 + $0x10] sm:$0xff]
        %v627 = vld [vmem:[%s474 + $0x18] sm:$0xff]
        %v628 = vld [vmem:[%s474 + $0x20] sm:$0xff]
        %v629 = vld [vmem:[%s474 + $0x28] sm:$0xff]
        %v630 = vld [vmem:[%s474 + $0x30] sm:$0xff]
        %v631 = vld [vmem:[%s474 + $0x38] sm:$0xff]
        %v632 = vld [vmem:[%s474 + $0x40] sm:$0xff]
        %v633 = vld [vmem:[%s474 + $0x48] sm:$0xff]
        %v634 = vld [vmem:[%s474 + $0x50] sm:$0xff]
        %v635 = vld [vmem:[%s474 + $0x58] sm:$0xff]
        %v636 = vld [vmem:[%s474 + $0x60] sm:$0xff]
        %v637 = vld [vmem:[%s474 + $0x68] sm:$0xff]
        %v638 = vld [vmem:[%s474 + $0x70] sm:$0xff]
        %v639 = vld [vmem:[%s474 + $0x78] sm:$0xff]
        %v640 = vld [vmem:[%s474 + $0x80] sm:$0xff]
        %v641 = vld [vmem:[%s474 + $0x88] sm:$0xff]
        %v642 = vld [vmem:[%s474 + $0x90] sm:$0xff]
        %v643 = vld [vmem:[%s474 + $0x98] sm:$0xff]
        %v644 = vld [vmem:[%s474 + $0xa0] sm:$0xff]
        %v645 = vld [vmem:[%s474 + $0xa8] sm:$0xff]
        %v646 = vld [vmem:[%s474 + $0xb0] sm:$0xff]
        %v647 = vld [vmem:[%s474 + $0xb8] sm:$0xff]
        %v648 = vld [vmem:[%s474 + $0xc0] sm:$0xff]
        %v649 = vld [vmem:[%s474 + $0xc8] sm:$0xff]
        %v650 = vld [vmem:[%s474 + $0xd0] sm:$0xff]
        %v651 = vld [vmem:[%s474 + $0xd8] sm:$0xff]
        %v652 = vld [vmem:[%s474 + $0xe0] sm:$0xff]
        %v653 = vld [vmem:[%s474 + $0xe8] sm:$0xff]
        %v654 = vld [vmem:[%s474 + $0xf0] sm:$0xff]
        %v655 = vld [vmem:[%s474 + $0xf8] sm:$0xff]
        %v656 = vld [vmem:[#allocation5] sm:$0xff]
        %v657 = vld [vmem:[#allocation5 + $0x8] sm:$0xff]
        %v658 = vld [vmem:[#allocation5 + $0x10] sm:$0xff]
        %v659 = vld [vmem:[#allocation5 + $0x18] sm:$0xff]
        %v660 = vld [vmem:[#allocation5 + $0x20] sm:$0xff]
        %v661 = vld [vmem:[#allocation5 + $0x28] sm:$0xff]
        %v662 = vld [vmem:[#allocation5 + $0x30] sm:$0xff]
        %v663 = vld [vmem:[#allocation5 + $0x38] sm:$0xff]
        %v664 = vld [vmem:[#allocation5 + $0x40] sm:$0xff]
        %v665 = vld [vmem:[#allocation5 + $0x48] sm:$0xff]
        %v666 = vld [vmem:[#allocation5 + $0x50] sm:$0xff]
        %v667 = vld [vmem:[#allocation5 + $0x58] sm:$0xff]
        %v668 = vld [vmem:[#allocation5 + $0x60] sm:$0xff]
        %v669 = vld [vmem:[#allocation5 + $0x68] sm:$0xff]
        %v670 = vld [vmem:[#allocation5 + $0x70] sm:$0xff]
        %v671 = vld [vmem:[#allocation5 + $0x78] sm:$0xff]
        %v672 = vld [vmem:[#allocation5 + $0x80] sm:$0xff]
        %v673 = vld [vmem:[#allocation5 + $0x88] sm:$0xff]
        %v674 = vld [vmem:[#allocation5 + $0x90] sm:$0xff]
        %v675 = vld [vmem:[#allocation5 + $0x98] sm:$0xff]
        %v676 = vld [vmem:[#allocation5 + $0xa0] sm:$0xff]
        %v677 = vld [vmem:[#allocation5 + $0xa8] sm:$0xff]
        %v678 = vld [vmem:[#allocation5 + $0xb0] sm:$0xff]
        %v679 = vld [vmem:[#allocation5 + $0xb8] sm:$0xff]
        %v680 = vld [vmem:[#allocation5 + $0xc0] sm:$0xff]
        %v681 = vld [vmem:[#allocation5 + $0xc8] sm:$0xff]
        %v682 = vld [vmem:[#allocation5 + $0xd0] sm:$0xff]
        %v683 = vld [vmem:[#allocation5 + $0xd8] sm:$0xff]
        %v684 = vld [vmem:[#allocation5 + $0xe0] sm:$0xff]
        %v685 = vld [vmem:[#allocation5 + $0xe8] sm:$0xff]
        %v686 = vld [vmem:[#allocation5 + $0xf0] sm:$0xff]
        %v687 = vld [vmem:[#allocation5 + $0xf8] sm:$0xff]
        %v688 = vld [vmem:[#allocation7] sm:$0xff]
        %v689 = vld [vmem:[#allocation7 + $0x8] sm:$0xff]
        %v690 = vld [vmem:[#allocation7 + $0x10] sm:$0xff]
        %v691 = vld [vmem:[#allocation7 + $0x18] sm:$0xff]
        %v692 = vld [vmem:[#allocation7 + $0x20] sm:$0xff]
        %v693 = vld [vmem:[#allocation7 + $0x28] sm:$0xff]
        %v694 = vld [vmem:[#allocation7 + $0x30] sm:$0xff]
        %v695 = vld [vmem:[#allocation7 + $0x38] sm:$0xff]
        %v696 = vld [vmem:[#allocation7 + $0x40] sm:$0xff]
        %v697 = vld [vmem:[#allocation7 + $0x48] sm:$0xff]
        %v698 = vld [vmem:[#allocation7 + $0x50] sm:$0xff]
        %v699 = vld [vmem:[#allocation7 + $0x58] sm:$0xff]
        %v700 = vld [vmem:[#allocation7 + $0x60] sm:$0xff]
        %v701 = vld [vmem:[#allocation7 + $0x68] sm:$0xff]
        %v702 = vld [vmem:[#allocation7 + $0x70] sm:$0xff]
        %v703 = vld [vmem:[#allocation7 + $0x78] sm:$0xff]
        %v704 = vld [vmem:[#allocation7 + $0x80] sm:$0xff]
        %v705 = vld [vmem:[#allocation7 + $0x88] sm:$0xff]
        %v706 = vld [vmem:[#allocation7 + $0x90] sm:$0xff]
        %v707 = vld [vmem:[#allocation7 + $0x98] sm:$0xff]
        %v708 = vld [vmem:[#allocation7 + $0xa0] sm:$0xff]
        %v709 = vld [vmem:[#allocation7 + $0xa8] sm:$0xff]
        %v710 = vld [vmem:[#allocation7 + $0xb0] sm:$0xff]
        %v711 = vld [vmem:[#allocation7 + $0xb8] sm:$0xff]
        %v712 = vld [vmem:[#allocation7 + $0xc0] sm:$0xff]
        %v713 = vld [vmem:[#allocation7 + $0xc8] sm:$0xff]
        %v714 = vld [vmem:[#allocation7 + $0xd0] sm:$0xff]
        %v715 = vld [vmem:[#allocation7 + $0xd8] sm:$0xff]
        %v716 = vld [vmem:[#allocation7 + $0xe0] sm:$0xff]
        %v717 = vld [vmem:[#allocation7 + $0xe8] sm:$0xff]
        %v718 = vld [vmem:[#allocation7 + $0xf0] sm:$0xff]
        %v719 = vld [vmem:[#allocation7 + $0xf8] sm:$0xff]
        %v720 = vld [vmem:[%s5] sm:$0x3]
        %v753 = vunpack.c.l.b16 %v560
        %v754 = vunpack.c.h.b16 %v560
        %v755 = vunpack.c.l.b16 %v561
        %v756 = vunpack.c.h.b16 %v561
        %v757 = vunpack.c.l.b16 %v562
        %v758 = vunpack.c.h.b16 %v562
        %v759 = vunpack.c.l.b16 %v563
        %v760 = vunpack.c.h.b16 %v563
        %v761 = vunpack.c.l.b16 %v564
        %v762 = vunpack.c.h.b16 %v564
        %v763 = vunpack.c.l.b16 %v565
        %v764 = vunpack.c.h.b16 %v565
        %v765 = vunpack.c.l.b16 %v566
        %v766 = vunpack.c.h.b16 %v566
        %v767 = vunpack.c.l.b16 %v567
        %v768 = vunpack.c.h.b16 %v567
        %v769 = vunpack.c.l.b16 %v568
        %v770 = vunpack.c.h.b16 %v568
        %v771 = vunpack.c.l.b16 %v569
        %v772 = vunpack.c.h.b16 %v569
        %v773 = vunpack.c.l.b16 %v570
        %v774 = vunpack.c.h.b16 %v570
        %v775 = vunpack.c.l.b16 %v571
        %v776 = vunpack.c.h.b16 %v571
        %v777 = vunpack.c.l.b16 %v572
        %v778 = vunpack.c.h.b16 %v572
        %v779 = vunpack.c.l.b16 %v573
        %v780 = vunpack.c.h.b16 %v573
        %v781 = vunpack.c.l.b16 %v574
        %v782 = vunpack.c.h.b16 %v574
        %v783 = vunpack.c.l.b16 %v575
        %v784 = vunpack.c.h.b16 %v575
        %v785 = vunpack.c.l.b16 %v576
        %v786 = vunpack.c.h.b16 %v576
        %v787 = vunpack.c.l.b16 %v577
        %v788 = vunpack.c.h.b16 %v577
        %v789 = vunpack.c.l.b16 %v578
        %v790 = vunpack.c.h.b16 %v578
        %v791 = vunpack.c.l.b16 %v579
        %v792 = vunpack.c.h.b16 %v579
        %v793 = vunpack.c.l.b16 %v580
        %v794 = vunpack.c.h.b16 %v580
        %v795 = vunpack.c.l.b16 %v581
        %v796 = vunpack.c.h.b16 %v581
        %v797 = vunpack.c.l.b16 %v582
        %v798 = vunpack.c.h.b16 %v582
        %v799 = vunpack.c.l.b16 %v583
        %v800 = vunpack.c.h.b16 %v583
        %v801 = vunpack.c.l.b16 %v584
        %v802 = vunpack.c.h.b16 %v584
        %v803 = vunpack.c.l.b16 %v585
        %v804 = vunpack.c.h.b16 %v585
        %v805 = vunpack.c.l.b16 %v586
        %v806 = vunpack.c.h.b16 %v586
        %v807 = vunpack.c.l.b16 %v587
        %v808 = vunpack.c.h.b16 %v587
        %v809 = vunpack.c.l.b16 %v588
        %v810 = vunpack.c.h.b16 %v588
        %v811 = vunpack.c.l.b16 %v589
        %v812 = vunpack.c.h.b16 %v589
        %v813 = vunpack.c.l.b16 %v590
        %v814 = vunpack.c.h.b16 %v590
        %v815 = vunpack.c.l.b16 %v591
        %v816 = vunpack.c.h.b16 %v591
        %v817 = vpack.c.b16 %v755, %v753
        %v818 = vpack.c.b16 %v756, %v754
        %v819 = vpack.c.b16 %v759, %v757
        %v820 = vpack.c.b16 %v760, %v758
        %v821 = vpack.c.b16 %v763, %v761
        %v822 = vpack.c.b16 %v764, %v762
        %v823 = vpack.c.b16 %v767, %v765
        %v824 = vpack.c.b16 %v768, %v766
        %v825 = vpack.c.b16 %v771, %v769
        %v826 = vpack.c.b16 %v772, %v770
        %v827 = vpack.c.b16 %v775, %v773
        %v828 = vpack.c.b16 %v776, %v774
        %v829 = vpack.c.b16 %v779, %v777
        %v830 = vpack.c.b16 %v780, %v778
        %v831 = vpack.c.b16 %v783, %v781
        %v832 = vpack.c.b16 %v784, %v782
        %v833 = vpack.c.b16 %v787, %v785
        %v834 = vpack.c.b16 %v788, %v786
        %v835 = vpack.c.b16 %v791, %v789
        %v836 = vpack.c.b16 %v792, %v790
        %v837 = vpack.c.b16 %v795, %v793
        %v838 = vpack.c.b16 %v796, %v794
        %v839 = vpack.c.b16 %v799, %v797
        %v840 = vpack.c.b16 %v800, %v798
        %v841 = vpack.c.b16 %v803, %v801
        %v842 = vpack.c.b16 %v804, %v802
        %v843 = vpack.c.b16 %v807, %v805
        %v844 = vpack.c.b16 %v808, %v806
        %v845 = vpack.c.b16 %v811, %v809
        %v846 = vpack.c.b16 %v812, %v810
        %v847 = vpack.c.b16 %v815, %v813
        %v848 = vpack.c.b16 %v816, %v814
        %v913 = vunpack.c.l.b16 %v624
        %v914 = vunpack.c.h.b16 %v624
        %v915 = vunpack.c.l.b16 %v625
        %v916 = vunpack.c.h.b16 %v625
        %v917 = vunpack.c.l.b16 %v626
        %v918 = vunpack.c.h.b16 %v626
        %v919 = vunpack.c.l.b16 %v627
        %v920 = vunpack.c.h.b16 %v627
        %v921 = vunpack.c.l.b16 %v628
        %v922 = vunpack.c.h.b16 %v628
        %v923 = vunpack.c.l.b16 %v629
        %v924 = vunpack.c.h.b16 %v629
        %v925 = vunpack.c.l.b16 %v630
        %v926 = vunpack.c.h.b16 %v630
        %v927 = vunpack.c.l.b16 %v631
        %v928 = vunpack.c.h.b16 %v631
        %v929 = vunpack.c.l.b16 %v632
        %v930 = vunpack.c.h.b16 %v632
        %v931 = vunpack.c.l.b16 %v633
        %v932 = vunpack.c.h.b16 %v633
        %v933 = vunpack.c.l.b16 %v634
        %v934 = vunpack.c.h.b16 %v634
        %v935 = vunpack.c.l.b16 %v635
        %v936 = vunpack.c.h.b16 %v635
        %v937 = vunpack.c.l.b16 %v636
        %v938 = vunpack.c.h.b16 %v636
        %v939 = vunpack.c.l.b16 %v637
        %v940 = vunpack.c.h.b16 %v637
        %v941 = vunpack.c.l.b16 %v638
        %v942 = vunpack.c.h.b16 %v638
        %v943 = vunpack.c.l.b16 %v639
        %v944 = vunpack.c.h.b16 %v639
        %v945 = vunpack.c.l.b16 %v640
        %v946 = vunpack.c.h.b16 %v640
        %v947 = vunpack.c.l.b16 %v641
        %v948 = vunpack.c.h.b16 %v641
        %v949 = vunpack.c.l.b16 %v642
        %v950 = vunpack.c.h.b16 %v642
        %v951 = vunpack.c.l.b16 %v643
        %v952 = vunpack.c.h.b16 %v643
        %v953 = vunpack.c.l.b16 %v644
        %v954 = vunpack.c.h.b16 %v644
        %v955 = vunpack.c.l.b16 %v645
        %v956 = vunpack.c.h.b16 %v645
        %v957 = vunpack.c.l.b16 %v646
        %v958 = vunpack.c.h.b16 %v646
        %v959 = vunpack.c.l.b16 %v647
        %v960 = vunpack.c.h.b16 %v647
        %v961 = vunpack.c.l.b16 %v648
        %v962 = vunpack.c.h.b16 %v648
        %v963 = vunpack.c.l.b16 %v649
        %v964 = vunpack.c.h.b16 %v649
        %v965 = vunpack.c.l.b16 %v650
        %v966 = vunpack.c.h.b16 %v650
        %v967 = vunpack.c.l.b16 %v651
        %v968 = vunpack.c.h.b16 %v651
        %v969 = vunpack.c.l.b16 %v652
        %v970 = vunpack.c.h.b16 %v652
        %v971 = vunpack.c.l.b16 %v653
        %v972 = vunpack.c.h.b16 %v653
        %v973 = vunpack.c.l.b16 %v654
        %v974 = vunpack.c.h.b16 %v654
        %v975 = vunpack.c.l.b16 %v655
        %v976 = vunpack.c.h.b16 %v655
        %v977 = vpack.c.b16 %v915, %v913
        %v978 = vpack.c.b16 %v916, %v914
        %v979 = vpack.c.b16 %v919, %v917
        %v980 = vpack.c.b16 %v920, %v918
        %v981 = vpack.c.b16 %v923, %v921
        %v982 = vpack.c.b16 %v924, %v922
        %v983 = vpack.c.b16 %v927, %v925
        %v984 = vpack.c.b16 %v928, %v926
        %v985 = vpack.c.b16 %v931, %v929
        %v986 = vpack.c.b16 %v932, %v930
        %v987 = vpack.c.b16 %v935, %v933
        %v988 = vpack.c.b16 %v936, %v934
        %v989 = vpack.c.b16 %v939, %v937
        %v990 = vpack.c.b16 %v940, %v938
        %v991 = vpack.c.b16 %v943, %v941
        %v992 = vpack.c.b16 %v944, %v942
        %v993 = vpack.c.b16 %v947, %v945
        %v994 = vpack.c.b16 %v948, %v946
        %v995 = vpack.c.b16 %v951, %v949
        %v996 = vpack.c.b16 %v952, %v950
        %v997 = vpack.c.b16 %v955, %v953
        %v998 = vpack.c.b16 %v956, %v954
        %v999 = vpack.c.b16 %v959, %v957
        %v1000 = vpack.c.b16 %v960, %v958
        %v1001 = vpack.c.b16 %v963, %v961
        %v1002 = vpack.c.b16 %v964, %v962
        %v1003 = vpack.c.b16 %v967, %v965
        %v1004 = vpack.c.b16 %v968, %v966
        %v1005 = vpack.c.b16 %v971, %v969
        %v1006 = vpack.c.b16 %v972, %v970
        %v1007 = vpack.c.b16 %v975, %v973
        %v1008 = vpack.c.b16 %v976, %v974
        %1041 = vmatprep.subr.bf16.mxu0 %v978
        %1042 = vmatpush1.bf16.msra.mxu0 %v977
        %1043 = vmatprep.subr.bf16.mxu0 %v980
        %1044 = vmatpush1.bf16.msra.mxu0 %v979
        %1045 = vmatprep.subr.bf16.mxu0 %v982
        %1046 = vmatpush1.bf16.msra.mxu0 %v981
        %1047 = vmatprep.subr.bf16.mxu0 %v984
        %1048 = vmatpush1.bf16.msra.mxu0 %v983
        %1049 = vmatprep.subr.bf16.mxu0 %v986
        %1050 = vmatpush1.bf16.msra.mxu0 %v985
        %1051 = vmatprep.subr.bf16.mxu0 %v988
        %1052 = vmatpush1.bf16.msra.mxu0 %v987
        %1053 = vmatprep.subr.bf16.mxu0 %v990
        %1054 = vmatpush1.bf16.msra.mxu0 %v989
        %1055 = vmatprep.subr.bf16.mxu0 %v992
        %1056 = vmatpush1.bf16.msra.mxu0 %v991
        %1057 = vmatprep.subr.bf16.mxu0 %v994
        %1058 = vmatpush1.bf16.msra.mxu0 %v993
        %1059 = vmatprep.subr.bf16.mxu0 %v996
        %1060 = vmatpush1.bf16.msra.mxu0 %v995
        %1061 = vmatprep.subr.bf16.mxu0 %v998
        %1062 = vmatpush1.bf16.msra.mxu0 %v997
        %1063 = vmatprep.subr.bf16.mxu0 %v1000
        %1064 = vmatpush1.bf16.msra.mxu0 %v999
        %1065 = vmatprep.subr.bf16.mxu0 %v1002
        %1066 = vmatpush1.bf16.msra.mxu0 %v1001
        %1067 = vmatprep.subr.bf16.mxu0 %v1004
        %1068 = vmatpush1.bf16.msra.mxu0 %v1003
        %1069 = vmatprep.subr.bf16.mxu0 %v1006
        %1070 = vmatpush1.bf16.msra.mxu0 %v1005
        %1071 = vmatprep.subr.bf16.mxu0 %v1008
        %1072 = vmatpush1.bf16.msra.mxu0 %v1007
        %1073 = vmatprep.mubr.bf16.mxu0 %v818
        %1074 = vmatmul.mubr.bf16.gmra.mrb[0].mxu0 %v817
        %v1075 = vpop.f32.mrb[0].mxu0
        %v1076 = vadd.f32 0.0, %v1075
        %v1077 = vpop.f32.mrb[0].mxu0
        %v1078 = vadd.f32 0.0, %v1077
        %v1079 = vpop.f32.mrb[0].mxu0
        %v1080 = vadd.f32 0.0, %v1079
        %v1081 = vpop.f32.mrb[0].mxu0
        %v1082 = vadd.f32 0.0, %v1081
        %1083 = vmatprep.mubr.bf16.mxu0 %v820
        %1084 = vmatmul.mubr.bf16.gmra.mrb[0].mxu0 %v819
        %v1085 = vpop.f32.mrb[0].mxu0
        %v1086 = vadd.f32 0.0, %v1085
        %v1087 = vpop.f32.mrb[0].mxu0
        %v1088 = vadd.f32 0.0, %v1087
        %v1089 = vpop.f32.mrb[0].mxu0
        %v1090 = vadd.f32 0.0, %v1089
        %v1091 = vpop.f32.mrb[0].mxu0
        %v1092 = vadd.f32 0.0, %v1091
        %1093 = vmatprep.mubr.bf16.mxu0 %v822
        %1094 = vmatmul.mubr.bf16.gmra.mrb[0].mxu0 %v821
        %v1095 = vpop.f32.mrb[0].mxu0
        %v1096 = vadd.f32 0.0, %v1095
        %v1097 = vpop.f32.mrb[0].mxu0
        %v1098 = vadd.f32 0.0, %v1097
        %v1099 = vpop.f32.mrb[0].mxu0
        %v1100 = vadd.f32 0.0, %v1099
        %v1101 = vpop.f32.mrb[0].mxu0
        %v1102 = vadd.f32 0.0, %v1101
        %1103 = vmatprep.mubr.bf16.mxu0 %v824
        %1104 = vmatmul.mubr.bf16.gmra.mrb[0].mxu0 %v823
        %v1105 = vpop.f32.mrb[0].mxu0
        %v1106 = vadd.f32 0.0, %v1105
        %v1107 = vpop.f32.mrb[0].mxu0
        %v1108 = vadd.f32 0.0, %v1107
        %v1109 = vpop.f32.mrb[0].mxu0
        %v1110 = vadd.f32 0.0, %v1109
        %v1111 = vpop.f32.mrb[0].mxu0
        %v1112 = vadd.f32 0.0, %v1111
        %1113 = vmatprep.mubr.bf16.mxu0 %v826
        %1114 = vmatmul.mubr.bf16.gmra.mrb[0].mxu0 %v825
        %v1115 = vpop.f32.mrb[0].mxu0
        %v1116 = vadd.f32 0.0, %v1115
        %v1117 = vpop.f32.mrb[0].mxu0
        %v1118 = vadd.f32 0.0, %v1117
        %v1119 = vpop.f32.mrb[0].mxu0
        %v1120 = vadd.f32 0.0, %v1119
        %v1121 = vpop.f32.mrb[0].mxu0
        %v1122 = vadd.f32 0.0, %v1121
        %1123 = vmatprep.mubr.bf16.mxu0 %v828
        %1124 = vmatmul.mubr.bf16.gmra.mrb[0].mxu0 %v827
        %v1125 = vpop.f32.mrb[0].mxu0
        %v1126 = vadd.f32 0.0, %v1125
        %v1127 = vpop.f32.mrb[0].mxu0
        %v1128 = vadd.f32 0.0, %v1127
        %v1129 = vpop.f32.mrb[0].mxu0
        %v1130 = vadd.f32 0.0, %v1129
        %v1131 = vpop.f32.mrb[0].mxu0
        %v1132 = vadd.f32 0.0, %v1131
        %1133 = vmatprep.mubr.bf16.mxu0 %v830
        %1134 = vmatmul.mubr.bf16.gmra.mrb[0].mxu0 %v829
        %v1135 = vpop.f32.mrb[0].mxu0
        %v1136 = vadd.f32 0.0, %v1135
        %v1137 = vpop.f32.mrb[0].mxu0
        %v1138 = vadd.f32 0.0, %v1137
        %v1139 = vpop.f32.mrb[0].mxu0
        %v1140 = vadd.f32 0.0, %v1139
        %v1141 = vpop.f32.mrb[0].mxu0
        %v1142 = vadd.f32 0.0, %v1141
        %1143 = vmatprep.mubr.bf16.mxu0 %v832
        %1144 = vmatmul.mubr.bf16.gmra.mrb[0].mxu0 %v831
        %v1145 = vpop.f32.mrb[0].mxu0
        %v1146 = vadd.f32 0.0, %v1145
        %v1147 = vpop.f32.mrb[0].mxu0
        %v1148 = vadd.f32 0.0, %v1147
        %v1149 = vpop.f32.mrb[0].mxu0
        %v1150 = vadd.f32 0.0, %v1149
        %v1151 = vpop.f32.mrb[0].mxu0
        %v1152 = vadd.f32 0.0, %v1151
        %1153 = vmatprep.mubr.bf16.mxu0 %v834
        %1154 = vmatmul.mubr.bf16.gmra.mrb[0].mxu0 %v833
        %v1155 = vpop.f32.mrb[0].mxu0
        %v1156 = vadd.f32 0.0, %v1155
        %v1157 = vpop.f32.mrb[0].mxu0
        %v1158 = vadd.f32 0.0, %v1157
        %v1159 = vpop.f32.mrb[0].mxu0
        %v1160 = vadd.f32 0.0, %v1159
        %v1161 = vpop.f32.mrb[0].mxu0
        %v1162 = vadd.f32 0.0, %v1161
        %1163 = vmatprep.mubr.bf16.mxu0 %v836
        %1164 = vmatmul.mubr.bf16.gmra.mrb[0].mxu0 %v835
        %v1165 = vpop.f32.mrb[0].mxu0
        %v1166 = vadd.f32 0.0, %v1165
        %v1167 = vpop.f32.mrb[0].mxu0
        %v1168 = vadd.f32 0.0, %v1167
        %v1169 = vpop.f32.mrb[0].mxu0
        %v1170 = vadd.f32 0.0, %v1169
        %v1171 = vpop.f32.mrb[0].mxu0
        %v1172 = vadd.f32 0.0, %v1171
        %1173 = vmatprep.mubr.bf16.mxu0 %v838
        %1174 = vmatmul.mubr.bf16.gmra.mrb[0].mxu0 %v837
        %v1175 = vpop.f32.mrb[0].mxu0
        %v1176 = vadd.f32 0.0, %v1175
        %v1177 = vpop.f32.mrb[0].mxu0
        %v1178 = vadd.f32 0.0, %v1177
        %v1179 = vpop.f32.mrb[0].mxu0
        %v1180 = vadd.f32 0.0, %v1179
        %v1181 = vpop.f32.mrb[0].mxu0
        %v1182 = vadd.f32 0.0, %v1181
        %1183 = vmatprep.mubr.bf16.mxu0 %v840
        %1184 = vmatmul.mubr.bf16.gmra.mrb[0].mxu0 %v839
        %v1185 = vpop.f32.mrb[0].mxu0
        %v1186 = vadd.f32 0.0, %v1185
        %v1187 = vpop.f32.mrb[0].mxu0
        %v1188 = vadd.f32 0.0, %v1187
        %v1189 = vpop.f32.mrb[0].mxu0
        %v1190 = vadd.f32 0.0, %v1189
        %v1191 = vpop.f32.mrb[0].mxu0
        %v1192 = vadd.f32 0.0, %v1191
        %1193 = vmatprep.mubr.bf16.mxu0 %v842
        %1194 = vmatmul.mubr.bf16.gmra.mrb[0].mxu0 %v841
        %v1195 = vpop.f32.mrb[0].mxu0
        %v1196 = vadd.f32 0.0, %v1195
        %v1197 = vpop.f32.mrb[0].mxu0
        %v1198 = vadd.f32 0.0, %v1197
        %v1199 = vpop.f32.mrb[0].mxu0
        %v1200 = vadd.f32 0.0, %v1199
        %v1201 = vpop.f32.mrb[0].mxu0
        %v1202 = vadd.f32 0.0, %v1201
        %1203 = vmatprep.mubr.bf16.mxu0 %v844
        %1204 = vmatmul.mubr.bf16.gmra.mrb[0].mxu0 %v843
        %v1205 = vpop.f32.mrb[0].mxu0
        %v1206 = vadd.f32 0.0, %v1205
        %v1207 = vpop.f32.mrb[0].mxu0
        %v1208 = vadd.f32 0.0, %v1207
        %v1209 = vpop.f32.mrb[0].mxu0
        %v1210 = vadd.f32 0.0, %v1209
        %v1211 = vpop.f32.mrb[0].mxu0
        %v1212 = vadd.f32 0.0, %v1211
        %1213 = vmatprep.mubr.bf16.mxu0 %v846
        %1214 = vmatmul.mubr.bf16.gmra.mrb[0].mxu0 %v845
        %v1215 = vpop.f32.mrb[0].mxu0
        %v1216 = vadd.f32 0.0, %v1215
        %v1217 = vpop.f32.mrb[0].mxu0
        %v1218 = vadd.f32 0.0, %v1217
        %v1219 = vpop.f32.mrb[0].mxu0
        %v1220 = vadd.f32 0.0, %v1219
        %v1221 = vpop.f32.mrb[0].mxu0
        %v1222 = vadd.f32 0.0, %v1221
        %1223 = vmatprep.mubr.bf16.mxu0 %v848
        %1224 = vmatmul.mubr.bf16.gmra.mrb[0].mxu0 %v847
        %v1225 = vpop.f32.mrb[0].mxu0
        %v1226 = vadd.f32 0.0, %v1225
        %v1227 = vpop.f32.mrb[0].mxu0
        %v1228 = vadd.f32 0.0, %v1227
        %v1229 = vpop.f32.mrb[0].mxu0
        %v1230 = vadd.f32 0.0, %v1229
        %v1231 = vpop.f32.mrb[0].mxu0
        %v1232 = vadd.f32 0.0, %v1231
        %1233 = vdwg.mxu0
        %v1234 = vpack.c.bf16 %v1080, %v1076
        %v1235 = vpack.c.bf16 %v1082, %v1078
        %v1236 = vpack.c.bf16 %v1090, %v1086
        %v1237 = vpack.c.bf16 %v1092, %v1088
        %v1238 = vpack.c.bf16 %v1100, %v1096
        %v1239 = vpack.c.bf16 %v1102, %v1098
        %v1240 = vpack.c.bf16 %v1110, %v1106
        %v1241 = vpack.c.bf16 %v1112, %v1108
        %v1242 = vpack.c.bf16 %v1120, %v1116
        %v1243 = vpack.c.bf16 %v1122, %v1118
        %v1244 = vpack.c.bf16 %v1130, %v1126
        %v1245 = vpack.c.bf16 %v1132, %v1128
        %v1246 = vpack.c.bf16 %v1140, %v1136
        %v1247 = vpack.c.bf16 %v1142, %v1138
        %v1248 = vpack.c.bf16 %v1150, %v1146
        %v1249 = vpack.c.bf16 %v1152, %v1148
        %v1250 = vpack.c.bf16 %v1160, %v1156
        %v1251 = vpack.c.bf16 %v1162, %v1158
        %v1252 = vpack.c.bf16 %v1170, %v1166
        %v1253 = vpack.c.bf16 %v1172, %v1168
        %v1254 = vpack.c.bf16 %v1180, %v1176
        %v1255 = vpack.c.bf16 %v1182, %v1178
        %v1256 = vpack.c.bf16 %v1190, %v1186
        %v1257 = vpack.c.bf16 %v1192, %v1188
        %v1258 = vpack.c.bf16 %v1200, %v1196
        %v1259 = vpack.c.bf16 %v1202, %v1198
        %v1260 = vpack.c.bf16 %v1210, %v1206
        %v1261 = vpack.c.bf16 %v1212, %v1208
        %v1262 = vpack.c.bf16 %v1220, %v1216
        %v1263 = vpack.c.bf16 %v1222, %v1218
        %v1264 = vpack.c.bf16 %v1230, %v1226
        %v1265 = vpack.c.bf16 %v1232, %v1228
        %v1298 = vunpack.c.l.b16 %v656
        %v1299 = vunpack.c.h.b16 %v656
        %v1300 = vunpack.c.l.b16 %v657
        %v1301 = vunpack.c.h.b16 %v657
        %v1302 = vunpack.c.l.b16 %v658
        %v1303 = vunpack.c.h.b16 %v658
        %v1304 = vunpack.c.l.b16 %v659
        %v1305 = vunpack.c.h.b16 %v659
        %v1306 = vunpack.c.l.b16 %v660
        %v1307 = vunpack.c.h.b16 %v660
        %v1308 = vunpack.c.l.b16 %v661
        %v1309 = vunpack.c.h.b16 %v661
        %v1310 = vunpack.c.l.b16 %v662
        %v1311 = vunpack.c.h.b16 %v662
        %v1312 = vunpack.c.l.b16 %v663
        %v1313 = vunpack.c.h.b16 %v663
        %v1314 = vunpack.c.l.b16 %v664
        %v1315 = vunpack.c.h.b16 %v664
        %v1316 = vunpack.c.l.b16 %v665
        %v1317 = vunpack.c.h.b16 %v665
        %v1318 = vunpack.c.l.b16 %v666
        %v1319 = vunpack.c.h.b16 %v666
        %v1320 = vunpack.c.l.b16 %v667
        %v1321 = vunpack.c.h.b16 %v667
        %v1322 = vunpack.c.l.b16 %v668
        %v1323 = vunpack.c.h.b16 %v668
        %v1324 = vunpack.c.l.b16 %v669
        %v1325 = vunpack.c.h.b16 %v669
        %v1326 = vunpack.c.l.b16 %v670
        %v1327 = vunpack.c.h.b16 %v670
        %v1328 = vunpack.c.l.b16 %v671
        %v1329 = vunpack.c.h.b16 %v671
        %v1330 = vunpack.c.l.b16 %v672
        %v1331 = vunpack.c.h.b16 %v672
        %v1332 = vunpack.c.l.b16 %v673
        %v1333 = vunpack.c.h.b16 %v673
        %v1334 = vunpack.c.l.b16 %v674
        %v1335 = vunpack.c.h.b16 %v674
        %v1336 = vunpack.c.l.b16 %v675
        %v1337 = vunpack.c.h.b16 %v675
        %v1338 = vunpack.c.l.b16 %v676
        %v1339 = vunpack.c.h.b16 %v676
        %v1340 = vunpack.c.l.b16 %v677
        %v1341 = vunpack.c.h.b16 %v677
        %v1342 = vunpack.c.l.b16 %v678
        %v1343 = vunpack.c.h.b16 %v678
        %v1344 = vunpack.c.l.b16 %v679
        %v1345 = vunpack.c.h.b16 %v679
        %v1346 = vunpack.c.l.b16 %v680
        %v1347 = vunpack.c.h.b16 %v680
        %v1348 = vunpack.c.l.b16 %v681
        %v1349 = vunpack.c.h.b16 %v681
        %v1350 = vunpack.c.l.b16 %v682
        %v1351 = vunpack.c.h.b16 %v682
        %v1352 = vunpack.c.l.b16 %v683
        %v1353 = vunpack.c.h.b16 %v683
        %v1354 = vunpack.c.l.b16 %v684
        %v1355 = vunpack.c.h.b16 %v684
        %v1356 = vunpack.c.l.b16 %v685
        %v1357 = vunpack.c.h.b16 %v685
        %v1358 = vunpack.c.l.b16 %v686
        %v1359 = vunpack.c.h.b16 %v686
        %v1360 = vunpack.c.l.b16 %v687
        %v1361 = vunpack.c.h.b16 %v687
        %v1362 = vpack.c.b16 %v1300, %v1298
        %v1363 = vpack.c.b16 %v1301, %v1299
        %v1364 = vpack.c.b16 %v1304, %v1302
        %v1365 = vpack.c.b16 %v1305, %v1303
        %v1366 = vpack.c.b16 %v1308, %v1306
        %v1367 = vpack.c.b16 %v1309, %v1307
        %v1368 = vpack.c.b16 %v1312, %v1310
        %v1369 = vpack.c.b16 %v1313, %v1311
        %v1370 = vpack.c.b16 %v1316, %v1314
        %v1371 = vpack.c.b16 %v1317, %v1315
        %v1372 = vpack.c.b16 %v1320, %v1318
        %v1373 = vpack.c.b16 %v1321, %v1319
        %v1374 = vpack.c.b16 %v1324, %v1322
        %v1375 = vpack.c.b16 %v1325, %v1323
        %v1376 = vpack.c.b16 %v1328, %v1326
        %v1377 = vpack.c.b16 %v1329, %v1327
        %v1378 = vpack.c.b16 %v1332, %v1330
        %v1379 = vpack.c.b16 %v1333, %v1331
        %v1380 = vpack.c.b16 %v1336, %v1334
        %v1381 = vpack.c.b16 %v1337, %v1335
        %v1382 = vpack.c.b16 %v1340, %v1338
        %v1383 = vpack.c.b16 %v1341, %v1339
        %v1384 = vpack.c.b16 %v1344, %v1342
        %v1385 = vpack.c.b16 %v1345, %v1343
        %v1386 = vpack.c.b16 %v1348, %v1346
        %v1387 = vpack.c.b16 %v1349, %v1347
        %v1388 = vpack.c.b16 %v1352, %v1350
        %v1389 = vpack.c.b16 %v1353, %v1351
        %v1390 = vpack.c.b16 %v1356, %v1354
        %v1391 = vpack.c.b16 %v1357, %v1355
        %v1392 = vpack.c.b16 %v1360, %v1358
        %v1393 = vpack.c.b16 %v1361, %v1359
        %1426 = vmatprep.subr.bf16.mxu0 %v1363
        %1427 = vmatpush1.bf16.msra.mxu0 %v1362
        %1428 = vmatprep.subr.bf16.mxu0 %v1365
        %1429 = vmatpush1.bf16.msra.mxu0 %v1364
        %1430 = vmatprep.subr.bf16.mxu0 %v1367
        %1431 = vmatpush1.bf16.msra.mxu0 %v1366
        %1432 = vmatprep.subr.bf16.mxu0 %v1369
        %1433 = vmatpush1.bf16.msra.mxu0 %v1368
        %1434 = vmatprep.subr.bf16.mxu0 %v1371
        %1435 = vmatpush1.bf16.msra.mxu0 %v1370
        %1436 = vmatprep.subr.bf16.mxu0 %v1373
        %1437 = vmatpush1.bf16.msra.mxu0 %v1372
        %1438 = vmatprep.subr.bf16.mxu0 %v1375
        %1439 = vmatpush1.bf16.msra.mxu0 %v1374
        %1440 = vmatprep.subr.bf16.mxu0 %v1377
        %1441 = vmatpush1.bf16.msra.mxu0 %v1376
        %1442 = vmatprep.subr.bf16.mxu0 %v1379
        %1443 = vmatpush1.bf16.msra.mxu0 %v1378
        %1444 = vmatprep.subr.bf16.mxu0 %v1381
        %1445 = vmatpush1.bf16.msra.mxu0 %v1380
        %1446 = vmatprep.subr.bf16.mxu0 %v1383
        %1447 = vmatpush1.bf16.msra.mxu0 %v1382
        %1448 = vmatprep.subr.bf16.mxu0 %v1385
        %1449 = vmatpush1.bf16.msra.mxu0 %v1384
        %1450 = vmatprep.subr.bf16.mxu0 %v1387
        %1451 = vmatpush1.bf16.msra.mxu0 %v1386
        %1452 = vmatprep.subr.bf16.mxu0 %v1389
        %1453 = vmatpush1.bf16.msra.mxu0 %v1388
        %1454 = vmatprep.subr.bf16.mxu0 %v1391
        %1455 = vmatpush1.bf16.msra.mxu0 %v1390
        %1456 = vmatprep.subr.bf16.mxu0 %v1393
        %1457 = vmatpush1.bf16.msra.mxu0 %v1392
        %1458 = vmatprep.mubr.bf16.mxu0 %v1235
        %1459 = vmatmul.mubr.bf16.gmra.mrb[0].mxu0 %v1234
        %v1460 = vpop.f32.mrb[0].mxu0
        %v1461 = vadd.f32 0.0, %v1460
        %v1462 = vpop.f32.mrb[0].mxu0
        %v1463 = vadd.f32 0.0, %v1462
        %v1464 = vpop.f32.mrb[0].mxu0
        %v1465 = vadd.f32 0.0, %v1464
        %v1466 = vpop.f32.mrb[0].mxu0
        %v1467 = vadd.f32 0.0, %v1466
        %1468 = vmatprep.mubr.bf16.mxu0 %v1237
        %1469 = vmatmul.mubr.bf16.gmra.mrb[0].mxu0 %v1236
        %v1470 = vpop.f32.mrb[0].mxu0
        %v1471 = vadd.f32 0.0, %v1470
        %v1472 = vpop.f32.mrb[0].mxu0
        %v1473 = vadd.f32 0.0, %v1472
        %v1474 = vpop.f32.mrb[0].mxu0
        %v1475 = vadd.f32 0.0, %v1474
        %v1476 = vpop.f32.mrb[0].mxu0
        %v1477 = vadd.f32 0.0, %v1476
        %1478 = vmatprep.mubr.bf16.mxu0 %v1239
        %1479 = vmatmul.mubr.bf16.gmra.mrb[0].mxu0 %v1238
        %v1480 = vpop.f32.mrb[0].mxu0
        %v1481 = vadd.f32 0.0, %v1480
        %v1482 = vpop.f32.mrb[0].mxu0
        %v1483 = vadd.f32 0.0, %v1482
        %v1484 = vpop.f32.mrb[0].mxu0
        %v1485 = vadd.f32 0.0, %v1484
        %v1486 = vpop.f32.mrb[0].mxu0
        %v1487 = vadd.f32 0.0, %v1486
        %1488 = vmatprep.mubr.bf16.mxu0 %v1241
        %1489 = vmatmul.mubr.bf16.gmra.mrb[0].mxu0 %v1240
        %v1490 = vpop.f32.mrb[0].mxu0
        %v1491 = vadd.f32 0.0, %v1490
        %v1492 = vpop.f32.mrb[0].mxu0
        %v1493 = vadd.f32 0.0, %v1492
        %v1494 = vpop.f32.mrb[0].mxu0
        %v1495 = vadd.f32 0.0, %v1494
        %v1496 = vpop.f32.mrb[0].mxu0
        %v1497 = vadd.f32 0.0, %v1496
        %1498 = vmatprep.mubr.bf16.mxu0 %v1243
        %1499 = vmatmul.mubr.bf16.gmra.mrb[0].mxu0 %v1242
        %v1500 = vpop.f32.mrb[0].mxu0
        %v1501 = vadd.f32 0.0, %v1500
        %v1502 = vpop.f32.mrb[0].mxu0
        %v1503 = vadd.f32 0.0, %v1502
        %v1504 = vpop.f32.mrb[0].mxu0
        %v1505 = vadd.f32 0.0, %v1504
        %v1506 = vpop.f32.mrb[0].mxu0
        %v1507 = vadd.f32 0.0, %v1506
        %1508 = vmatprep.mubr.bf16.mxu0 %v1245
        %1509 = vmatmul.mubr.bf16.gmra.mrb[0].mxu0 %v1244
        %v1510 = vpop.f32.mrb[0].mxu0
        %v1511 = vadd.f32 0.0, %v1510
        %v1512 = vpop.f32.mrb[0].mxu0
        %v1513 = vadd.f32 0.0, %v1512
        %v1514 = vpop.f32.mrb[0].mxu0
        %v1515 = vadd.f32 0.0, %v1514
        %v1516 = vpop.f32.mrb[0].mxu0
        %v1517 = vadd.f32 0.0, %v1516
        %1518 = vmatprep.mubr.bf16.mxu0 %v1247
        %1519 = vmatmul.mubr.bf16.gmra.mrb[0].mxu0 %v1246
        %v1520 = vpop.f32.mrb[0].mxu0
        %v1521 = vadd.f32 0.0, %v1520
        %v1522 = vpop.f32.mrb[0].mxu0
        %v1523 = vadd.f32 0.0, %v1522
        %v1524 = vpop.f32.mrb[0].mxu0
        %v1525 = vadd.f32 0.0, %v1524
        %v1526 = vpop.f32.mrb[0].mxu0
        %v1527 = vadd.f32 0.0, %v1526
        %1528 = vmatprep.mubr.bf16.mxu0 %v1249
        %1529 = vmatmul.mubr.bf16.gmra.mrb[0].mxu0 %v1248
        %v1530 = vpop.f32.mrb[0].mxu0
        %v1531 = vadd.f32 0.0, %v1530
        %v1532 = vpop.f32.mrb[0].mxu0
        %v1533 = vadd.f32 0.0, %v1532
        %v1534 = vpop.f32.mrb[0].mxu0
        %v1535 = vadd.f32 0.0, %v1534
        %v1536 = vpop.f32.mrb[0].mxu0
        %v1537 = vadd.f32 0.0, %v1536
        %1538 = vmatprep.mubr.bf16.mxu0 %v1251
        %1539 = vmatmul.mubr.bf16.gmra.mrb[0].mxu0 %v1250
        %v1540 = vpop.f32.mrb[0].mxu0
        %v1541 = vadd.f32 0.0, %v1540
        %v1542 = vpop.f32.mrb[0].mxu0
        %v1543 = vadd.f32 0.0, %v1542
        %v1544 = vpop.f32.mrb[0].mxu0
        %v1545 = vadd.f32 0.0, %v1544
        %v1546 = vpop.f32.mrb[0].mxu0
        %v1547 = vadd.f32 0.0, %v1546
        %1548 = vmatprep.mubr.bf16.mxu0 %v1253
        %1549 = vmatmul.mubr.bf16.gmra.mrb[0].mxu0 %v1252
        %v1550 = vpop.f32.mrb[0].mxu0
        %v1551 = vadd.f32 0.0, %v1550
        %v1552 = vpop.f32.mrb[0].mxu0
        %v1553 = vadd.f32 0.0, %v1552
        %v1554 = vpop.f32.mrb[0].mxu0
        %v1555 = vadd.f32 0.0, %v1554
        %v1556 = vpop.f32.mrb[0].mxu0
        %v1557 = vadd.f32 0.0, %v1556
        %1558 = vmatprep.mubr.bf16.mxu0 %v1255
        %1559 = vmatmul.mubr.bf16.gmra.mrb[0].mxu0 %v1254
        %v1560 = vpop.f32.mrb[0].mxu0
        %v1561 = vadd.f32 0.0, %v1560
        %v1562 = vpop.f32.mrb[0].mxu0
        %v1563 = vadd.f32 0.0, %v1562
        %v1564 = vpop.f32.mrb[0].mxu0
        %v1565 = vadd.f32 0.0, %v1564
        %v1566 = vpop.f32.mrb[0].mxu0
        %v1567 = vadd.f32 0.0, %v1566
        %1568 = vmatprep.mubr.bf16.mxu0 %v1257
        %1569 = vmatmul.mubr.bf16.gmra.mrb[0].mxu0 %v1256
        %v1570 = vpop.f32.mrb[0].mxu0
        %v1571 = vadd.f32 0.0, %v1570
        %v1572 = vpop.f32.mrb[0].mxu0
        %v1573 = vadd.f32 0.0, %v1572
        %v1574 = vpop.f32.mrb[0].mxu0
        %v1575 = vadd.f32 0.0, %v1574
        %v1576 = vpop.f32.mrb[0].mxu0
        %v1577 = vadd.f32 0.0, %v1576
        %1578 = vmatprep.mubr.bf16.mxu0 %v1259
        %1579 = vmatmul.mubr.bf16.gmra.mrb[0].mxu0 %v1258
        %v1580 = vpop.f32.mrb[0].mxu0
        %v1581 = vadd.f32 0.0, %v1580
        %v1582 = vpop.f32.mrb[0].mxu0
        %v1583 = vadd.f32 0.0, %v1582
        %v1584 = vpop.f32.mrb[0].mxu0
        %v1585 = vadd.f32 0.0, %v1584
        %v1586 = vpop.f32.mrb[0].mxu0
        %v1587 = vadd.f32 0.0, %v1586
        %1588 = vmatprep.mubr.bf16.mxu0 %v1261
        %1589 = vmatmul.mubr.bf16.gmra.mrb[0].mxu0 %v1260
        %v1590 = vpop.f32.mrb[0].mxu0
        %v1591 = vadd.f32 0.0, %v1590
        %v1592 = vpop.f32.mrb[0].mxu0
        %v1593 = vadd.f32 0.0, %v1592
        %v1594 = vpop.f32.mrb[0].mxu0
        %v1595 = vadd.f32 0.0, %v1594
        %v1596 = vpop.f32.mrb[0].mxu0
        %v1597 = vadd.f32 0.0, %v1596
        %1598 = vmatprep.mubr.bf16.mxu0 %v1263
        %1599 = vmatmul.mubr.bf16.gmra.mrb[0].mxu0 %v1262
        %v1600 = vpop.f32.mrb[0].mxu0
        %v1601 = vadd.f32 0.0, %v1600
        %v1602 = vpop.f32.mrb[0].mxu0
        %v1603 = vadd.f32 0.0, %v1602
        %v1604 = vpop.f32.mrb[0].mxu0
        %v1605 = vadd.f32 0.0, %v1604
        %v1606 = vpop.f32.mrb[0].mxu0
        %v1607 = vadd.f32 0.0, %v1606
        %1608 = vmatprep.mubr.bf16.mxu0 %v1265
        %1609 = vmatmul.mubr.bf16.gmra.mrb[0].mxu0 %v1264
        %v1610 = vpop.f32.mrb[0].mxu0
        %v1611 = vadd.f32 0.0, %v1610
        %v1612 = vpop.f32.mrb[0].mxu0
        %v1613 = vadd.f32 0.0, %v1612
        %v1614 = vpop.f32.mrb[0].mxu0
        %v1615 = vadd.f32 0.0, %v1614
        %v1616 = vpop.f32.mrb[0].mxu0
        %v1617 = vadd.f32 0.0, %v1616
        %1618 = vdwg.mxu0
        %1620 = vset.pattern.permute.xlu0 0
        %1621 = vperm.xlu0 %1620, %v592
        %v1622 = vpop.permute.xlu0 %1621
        %1625 = vset.pattern.permute.xlu0 0
        %1626 = vperm.xlu0 %1625, %v593
        %v1627 = vpop.permute.xlu0 %1626
        %1630 = vset.pattern.permute.xlu0 0
        %1631 = vperm.xlu0 %1630, %v594
        %v1632 = vpop.permute.xlu0 %1631
        %1635 = vset.pattern.permute.xlu0 0
        %1636 = vperm.xlu0 %1635, %v595
        %v1637 = vpop.permute.xlu0 %1636
        %1640 = vset.pattern.permute.xlu0 0
        %1641 = vperm.xlu0 %1640, %v596
        %v1642 = vpop.permute.xlu0 %1641
        %1645 = vset.pattern.permute.xlu0 0
        %1646 = vperm.xlu0 %1645, %v597
        %v1647 = vpop.permute.xlu0 %1646
        %1650 = vset.pattern.permute.xlu0 0
        %1651 = vperm.xlu0 %1650, %v598
        %v1652 = vpop.permute.xlu0 %1651
        %1655 = vset.pattern.permute.xlu0 0
        %1656 = vperm.xlu0 %1655, %v599
        %v1657 = vpop.permute.xlu0 %1656
        %1660 = vset.pattern.permute.xlu0 0
        %1661 = vperm.xlu0 %1660, %v600
        %v1662 = vpop.permute.xlu0 %1661
        %1665 = vset.pattern.permute.xlu0 0
        %1666 = vperm.xlu0 %1665, %v601
        %v1667 = vpop.permute.xlu0 %1666
        %1670 = vset.pattern.permute.xlu0 0
        %1671 = vperm.xlu0 %1670, %v602
        %v1672 = vpop.permute.xlu0 %1671
        %1675 = vset.pattern.permute.xlu0 0
        %1676 = vperm.xlu0 %1675, %v603
        %v1677 = vpop.permute.xlu0 %1676
        %1680 = vset.pattern.permute.xlu0 0
        %1681 = vperm.xlu0 %1680, %v604
        %v1682 = vpop.permute.xlu0 %1681
        %1685 = vset.pattern.permute.xlu0 0
        %1686 = vperm.xlu0 %1685, %v605
        %v1687 = vpop.permute.xlu0 %1686
        %1690 = vset.pattern.permute.xlu0 0
        %1691 = vperm.xlu0 %1690, %v606
        %v1692 = vpop.permute.xlu0 %1691
        %1695 = vset.pattern.permute.xlu0 0
        %1696 = vperm.xlu0 %1695, %v607
        %v1697 = vpop.permute.xlu0 %1696
        %1700 = vset.pattern.permute.xlu0 0
        %1701 = vperm.xlu0 %1700, %v608
        %v1702 = vpop.permute.xlu0 %1701
        %1705 = vset.pattern.permute.xlu0 0
        %1706 = vperm.xlu0 %1705, %v609
        %v1707 = vpop.permute.xlu0 %1706
        %1710 = vset.pattern.permute.xlu0 0
        %1711 = vperm.xlu0 %1710, %v610
        %v1712 = vpop.permute.xlu0 %1711
        %1715 = vset.pattern.permute.xlu0 0
        %1716 = vperm.xlu0 %1715, %v611
        %v1717 = vpop.permute.xlu0 %1716
        %1720 = vset.pattern.permute.xlu0 0
        %1721 = vperm.xlu0 %1720, %v612
        %v1722 = vpop.permute.xlu0 %1721
        %1725 = vset.pattern.permute.xlu0 0
        %1726 = vperm.xlu0 %1725, %v613
        %v1727 = vpop.permute.xlu0 %1726
        %1730 = vset.pattern.permute.xlu0 0
        %1731 = vperm.xlu0 %1730, %v614
        %v1732 = vpop.permute.xlu0 %1731
        %1735 = vset.pattern.permute.xlu0 0
        %1736 = vperm.xlu0 %1735, %v615
        %v1737 = vpop.permute.xlu0 %1736
        %1740 = vset.pattern.permute.xlu0 0
        %1741 = vperm.xlu0 %1740, %v616
        %v1742 = vpop.permute.xlu0 %1741
        %1745 = vset.pattern.permute.xlu0 0
        %1746 = vperm.xlu0 %1745, %v617
        %v1747 = vpop.permute.xlu0 %1746
        %1750 = vset.pattern.permute.xlu0 0
        %1751 = vperm.xlu0 %1750, %v618
        %v1752 = vpop.permute.xlu0 %1751
        %1755 = vset.pattern.permute.xlu0 0
        %1756 = vperm.xlu0 %1755, %v619
        %v1757 = vpop.permute.xlu0 %1756
        %1760 = vset.pattern.permute.xlu0 0
        %1761 = vperm.xlu0 %1760, %v620
        %v1762 = vpop.permute.xlu0 %1761
        %1765 = vset.pattern.permute.xlu0 0
        %1766 = vperm.xlu0 %1765, %v621
        %v1767 = vpop.permute.xlu0 %1766
        %1770 = vset.pattern.permute.xlu0 0
        %1771 = vperm.xlu0 %1770, %v622
        %v1772 = vpop.permute.xlu0 %1771
        %1775 = vset.pattern.permute.xlu0 0
        %1776 = vperm.xlu0 %1775, %v623
        %v1777 = vpop.permute.xlu0 %1776
        %v1779 = vmul.f32 %v1622, %v1461
        %v1780 = vmul.f32 %v1622, %v1463
        %v1781 = vmul.f32 %v1627, %v1465
        %v1782 = vmul.f32 %v1627, %v1467
        %v1783 = vmul.f32 %v1632, %v1471
        %v1784 = vmul.f32 %v1632, %v1473
        %v1785 = vmul.f32 %v1637, %v1475
        %v1786 = vmul.f32 %v1637, %v1477
        %v1787 = vmul.f32 %v1642, %v1481
        %v1788 = vmul.f32 %v1642, %v1483
        %v1789 = vmul.f32 %v1647, %v1485
        %v1790 = vmul.f32 %v1647, %v1487
        %v1791 = vmul.f32 %v1652, %v1491
        %v1792 = vmul.f32 %v1652, %v1493
        %v1793 = vmul.f32 %v1657, %v1495
        %v1794 = vmul.f32 %v1657, %v1497
        %v1795 = vmul.f32 %v1662, %v1501
        %v1796 = vmul.f32 %v1662, %v1503
        %v1797 = vmul.f32 %v1667, %v1505
        %v1798 = vmul.f32 %v1667, %v1507
        %v1799 = vmul.f32 %v1672, %v1511
        %v1800 = vmul.f32 %v1672, %v1513
        %v1801 = vmul.f32 %v1677, %v1515
        %v1802 = vmul.f32 %v1677, %v1517
        %v1803 = vmul.f32 %v1682, %v1521
        %v1804 = vmul.f32 %v1682, %v1523
        %v1805 = vmul.f32 %v1687, %v1525
        %v1806 = vmul.f32 %v1687, %v1527
        %v1807 = vmul.f32 %v1692, %v1531
        %v1808 = vmul.f32 %v1692, %v1533
        %v1809 = vmul.f32 %v1697, %v1535
        %v1810 = vmul.f32 %v1697, %v1537
        %v1811 = vmul.f32 %v1702, %v1541
        %v1812 = vmul.f32 %v1702, %v1543
        %v1813 = vmul.f32 %v1707, %v1545
        %v1814 = vmul.f32 %v1707, %v1547
        %v1815 = vmul.f32 %v1712, %v1551
        %v1816 = vmul.f32 %v1712, %v1553
        %v1817 = vmul.f32 %v1717, %v1555
        %v1818 = vmul.f32 %v1717, %v1557
        %v1819 = vmul.f32 %v1722, %v1561
        %v1820 = vmul.f32 %v1722, %v1563
        %v1821 = vmul.f32 %v1727, %v1565
        %v1822 = vmul.f32 %v1727, %v1567
        %v1823 = vmul.f32 %v1732, %v1571
        %v1824 = vmul.f32 %v1732, %v1573
        %v1825 = vmul.f32 %v1737, %v1575
        %v1826 = vmul.f32 %v1737, %v1577
        %v1827 = vmul.f32 %v1742, %v1581
        %v1828 = vmul.f32 %v1742, %v1583
        %v1829 = vmul.f32 %v1747, %v1585
        %v1830 = vmul.f32 %v1747, %v1587
        %v1831 = vmul.f32 %v1752, %v1591
        %v1832 = vmul.f32 %v1752, %v1593
        %v1833 = vmul.f32 %v1757, %v1595
        %v1834 = vmul.f32 %v1757, %v1597
        %v1835 = vmul.f32 %v1762, %v1601
        %v1836 = vmul.f32 %v1762, %v1603
        %v1837 = vmul.f32 %v1767, %v1605
        %v1838 = vmul.f32 %v1767, %v1607
        %v1839 = vmul.f32 %v1772, %v1611
        %v1840 = vmul.f32 %v1772, %v1613
        %v1841 = vmul.f32 %v1777, %v1615
        %v1842 = vmul.f32 %v1777, %v1617
        %v1875 = vunpack.c.l.b16 %v688
        %v1876 = vunpack.c.h.b16 %v688
        %v1877 = vunpack.c.l.b16 %v689
        %v1878 = vunpack.c.h.b16 %v689
        %v1879 = vunpack.c.l.b16 %v690
        %v1880 = vunpack.c.h.b16 %v690
        %v1881 = vunpack.c.l.b16 %v691
        %v1882 = vunpack.c.h.b16 %v691
        %v1883 = vunpack.c.l.b16 %v692
        %v1884 = vunpack.c.h.b16 %v692
        %v1885 = vunpack.c.l.b16 %v693
        %v1886 = vunpack.c.h.b16 %v693
        %v1887 = vunpack.c.l.b16 %v694
        %v1888 = vunpack.c.h.b16 %v694
        %v1889 = vunpack.c.l.b16 %v695
        %v1890 = vunpack.c.h.b16 %v695
        %v1891 = vunpack.c.l.b16 %v696
        %v1892 = vunpack.c.h.b16 %v696
        %v1893 = vunpack.c.l.b16 %v697
        %v1894 = vunpack.c.h.b16 %v697
        %v1895 = vunpack.c.l.b16 %v698
        %v1896 = vunpack.c.h.b16 %v698
        %v1897 = vunpack.c.l.b16 %v699
        %v1898 = vunpack.c.h.b16 %v699
        %v1899 = vunpack.c.l.b16 %v700
        %v1900 = vunpack.c.h.b16 %v700
        %v1901 = vunpack.c.l.b16 %v701
        %v1902 = vunpack.c.h.b16 %v701
        %v1903 = vunpack.c.l.b16 %v702
        %v1904 = vunpack.c.h.b16 %v702
        %v1905 = vunpack.c.l.b16 %v703
        %v1906 = vunpack.c.h.b16 %v703
        %v1907 = vunpack.c.l.b16 %v704
        %v1908 = vunpack.c.h.b16 %v704
        %v1909 = vunpack.c.l.b16 %v705
        %v1910 = vunpack.c.h.b16 %v705
        %v1911 = vunpack.c.l.b16 %v706
        %v1912 = vunpack.c.h.b16 %v706
        %v1913 = vunpack.c.l.b16 %v707
        %v1914 = vunpack.c.h.b16 %v707
        %v1915 = vunpack.c.l.b16 %v708
        %v1916 = vunpack.c.h.b16 %v708
        %v1917 = vunpack.c.l.b16 %v709
        %v1918 = vunpack.c.h.b16 %v709
        %v1919 = vunpack.c.l.b16 %v710
        %v1920 = vunpack.c.h.b16 %v710
        %v1921 = vunpack.c.l.b16 %v711
        %v1922 = vunpack.c.h.b16 %v711
        %v1923 = vunpack.c.l.b16 %v712
        %v1924 = vunpack.c.h.b16 %v712
        %v1925 = vunpack.c.l.b16 %v713
        %v1926 = vunpack.c.h.b16 %v713
        %v1927 = vunpack.c.l.b16 %v714
        %v1928 = vunpack.c.h.b16 %v714
        %v1929 = vunpack.c.l.b16 %v715
        %v1930 = vunpack.c.h.b16 %v715
        %v1931 = vunpack.c.l.b16 %v716
        %v1932 = vunpack.c.h.b16 %v716
        %v1933 = vunpack.c.l.b16 %v717
        %v1934 = vunpack.c.h.b16 %v717
        %v1935 = vunpack.c.l.b16 %v718
        %v1936 = vunpack.c.h.b16 %v718
        %v1937 = vunpack.c.l.b16 %v719
        %v1938 = vunpack.c.h.b16 %v719
        %v1939 = vpack.c.b16 %v1877, %v1875
        %v1940 = vpack.c.b16 %v1878, %v1876
        %v1941 = vpack.c.b16 %v1881, %v1879
        %v1942 = vpack.c.b16 %v1882, %v1880
        %v1943 = vpack.c.b16 %v1885, %v1883
        %v1944 = vpack.c.b16 %v1886, %v1884
        %v1945 = vpack.c.b16 %v1889, %v1887
        %v1946 = vpack.c.b16 %v1890, %v1888
        %v1947 = vpack.c.b16 %v1893, %v1891
        %v1948 = vpack.c.b16 %v1894, %v1892
        %v1949 = vpack.c.b16 %v1897, %v1895
        %v1950 = vpack.c.b16 %v1898, %v1896
        %v1951 = vpack.c.b16 %v1901, %v1899
        %v1952 = vpack.c.b16 %v1902, %v1900
        %v1953 = vpack.c.b16 %v1905, %v1903
        %v1954 = vpack.c.b16 %v1906, %v1904
        %v1955 = vpack.c.b16 %v1909, %v1907
        %v1956 = vpack.c.b16 %v1910, %v1908
        %v1957 = vpack.c.b16 %v1913, %v1911
        %v1958 = vpack.c.b16 %v1914, %v1912
        %v1959 = vpack.c.b16 %v1917, %v1915
        %v1960 = vpack.c.b16 %v1918, %v1916
        %v1961 = vpack.c.b16 %v1921, %v1919
        %v1962 = vpack.c.b16 %v1922, %v1920
        %v1963 = vpack.c.b16 %v1925, %v1923
        %v1964 = vpack.c.b16 %v1926, %v1924
        %v1965 = vpack.c.b16 %v1929, %v1927
        %v1966 = vpack.c.b16 %v1930, %v1928
        %v1967 = vpack.c.b16 %v1933, %v1931
        %v1968 = vpack.c.b16 %v1934, %v1932
        %v1969 = vpack.c.b16 %v1937, %v1935
        %v1970 = vpack.c.b16 %v1938, %v1936
        %2003 = vmatprep.subr.bf16.mxu0 %v1940
        %2004 = vmatpush1.bf16.msra.mxu0 %v1939
        %2005 = vmatprep.subr.bf16.mxu0 %v1942
        %2006 = vmatpush1.bf16.msra.mxu0 %v1941
        %2007 = vmatprep.subr.bf16.mxu0 %v1944
        %2008 = vmatpush1.bf16.msra.mxu0 %v1943
        %2009 = vmatprep.subr.bf16.mxu0 %v1946
        %2010 = vmatpush1.bf16.msra.mxu0 %v1945
        %2011 = vmatprep.subr.bf16.mxu0 %v1948
        %2012 = vmatpush1.bf16.msra.mxu0 %v1947
        %2013 = vmatprep.subr.bf16.mxu0 %v1950
        %2014 = vmatpush1.bf16.msra.mxu0 %v1949
        %2015 = vmatprep.subr.bf16.mxu0 %v1952
        %2016 = vmatpush1.bf16.msra.mxu0 %v1951
        %2017 = vmatprep.subr.bf16.mxu0 %v1954
        %2018 = vmatpush1.bf16.msra.mxu0 %v1953
        %2019 = vmatprep.subr.bf16.mxu0 %v1956
        %2020 = vmatpush1.bf16.msra.mxu0 %v1955
        %2021 = vmatprep.subr.bf16.mxu0 %v1958
        %2022 = vmatpush1.bf16.msra.mxu0 %v1957
        %2023 = vmatprep.subr.bf16.mxu0 %v1960
        %2024 = vmatpush1.bf16.msra.mxu0 %v1959
        %2025 = vmatprep.subr.bf16.mxu0 %v1962
        %2026 = vmatpush1.bf16.msra.mxu0 %v1961
        %2027 = vmatprep.subr.bf16.mxu0 %v1964
        %2028 = vmatpush1.bf16.msra.mxu0 %v1963
        %2029 = vmatprep.subr.bf16.mxu0 %v1966
        %2030 = vmatpush1.bf16.msra.mxu0 %v1965
        %2031 = vmatprep.subr.bf16.mxu0 %v1968
        %2032 = vmatpush1.bf16.msra.mxu0 %v1967
        %2033 = vmatprep.subr.bf16.mxu0 %v1970
        %2034 = vmatpush1.bf16.msra.mxu0 %v1969
        %2035 = vmatprep.mubr.bf16.mxu0 %v978
        %2036 = vmatmul.mubr.bf16.gmra.mrb[0].mxu0 %v977
        %v2037 = vpop.f32.mrb[0].mxu0
        %v2038 = vadd.f32 0.0, %v2037
        %v2039 = vpop.f32.mrb[0].mxu0
        %v2040 = vadd.f32 0.0, %v2039
        %v2041 = vpop.f32.mrb[0].mxu0
        %v2042 = vadd.f32 0.0, %v2041
        %v2043 = vpop.f32.mrb[0].mxu0
        %v2044 = vadd.f32 0.0, %v2043
        %2045 = vmatprep.mubr.bf16.mxu0 %v980
        %2046 = vmatmul.mubr.bf16.gmra.mrb[0].mxu0 %v979
        %v2047 = vpop.f32.mrb[0].mxu0
        %v2048 = vadd.f32 0.0, %v2047
        %v2049 = vpop.f32.mrb[0].mxu0
        %v2050 = vadd.f32 0.0, %v2049
        %v2051 = vpop.f32.mrb[0].mxu0
        %v2052 = vadd.f32 0.0, %v2051
        %v2053 = vpop.f32.mrb[0].mxu0
        %v2054 = vadd.f32 0.0, %v2053
        %2055 = vmatprep.mubr.bf16.mxu0 %v982
        %2056 = vmatmul.mubr.bf16.gmra.mrb[0].mxu0 %v981
        %v2057 = vpop.f32.mrb[0].mxu0
        %v2058 = vadd.f32 0.0, %v2057
        %v2059 = vpop.f32.mrb[0].mxu0
        %v2060 = vadd.f32 0.0, %v2059
        %v2061 = vpop.f32.mrb[0].mxu0
        %v2062 = vadd.f32 0.0, %v2061
        %v2063 = vpop.f32.mrb[0].mxu0
        %v2064 = vadd.f32 0.0, %v2063
        %2065 = vmatprep.mubr.bf16.mxu0 %v984
        %2066 = vmatmul.mubr.bf16.gmra.mrb[0].mxu0 %v983
        %v2067 = vpop.f32.mrb[0].mxu0
        %v2068 = vadd.f32 0.0, %v2067
        %v2069 = vpop.f32.mrb[0].mxu0
        %v2070 = vadd.f32 0.0, %v2069
        %v2071 = vpop.f32.mrb[0].mxu0
        %v2072 = vadd.f32 0.0, %v2071
        %v2073 = vpop.f32.mrb[0].mxu0
        %v2074 = vadd.f32 0.0, %v2073
        %2075 = vmatprep.mubr.bf16.mxu0 %v986
        %2076 = vmatmul.mubr.bf16.gmra.mrb[0].mxu0 %v985
        %v2077 = vpop.f32.mrb[0].mxu0
        %v2078 = vadd.f32 0.0, %v2077
        %v2079 = vpop.f32.mrb[0].mxu0
        %v2080 = vadd.f32 0.0, %v2079
        %v2081 = vpop.f32.mrb[0].mxu0
        %v2082 = vadd.f32 0.0, %v2081
        %v2083 = vpop.f32.mrb[0].mxu0
        %v2084 = vadd.f32 0.0, %v2083
        %2085 = vmatprep.mubr.bf16.mxu0 %v988
        %2086 = vmatmul.mubr.bf16.gmra.mrb[0].mxu0 %v987
        %v2087 = vpop.f32.mrb[0].mxu0
        %v2088 = vadd.f32 0.0, %v2087
        %v2089 = vpop.f32.mrb[0].mxu0
        %v2090 = vadd.f32 0.0, %v2089
        %v2091 = vpop.f32.mrb[0].mxu0
        %v2092 = vadd.f32 0.0, %v2091
        %v2093 = vpop.f32.mrb[0].mxu0
        %v2094 = vadd.f32 0.0, %v2093
        %2095 = vmatprep.mubr.bf16.mxu0 %v990
        %2096 = vmatmul.mubr.bf16.gmra.mrb[0].mxu0 %v989
        %v2097 = vpop.f32.mrb[0].mxu0
        %v2098 = vadd.f32 0.0, %v2097
        %v2099 = vpop.f32.mrb[0].mxu0
        %v2100 = vadd.f32 0.0, %v2099
        %v2101 = vpop.f32.mrb[0].mxu0
        %v2102 = vadd.f32 0.0, %v2101
        %v2103 = vpop.f32.mrb[0].mxu0
        %v2104 = vadd.f32 0.0, %v2103
        %2105 = vmatprep.mubr.bf16.mxu0 %v992
        %2106 = vmatmul.mubr.bf16.gmra.mrb[0].mxu0 %v991
        %v2107 = vpop.f32.mrb[0].mxu0
        %v2108 = vadd.f32 0.0, %v2107
        %v2109 = vpop.f32.mrb[0].mxu0
        %v2110 = vadd.f32 0.0, %v2109
        %v2111 = vpop.f32.mrb[0].mxu0
        %v2112 = vadd.f32 0.0, %v2111
        %v2113 = vpop.f32.mrb[0].mxu0
        %v2114 = vadd.f32 0.0, %v2113
        %2115 = vmatprep.mubr.bf16.mxu0 %v994
        %2116 = vmatmul.mubr.bf16.gmra.mrb[0].mxu0 %v993
        %v2117 = vpop.f32.mrb[0].mxu0
        %v2118 = vadd.f32 0.0, %v2117
        %v2119 = vpop.f32.mrb[0].mxu0
        %v2120 = vadd.f32 0.0, %v2119
        %v2121 = vpop.f32.mrb[0].mxu0
        %v2122 = vadd.f32 0.0, %v2121
        %v2123 = vpop.f32.mrb[0].mxu0
        %v2124 = vadd.f32 0.0, %v2123
        %2125 = vmatprep.mubr.bf16.mxu0 %v996
        %2126 = vmatmul.mubr.bf16.gmra.mrb[0].mxu0 %v995
        %v2127 = vpop.f32.mrb[0].mxu0
        %v2128 = vadd.f32 0.0, %v2127
        %v2129 = vpop.f32.mrb[0].mxu0
        %v2130 = vadd.f32 0.0, %v2129
        %v2131 = vpop.f32.mrb[0].mxu0
        %v2132 = vadd.f32 0.0, %v2131
        %v2133 = vpop.f32.mrb[0].mxu0
        %v2134 = vadd.f32 0.0, %v2133
        %2135 = vmatprep.mubr.bf16.mxu0 %v998
        %2136 = vmatmul.mubr.bf16.gmra.mrb[0].mxu0 %v997
        %v2137 = vpop.f32.mrb[0].mxu0
        %v2138 = vadd.f32 0.0, %v2137
        %v2139 = vpop.f32.mrb[0].mxu0
        %v2140 = vadd.f32 0.0, %v2139
        %v2141 = vpop.f32.mrb[0].mxu0
        %v2142 = vadd.f32 0.0, %v2141
        %v2143 = vpop.f32.mrb[0].mxu0
        %v2144 = vadd.f32 0.0, %v2143
        %2145 = vmatprep.mubr.bf16.mxu0 %v1000
        %2146 = vmatmul.mubr.bf16.gmra.mrb[0].mxu0 %v999
        %v2147 = vpop.f32.mrb[0].mxu0
        %v2148 = vadd.f32 0.0, %v2147
        %v2149 = vpop.f32.mrb[0].mxu0
        %v2150 = vadd.f32 0.0, %v2149
        %v2151 = vpop.f32.mrb[0].mxu0
        %v2152 = vadd.f32 0.0, %v2151
        %v2153 = vpop.f32.mrb[0].mxu0
        %v2154 = vadd.f32 0.0, %v2153
        %2155 = vmatprep.mubr.bf16.mxu0 %v1002
        %2156 = vmatmul.mubr.bf16.gmra.mrb[0].mxu0 %v1001
        %v2157 = vpop.f32.mrb[0].mxu0
        %v2158 = vadd.f32 0.0, %v2157
        %v2159 = vpop.f32.mrb[0].mxu0
        %v2160 = vadd.f32 0.0, %v2159
        %v2161 = vpop.f32.mrb[0].mxu0
        %v2162 = vadd.f32 0.0, %v2161
        %v2163 = vpop.f32.mrb[0].mxu0
        %v2164 = vadd.f32 0.0, %v2163
        %2165 = vmatprep.mubr.bf16.mxu0 %v1004
        %2166 = vmatmul.mubr.bf16.gmra.mrb[0].mxu0 %v1003
        %v2167 = vpop.f32.mrb[0].mxu0
        %v2168 = vadd.f32 0.0, %v2167
        %v2169 = vpop.f32.mrb[0].mxu0
        %v2170 = vadd.f32 0.0, %v2169
        %v2171 = vpop.f32.mrb[0].mxu0
        %v2172 = vadd.f32 0.0, %v2171
        %v2173 = vpop.f32.mrb[0].mxu0
        %v2174 = vadd.f32 0.0, %v2173
        %2175 = vmatprep.mubr.bf16.mxu0 %v1006
        %2176 = vmatmul.mubr.bf16.gmra.mrb[0].mxu0 %v1005
        %v2177 = vpop.f32.mrb[0].mxu0
        %v2178 = vadd.f32 0.0, %v2177
        %v2179 = vpop.f32.mrb[0].mxu0
        %v2180 = vadd.f32 0.0, %v2179
        %v2181 = vpop.f32.mrb[0].mxu0
        %v2182 = vadd.f32 0.0, %v2181
        %v2183 = vpop.f32.mrb[0].mxu0
        %v2184 = vadd.f32 0.0, %v2183
        %2185 = vmatprep.mubr.bf16.mxu0 %v1008
        %2186 = vmatmul.mubr.bf16.gmra.mrb[0].mxu0 %v1007
        %v2187 = vpop.f32.mrb[0].mxu0
        %v2188 = vadd.f32 0.0, %v2187
        %v2189 = vpop.f32.mrb[0].mxu0
        %v2190 = vadd.f32 0.0, %v2189
        %v2191 = vpop.f32.mrb[0].mxu0
        %v2192 = vadd.f32 0.0, %v2191
        %v2193 = vpop.f32.mrb[0].mxu0
        %v2194 = vadd.f32 0.0, %v2193
        %2195 = vdwg.mxu0
        %v2196 = vadd.f32 %v1779, %v2038
        %v2197 = vadd.f32 %v1780, %v2040
        %v2198 = vadd.f32 %v1781, %v2042
        %v2199 = vadd.f32 %v1782, %v2044
        %v2200 = vadd.f32 %v1783, %v2048
        %v2201 = vadd.f32 %v1784, %v2050
        %v2202 = vadd.f32 %v1785, %v2052
        %v2203 = vadd.f32 %v1786, %v2054
        %v2204 = vadd.f32 %v1787, %v2058
        %v2205 = vadd.f32 %v1788, %v2060
        %v2206 = vadd.f32 %v1789, %v2062
        %v2207 = vadd.f32 %v1790, %v2064
        %v2208 = vadd.f32 %v1791, %v2068
        %v2209 = vadd.f32 %v1792, %v2070
        %v2210 = vadd.f32 %v1793, %v2072
        %v2211 = vadd.f32 %v1794, %v2074
        %v2212 = vadd.f32 %v1795, %v2078
        %v2213 = vadd.f32 %v1796, %v2080
        %v2214 = vadd.f32 %v1797, %v2082
        %v2215 = vadd.f32 %v1798, %v2084
        %v2216 = vadd.f32 %v1799, %v2088
        %v2217 = vadd.f32 %v1800, %v2090
        %v2218 = vadd.f32 %v1801, %v2092
        %v2219 = vadd.f32 %v1802, %v2094
        %v2220 = vadd.f32 %v1803, %v2098
        %v2221 = vadd.f32 %v1804, %v2100
        %v2222 = vadd.f32 %v1805, %v2102
        %v2223 = vadd.f32 %v1806, %v2104
        %v2224 = vadd.f32 %v1807, %v2108
        %v2225 = vadd.f32 %v1808, %v2110
        %v2226 = vadd.f32 %v1809, %v2112
        %v2227 = vadd.f32 %v1810, %v2114
        %v2228 = vadd.f32 %v1811, %v2118
        %v2229 = vadd.f32 %v1812, %v2120
        %v2230 = vadd.f32 %v1813, %v2122
        %v2231 = vadd.f32 %v1814, %v2124
        %v2232 = vadd.f32 %v1815, %v2128
        %v2233 = vadd.f32 %v1816, %v2130
        %v2234 = vadd.f32 %v1817, %v2132
        %v2235 = vadd.f32 %v1818, %v2134
        %v2236 = vadd.f32 %v1819, %v2138
        %v2237 = vadd.f32 %v1820, %v2140
        %v2238 = vadd.f32 %v1821, %v2142
        %v2239 = vadd.f32 %v1822, %v2144
        %v2240 = vadd.f32 %v1823, %v2148
        %v2241 = vadd.f32 %v1824, %v2150
        %v2242 = vadd.f32 %v1825, %v2152
        %v2243 = vadd.f32 %v1826, %v2154
        %v2244 = vadd.f32 %v1827, %v2158
        %v2245 = vadd.f32 %v1828, %v2160
        %v2246 = vadd.f32 %v1829, %v2162
        %v2247 = vadd.f32 %v1830, %v2164
        %v2248 = vadd.f32 %v1831, %v2168
        %v2249 = vadd.f32 %v1832, %v2170
        %v2250 = vadd.f32 %v1833, %v2172
        %v2251 = vadd.f32 %v1834, %v2174
        %v2252 = vadd.f32 %v1835, %v2178
        %v2253 = vadd.f32 %v1836, %v2180
        %v2254 = vadd.f32 %v1837, %v2182
        %v2255 = vadd.f32 %v1838, %v2184
        %v2256 = vadd.f32 %v1839, %v2188
        %v2257 = vadd.f32 %v1840, %v2190
        %v2258 = vadd.f32 %v1841, %v2192
        %v2259 = vadd.f32 %v1842, %v2194
        %v2261 = vlaneseq
        %v2262 = vshrl.u32 %v2261, 7
        %v2263 = vsub.s32 0, %v2262
        %v2264 = vrot.slane %v720, %v2263
        %v2265 = vlaneseq
        %v2266 = vshrl.u32 %v2265, 7
        %v2267 = vsub.s32 1, %v2266
        %v2268 = vrot.slane %v720, %v2267
        %v2271 = vadd.f32 %v2196, %v2264
        %v2272 = vadd.f32 %v2197, %v2268
        %v2273 = vadd.f32 %v2198, %v2264
        %v2274 = vadd.f32 %v2199, %v2268
        %v2275 = vadd.f32 %v2200, %v2264
        %v2276 = vadd.f32 %v2201, %v2268
        %v2277 = vadd.f32 %v2202, %v2264
        %v2278 = vadd.f32 %v2203, %v2268
        %v2279 = vadd.f32 %v2204, %v2264
        %v2280 = vadd.f32 %v2205, %v2268
        %v2281 = vadd.f32 %v2206, %v2264
        %v2282 = vadd.f32 %v2207, %v2268
        %v2283 = vadd.f32 %v2208, %v2264
        %v2284 = vadd.f32 %v2209, %v2268
        %v2285 = vadd.f32 %v2210, %v2264
        %v2286 = vadd.f32 %v2211, %v2268
        %v2287 = vadd.f32 %v2212, %v2264
        %v2288 = vadd.f32 %v2213, %v2268
        %v2289 = vadd.f32 %v2214, %v2264
        %v2290 = vadd.f32 %v2215, %v2268
        %v2291 = vadd.f32 %v2216, %v2264
        %v2292 = vadd.f32 %v2217, %v2268
        %v2293 = vadd.f32 %v2218, %v2264
        %v2294 = vadd.f32 %v2219, %v2268
        %v2295 = vadd.f32 %v2220, %v2264
        %v2296 = vadd.f32 %v2221, %v2268
        %v2297 = vadd.f32 %v2222, %v2264
        %v2298 = vadd.f32 %v2223, %v2268
        %v2299 = vadd.f32 %v2224, %v2264
        %v2300 = vadd.f32 %v2225, %v2268
        %v2301 = vadd.f32 %v2226, %v2264
        %v2302 = vadd.f32 %v2227, %v2268
        %v2303 = vadd.f32 %v2228, %v2264
        %v2304 = vadd.f32 %v2229, %v2268
        %v2305 = vadd.f32 %v2230, %v2264
        %v2306 = vadd.f32 %v2231, %v2268
        %v2307 = vadd.f32 %v2232, %v2264
        %v2308 = vadd.f32 %v2233, %v2268
        %v2309 = vadd.f32 %v2234, %v2264
        %v2310 = vadd.f32 %v2235, %v2268
        %v2311 = vadd.f32 %v2236, %v2264
        %v2312 = vadd.f32 %v2237, %v2268
        %v2313 = vadd.f32 %v2238, %v2264
        %v2314 = vadd.f32 %v2239, %v2268
        %v2315 = vadd.f32 %v2240, %v2264
        %v2316 = vadd.f32 %v2241, %v2268
        %v2317 = vadd.f32 %v2242, %v2264
        %v2318 = vadd.f32 %v2243, %v2268
        %v2319 = vadd.f32 %v2244, %v2264
        %v2320 = vadd.f32 %v2245, %v2268
        %v2321 = vadd.f32 %v2246, %v2264
        %v2322 = vadd.f32 %v2247, %v2268
        %v2323 = vadd.f32 %v2248, %v2264
        %v2324 = vadd.f32 %v2249, %v2268
        %v2325 = vadd.f32 %v2250, %v2264
        %v2326 = vadd.f32 %v2251, %v2268
        %v2327 = vadd.f32 %v2252, %v2264
        %v2328 = vadd.f32 %v2253, %v2268
        %v2329 = vadd.f32 %v2254, %v2264
        %v2330 = vadd.f32 %v2255, %v2268
        %v2331 = vadd.f32 %v2256, %v2264
        %v2332 = vadd.f32 %v2257, %v2268
        %v2333 = vadd.f32 %v2258, %v2264
        %v2334 = vadd.f32 %v2259, %v2268
        %v2335 = vmax.f32 %v2271, 0.0
        %v2336 = vmax.f32 %v2272, 0.0
        %v2337 = vmax.f32 %v2273, 0.0
        %v2338 = vmax.f32 %v2274, 0.0
        %v2339 = vmax.f32 %v2275, 0.0
        %v2340 = vmax.f32 %v2276, 0.0
        %v2341 = vmax.f32 %v2277, 0.0
        %v2342 = vmax.f32 %v2278, 0.0
        %v2343 = vmax.f32 %v2279, 0.0
        %v2344 = vmax.f32 %v2280, 0.0
        %v2345 = vmax.f32 %v2281, 0.0
        %v2346 = vmax.f32 %v2282, 0.0
        %v2347 = vmax.f32 %v2283, 0.0
        %v2348 = vmax.f32 %v2284, 0.0
        %v2349 = vmax.f32 %v2285, 0.0
        %v2350 = vmax.f32 %v2286, 0.0
        %v2351 = vmax.f32 %v2287, 0.0
        %v2352 = vmax.f32 %v2288, 0.0
        %v2353 = vmax.f32 %v2289, 0.0
        %v2354 = vmax.f32 %v2290, 0.0
        %v2355 = vmax.f32 %v2291, 0.0
        %v2356 = vmax.f32 %v2292, 0.0
        %v2357 = vmax.f32 %v2293, 0.0
        %v2358 = vmax.f32 %v2294, 0.0
        %v2359 = vmax.f32 %v2295, 0.0
        %v2360 = vmax.f32 %v2296, 0.0
        %v2361 = vmax.f32 %v2297, 0.0
        %v2362 = vmax.f32 %v2298, 0.0
        %v2363 = vmax.f32 %v2299, 0.0
        %v2364 = vmax.f32 %v2300, 0.0
        %v2365 = vmax.f32 %v2301, 0.0
        %v2366 = vmax.f32 %v2302, 0.0
        %v2367 = vmax.f32 %v2303, 0.0
        %v2368 = vmax.f32 %v2304, 0.0
        %v2369 = vmax.f32 %v2305, 0.0
        %v2370 = vmax.f32 %v2306, 0.0
        %v2371 = vmax.f32 %v2307, 0.0
        %v2372 = vmax.f32 %v2308, 0.0
        %v2373 = vmax.f32 %v2309, 0.0
        %v2374 = vmax.f32 %v2310, 0.0
        %v2375 = vmax.f32 %v2311, 0.0
        %v2376 = vmax.f32 %v2312, 0.0
        %v2377 = vmax.f32 %v2313, 0.0
        %v2378 = vmax.f32 %v2314, 0.0
        %v2379 = vmax.f32 %v2315, 0.0
        %v2380 = vmax.f32 %v2316, 0.0
        %v2381 = vmax.f32 %v2317, 0.0
        %v2382 = vmax.f32 %v2318, 0.0
        %v2383 = vmax.f32 %v2319, 0.0
        %v2384 = vmax.f32 %v2320, 0.0
        %v2385 = vmax.f32 %v2321, 0.0
        %v2386 = vmax.f32 %v2322, 0.0
        %v2387 = vmax.f32 %v2323, 0.0
        %v2388 = vmax.f32 %v2324, 0.0
        %v2389 = vmax.f32 %v2325, 0.0
        %v2390 = vmax.f32 %v2326, 0.0
        %v2391 = vmax.f32 %v2327, 0.0
        %v2392 = vmax.f32 %v2328, 0.0
        %v2393 = vmax.f32 %v2329, 0.0
        %v2394 = vmax.f32 %v2330, 0.0
        %v2395 = vmax.f32 %v2331, 0.0
        %v2396 = vmax.f32 %v2332, 0.0
        %v2397 = vmax.f32 %v2333, 0.0
        %v2398 = vmax.f32 %v2334, 0.0
        %v2399 = vpack.c.bf16 %v2337, %v2335
        %v2400 = vpack.c.bf16 %v2338, %v2336
        %v2401 = vpack.c.bf16 %v2341, %v2339
        %v2402 = vpack.c.bf16 %v2342, %v2340
        %v2403 = vpack.c.bf16 %v2345, %v2343
        %v2404 = vpack.c.bf16 %v2346, %v2344
        %v2405 = vpack.c.bf16 %v2349, %v2347
        %v2406 = vpack.c.bf16 %v2350, %v2348
        %v2407 = vpack.c.bf16 %v2353, %v2351
        %v2408 = vpack.c.bf16 %v2354, %v2352
        %v2409 = vpack.c.bf16 %v2357, %v2355
        %v2410 = vpack.c.bf16 %v2358, %v2356
        %v2411 = vpack.c.bf16 %v2361, %v2359
        %v2412 = vpack.c.bf16 %v2362, %v2360
        %v2413 = vpack.c.bf16 %v2365, %v2363
        %v2414 = vpack.c.bf16 %v2366, %v2364
        %v2415 = vpack.c.bf16 %v2369, %v2367
        %v2416 = vpack.c.bf16 %v2370, %v2368
        %v2417 = vpack.c.bf16 %v2373, %v2371
        %v2418 = vpack.c.bf16 %v2374, %v2372
        %v2419 = vpack.c.bf16 %v2377, %v2375
        %v2420 = vpack.c.bf16 %v2378, %v2376
        %v2421 = vpack.c.bf16 %v2381, %v2379
        %v2422 = vpack.c.bf16 %v2382, %v2380
        %v2423 = vpack.c.bf16 %v2385, %v2383
        %v2424 = vpack.c.bf16 %v2386, %v2384
        %v2425 = vpack.c.bf16 %v2389, %v2387
        %v2426 = vpack.c.bf16 %v2390, %v2388
        %v2427 = vpack.c.bf16 %v2393, %v2391
        %v2428 = vpack.c.bf16 %v2394, %v2392
        %v2429 = vpack.c.bf16 %v2397, %v2395
        %v2430 = vpack.c.bf16 %v2398, %v2396
        %v2431 = vld [vmem:[#allocation8] sm:$0xff]
        %v2432 = vld [vmem:[#allocation8 + $0x8] sm:$0xff]
        %v2433 = vld [vmem:[#allocation8 + $0x10] sm:$0xff]
        %v2434 = vld [vmem:[#allocation8 + $0x18] sm:$0xff]
        %v2435 = vld [vmem:[#allocation8 + $0x20] sm:$0xff]
        %v2436 = vld [vmem:[#allocation8 + $0x28] sm:$0xff]
        %v2437 = vld [vmem:[#allocation8 + $0x30] sm:$0xff]
        %v2438 = vld [vmem:[#allocation8 + $0x38] sm:$0xff]
        %v2439 = vld [vmem:[#allocation8 + $0x40] sm:$0xff]
        %v2440 = vld [vmem:[#allocation8 + $0x48] sm:$0xff]
        %v2441 = vld [vmem:[#allocation8 + $0x50] sm:$0xff]
        %v2442 = vld [vmem:[#allocation8 + $0x58] sm:$0xff]
        %v2443 = vld [vmem:[#allocation8 + $0x60] sm:$0xff]
        %v2444 = vld [vmem:[#allocation8 + $0x68] sm:$0xff]
        %v2445 = vld [vmem:[#allocation8 + $0x70] sm:$0xff]
        %v2446 = vld [vmem:[#allocation8 + $0x78] sm:$0xff]
        %v2447 = vld [vmem:[#allocation8 + $0x80] sm:$0xff]
        %v2448 = vld [vmem:[#allocation8 + $0x88] sm:$0xff]
        %v2449 = vld [vmem:[#allocation8 + $0x90] sm:$0xff]
        %v2450 = vld [vmem:[#allocation8 + $0x98] sm:$0xff]
        %v2451 = vld [vmem:[#allocation8 + $0xa0] sm:$0xff]
        %v2452 = vld [vmem:[#allocation8 + $0xa8] sm:$0xff]
        %v2453 = vld [vmem:[#allocation8 + $0xb0] sm:$0xff]
        %v2454 = vld [vmem:[#allocation8 + $0xb8] sm:$0xff]
        %v2455 = vld [vmem:[#allocation8 + $0xc0] sm:$0xff]
        %v2456 = vld [vmem:[#allocation8 + $0xc8] sm:$0xff]
        %v2457 = vld [vmem:[#allocation8 + $0xd0] sm:$0xff]
        %v2458 = vld [vmem:[#allocation8 + $0xd8] sm:$0xff]
        %v2459 = vld [vmem:[#allocation8 + $0xe0] sm:$0xff]
        %v2460 = vld [vmem:[#allocation8 + $0xe8] sm:$0xff]
        %v2461 = vld [vmem:[#allocation8 + $0xf0] sm:$0xff]
        %v2462 = vld [vmem:[#allocation8 + $0xf8] sm:$0xff]
        %v2463 = vld [vmem:[#allocation10] sm:$0xff]
        %v2464 = vld [vmem:[#allocation10 + $0x8] sm:$0xff]
        %v2465 = vld [vmem:[#allocation10 + $0x10] sm:$0xff]
        %v2466 = vld [vmem:[#allocation10 + $0x18] sm:$0xff]
        %v2467 = vld [vmem:[#allocation10 + $0x20] sm:$0xff]
        %v2468 = vld [vmem:[#allocation10 + $0x28] sm:$0xff]
        %v2469 = vld [vmem:[#allocation10 + $0x30] sm:$0xff]
        %v2470 = vld [vmem:[#allocation10 + $0x38] sm:$0xff]
        %v2471 = vld [vmem:[#allocation10 + $0x40] sm:$0xff]
        %v2472 = vld [vmem:[#allocation10 + $0x48] sm:$0xff]
        %v2473 = vld [vmem:[#allocation10 + $0x50] sm:$0xff]
        %v2474 = vld [vmem:[#allocation10 + $0x58] sm:$0xff]
        %v2475 = vld [vmem:[#allocation10 + $0x60] sm:$0xff]
        %v2476 = vld [vmem:[#allocation10 + $0x68] sm:$0xff]
        %v2477 = vld [vmem:[#allocation10 + $0x70] sm:$0xff]
        %v2478 = vld [vmem:[#allocation10 + $0x78] sm:$0xff]
        %v2479 = vld [vmem:[#allocation10 + $0x80] sm:$0xff]
        %v2480 = vld [vmem:[#allocation10 + $0x88] sm:$0xff]
        %v2481 = vld [vmem:[#allocation10 + $0x90] sm:$0xff]
        %v2482 = vld [vmem:[#allocation10 + $0x98] sm:$0xff]
        %v2483 = vld [vmem:[#allocation10 + $0xa0] sm:$0xff]
        %v2484 = vld [vmem:[#allocation10 + $0xa8] sm:$0xff]
        %v2485 = vld [vmem:[#allocation10 + $0xb0] sm:$0xff]
        %v2486 = vld [vmem:[#allocation10 + $0xb8] sm:$0xff]
        %v2487 = vld [vmem:[#allocation10 + $0xc0] sm:$0xff]
        %v2488 = vld [vmem:[#allocation10 + $0xc8] sm:$0xff]
        %v2489 = vld [vmem:[#allocation10 + $0xd0] sm:$0xff]
        %v2490 = vld [vmem:[#allocation10 + $0xd8] sm:$0xff]
        %v2491 = vld [vmem:[#allocation10 + $0xe0] sm:$0xff]
        %v2492 = vld [vmem:[#allocation10 + $0xe8] sm:$0xff]
        %v2493 = vld [vmem:[#allocation10 + $0xf0] sm:$0xff]
        %v2494 = vld [vmem:[#allocation10 + $0xf8] sm:$0xff]
        %v2495 = vld [vmem:[%s8] sm:$0x3]
        %2496 = vmatprep.subr.bf16.mxu0 %v2400
        %2497 = vmatpush1.bf16.msra.mxu0 %v2399
        %2498 = vmatprep.subr.bf16.mxu0 %v2402
        %2499 = vmatpush1.bf16.msra.mxu0 %v2401
        %2500 = vmatprep.subr.bf16.mxu0 %v2404
        %2501 = vmatpush1.bf16.msra.mxu0 %v2403
        %2502 = vmatprep.subr.bf16.mxu0 %v2406
        %2503 = vmatpush1.bf16.msra.mxu0 %v2405
        %2504 = vmatprep.subr.bf16.mxu0 %v2408
        %2505 = vmatpush1.bf16.msra.mxu0 %v2407
        %2506 = vmatprep.subr.bf16.mxu0 %v2410
        %2507 = vmatpush1.bf16.msra.mxu0 %v2409
        %2508 = vmatprep.subr.bf16.mxu0 %v2412
        %2509 = vmatpush1.bf16.msra.mxu0 %v2411
        %2510 = vmatprep.subr.bf16.mxu0 %v2414
        %2511 = vmatpush1.bf16.msra.mxu0 %v2413
        %2512 = vmatprep.subr.bf16.mxu0 %v2416
        %2513 = vmatpush1.bf16.msra.mxu0 %v2415
        %2514 = vmatprep.subr.bf16.mxu0 %v2418
        %2515 = vmatpush1.bf16.msra.mxu0 %v2417
        %2516 = vmatprep.subr.bf16.mxu0 %v2420
        %2517 = vmatpush1.bf16.msra.mxu0 %v2419
        %2518 = vmatprep.subr.bf16.mxu0 %v2422
        %2519 = vmatpush1.bf16.msra.mxu0 %v2421
        %2520 = vmatprep.subr.bf16.mxu0 %v2424
        %2521 = vmatpush1.bf16.msra.mxu0 %v2423
        %2522 = vmatprep.subr.bf16.mxu0 %v2426
        %2523 = vmatpush1.bf16.msra.mxu0 %v2425
        %2524 = vmatprep.subr.bf16.mxu0 %v2428
        %2525 = vmatpush1.bf16.msra.mxu0 %v2427
        %2526 = vmatprep.subr.bf16.mxu0 %v2430
        %2527 = vmatpush1.bf16.msra.mxu0 %v2429
        %2528 = vmatprep.mubr.bf16.mxu0 %v818
        %2529 = vmatmul.mubr.bf16.gmra.mrb[0].mxu0 %v817
        %v2530 = vpop.f32.mrb[0].mxu0
        %v2531 = vadd.f32 0.0, %v2530
        %v2532 = vpop.f32.mrb[0].mxu0
        %v2533 = vadd.f32 0.0, %v2532
        %v2534 = vpop.f32.mrb[0].mxu0
        %v2535 = vadd.f32 0.0, %v2534
        %v2536 = vpop.f32.mrb[0].mxu0
        %v2537 = vadd.f32 0.0, %v2536
        %2538 = vmatprep.mubr.bf16.mxu0 %v820
        %2539 = vmatmul.mubr.bf16.gmra.mrb[0].mxu0 %v819
        %v2540 = vpop.f32.mrb[0].mxu0
        %v2541 = vadd.f32 0.0, %v2540
        %v2542 = vpop.f32.mrb[0].mxu0
        %v2543 = vadd.f32 0.0, %v2542
        %v2544 = vpop.f32.mrb[0].mxu0
        %v2545 = vadd.f32 0.0, %v2544
        %v2546 = vpop.f32.mrb[0].mxu0
        %v2547 = vadd.f32 0.0, %v2546
        %2548 = vmatprep.mubr.bf16.mxu0 %v822
        %2549 = vmatmul.mubr.bf16.gmra.mrb[0].mxu0 %v821
        %v2550 = vpop.f32.mrb[0].mxu0
        %v2551 = vadd.f32 0.0, %v2550
        %v2552 = vpop.f32.mrb[0].mxu0
        %v2553 = vadd.f32 0.0, %v2552
        %v2554 = vpop.f32.mrb[0].mxu0
        %v2555 = vadd.f32 0.0, %v2554
        %v2556 = vpop.f32.mrb[0].mxu0
        %v2557 = vadd.f32 0.0, %v2556
        %2558 = vmatprep.mubr.bf16.mxu0 %v824
        %2559 = vmatmul.mubr.bf16.gmra.mrb[0].mxu0 %v823
        %v2560 = vpop.f32.mrb[0].mxu0
        %v2561 = vadd.f32 0.0, %v2560
        %v2562 = vpop.f32.mrb[0].mxu0
        %v2563 = vadd.f32 0.0, %v2562
        %v2564 = vpop.f32.mrb[0].mxu0
        %v2565 = vadd.f32 0.0, %v2564
        %v2566 = vpop.f32.mrb[0].mxu0
        %v2567 = vadd.f32 0.0, %v2566
        %2568 = vmatprep.mubr.bf16.mxu0 %v826
        %2569 = vmatmul.mubr.bf16.gmra.mrb[0].mxu0 %v825
        %v2570 = vpop.f32.mrb[0].mxu0
        %v2571 = vadd.f32 0.0, %v2570
        %v2572 = vpop.f32.mrb[0].mxu0
        %v2573 = vadd.f32 0.0, %v2572
        %v2574 = vpop.f32.mrb[0].mxu0
        %v2575 = vadd.f32 0.0, %v2574
        %v2576 = vpop.f32.mrb[0].mxu0
        %v2577 = vadd.f32 0.0, %v2576
        %2578 = vmatprep.mubr.bf16.mxu0 %v828
        %2579 = vmatmul.mubr.bf16.gmra.mrb[0].mxu0 %v827
        %v2580 = vpop.f32.mrb[0].mxu0
        %v2581 = vadd.f32 0.0, %v2580
        %v2582 = vpop.f32.mrb[0].mxu0
        %v2583 = vadd.f32 0.0, %v2582
        %v2584 = vpop.f32.mrb[0].mxu0
        %v2585 = vadd.f32 0.0, %v2584
        %v2586 = vpop.f32.mrb[0].mxu0
        %v2587 = vadd.f32 0.0, %v2586
        %2588 = vmatprep.mubr.bf16.mxu0 %v830
        %2589 = vmatmul.mubr.bf16.gmra.mrb[0].mxu0 %v829
        %v2590 = vpop.f32.mrb[0].mxu0
        %v2591 = vadd.f32 0.0, %v2590
        %v2592 = vpop.f32.mrb[0].mxu0
        %v2593 = vadd.f32 0.0, %v2592
        %v2594 = vpop.f32.mrb[0].mxu0
        %v2595 = vadd.f32 0.0, %v2594
        %v2596 = vpop.f32.mrb[0].mxu0
        %v2597 = vadd.f32 0.0, %v2596
        %2598 = vmatprep.mubr.bf16.mxu0 %v832
        %2599 = vmatmul.mubr.bf16.gmra.mrb[0].mxu0 %v831
        %v2600 = vpop.f32.mrb[0].mxu0
        %v2601 = vadd.f32 0.0, %v2600
        %v2602 = vpop.f32.mrb[0].mxu0
        %v2603 = vadd.f32 0.0, %v2602
        %v2604 = vpop.f32.mrb[0].mxu0
        %v2605 = vadd.f32 0.0, %v2604
        %v2606 = vpop.f32.mrb[0].mxu0
        %v2607 = vadd.f32 0.0, %v2606
        %2608 = vmatprep.mubr.bf16.mxu0 %v834
        %2609 = vmatmul.mubr.bf16.gmra.mrb[0].mxu0 %v833
        %v2610 = vpop.f32.mrb[0].mxu0
        %v2611 = vadd.f32 0.0, %v2610
        %v2612 = vpop.f32.mrb[0].mxu0
        %v2613 = vadd.f32 0.0, %v2612
        %v2614 = vpop.f32.mrb[0].mxu0
        %v2615 = vadd.f32 0.0, %v2614
        %v2616 = vpop.f32.mrb[0].mxu0
        %v2617 = vadd.f32 0.0, %v2616
        %2618 = vmatprep.mubr.bf16.mxu0 %v836
        %2619 = vmatmul.mubr.bf16.gmra.mrb[0].mxu0 %v835
        %v2620 = vpop.f32.mrb[0].mxu0
        %v2621 = vadd.f32 0.0, %v2620
        %v2622 = vpop.f32.mrb[0].mxu0
        %v2623 = vadd.f32 0.0, %v2622
        %v2624 = vpop.f32.mrb[0].mxu0
        %v2625 = vadd.f32 0.0, %v2624
        %v2626 = vpop.f32.mrb[0].mxu0
        %v2627 = vadd.f32 0.0, %v2626
        %2628 = vmatprep.mubr.bf16.mxu0 %v838
        %2629 = vmatmul.mubr.bf16.gmra.mrb[0].mxu0 %v837
        %v2630 = vpop.f32.mrb[0].mxu0
        %v2631 = vadd.f32 0.0, %v2630
        %v2632 = vpop.f32.mrb[0].mxu0
        %v2633 = vadd.f32 0.0, %v2632
        %v2634 = vpop.f32.mrb[0].mxu0
        %v2635 = vadd.f32 0.0, %v2634
        %v2636 = vpop.f32.mrb[0].mxu0
        %v2637 = vadd.f32 0.0, %v2636
        %2638 = vmatprep.mubr.bf16.mxu0 %v840
        %2639 = vmatmul.mubr.bf16.gmra.mrb[0].mxu0 %v839
        %v2640 = vpop.f32.mrb[0].mxu0
        %v2641 = vadd.f32 0.0, %v2640
        %v2642 = vpop.f32.mrb[0].mxu0
        %v2643 = vadd.f32 0.0, %v2642
        %v2644 = vpop.f32.mrb[0].mxu0
        %v2645 = vadd.f32 0.0, %v2644
        %v2646 = vpop.f32.mrb[0].mxu0
        %v2647 = vadd.f32 0.0, %v2646
        %2648 = vmatprep.mubr.bf16.mxu0 %v842
        %2649 = vmatmul.mubr.bf16.gmra.mrb[0].mxu0 %v841
        %v2650 = vpop.f32.mrb[0].mxu0
        %v2651 = vadd.f32 0.0, %v2650
        %v2652 = vpop.f32.mrb[0].mxu0
        %v2653 = vadd.f32 0.0, %v2652
        %v2654 = vpop.f32.mrb[0].mxu0
        %v2655 = vadd.f32 0.0, %v2654
        %v2656 = vpop.f32.mrb[0].mxu0
        %v2657 = vadd.f32 0.0, %v2656
        %2658 = vmatprep.mubr.bf16.mxu0 %v844
        %2659 = vmatmul.mubr.bf16.gmra.mrb[0].mxu0 %v843
        %v2660 = vpop.f32.mrb[0].mxu0
        %v2661 = vadd.f32 0.0, %v2660
        %v2662 = vpop.f32.mrb[0].mxu0
        %v2663 = vadd.f32 0.0, %v2662
        %v2664 = vpop.f32.mrb[0].mxu0
        %v2665 = vadd.f32 0.0, %v2664
        %v2666 = vpop.f32.mrb[0].mxu0
        %v2667 = vadd.f32 0.0, %v2666
        %2668 = vmatprep.mubr.bf16.mxu0 %v846
        %2669 = vmatmul.mubr.bf16.gmra.mrb[0].mxu0 %v845
        %v2670 = vpop.f32.mrb[0].mxu0
        %v2671 = vadd.f32 0.0, %v2670
        %v2672 = vpop.f32.mrb[0].mxu0
        %v2673 = vadd.f32 0.0, %v2672
        %v2674 = vpop.f32.mrb[0].mxu0
        %v2675 = vadd.f32 0.0, %v2674
        %v2676 = vpop.f32.mrb[0].mxu0
        %v2677 = vadd.f32 0.0, %v2676
        %2678 = vmatprep.mubr.bf16.mxu0 %v848
        %2679 = vmatmul.mubr.bf16.gmra.mrb[0].mxu0 %v847
        %v2680 = vpop.f32.mrb[0].mxu0
        %v2681 = vadd.f32 0.0, %v2680
        %v2682 = vpop.f32.mrb[0].mxu0
        %v2683 = vadd.f32 0.0, %v2682
        %v2684 = vpop.f32.mrb[0].mxu0
        %v2685 = vadd.f32 0.0, %v2684
        %v2686 = vpop.f32.mrb[0].mxu0
        %v2687 = vadd.f32 0.0, %v2686
        %2688 = vdwg.mxu0
        %v2689 = vpack.c.bf16 %v2535, %v2531
        %v2690 = vpack.c.bf16 %v2537, %v2533
        %v2691 = vpack.c.bf16 %v2545, %v2541
        %v2692 = vpack.c.bf16 %v2547, %v2543
        %v2693 = vpack.c.bf16 %v2555, %v2551
        %v2694 = vpack.c.bf16 %v2557, %v2553
        %v2695 = vpack.c.bf16 %v2565, %v2561
        %v2696 = vpack.c.bf16 %v2567, %v2563
        %v2697 = vpack.c.bf16 %v2575, %v2571
        %v2698 = vpack.c.bf16 %v2577, %v2573
        %v2699 = vpack.c.bf16 %v2585, %v2581
        %v2700 = vpack.c.bf16 %v2587, %v2583
        %v2701 = vpack.c.bf16 %v2595, %v2591
        %v2702 = vpack.c.bf16 %v2597, %v2593
        %v2703 = vpack.c.bf16 %v2605, %v2601
        %v2704 = vpack.c.bf16 %v2607, %v2603
        %v2705 = vpack.c.bf16 %v2615, %v2611
        %v2706 = vpack.c.bf16 %v2617, %v2613
        %v2707 = vpack.c.bf16 %v2625, %v2621
        %v2708 = vpack.c.bf16 %v2627, %v2623
        %v2709 = vpack.c.bf16 %v2635, %v2631
        %v2710 = vpack.c.bf16 %v2637, %v2633
        %v2711 = vpack.c.bf16 %v2645, %v2641
        %v2712 = vpack.c.bf16 %v2647, %v2643
        %v2713 = vpack.c.bf16 %v2655, %v2651
        %v2714 = vpack.c.bf16 %v2657, %v2653
        %v2715 = vpack.c.bf16 %v2665, %v2661
        %v2716 = vpack.c.bf16 %v2667, %v2663
        %v2717 = vpack.c.bf16 %v2675, %v2671
        %v2718 = vpack.c.bf16 %v2677, %v2673
        %v2719 = vpack.c.bf16 %v2685, %v2681
        %v2720 = vpack.c.bf16 %v2687, %v2683
        %v2753 = vunpack.c.l.b16 %v2431
        %v2754 = vunpack.c.h.b16 %v2431
        %v2755 = vunpack.c.l.b16 %v2432
        %v2756 = vunpack.c.h.b16 %v2432
        %v2757 = vunpack.c.l.b16 %v2433
        %v2758 = vunpack.c.h.b16 %v2433
        %v2759 = vunpack.c.l.b16 %v2434
        %v2760 = vunpack.c.h.b16 %v2434
        %v2761 = vunpack.c.l.b16 %v2435
        %v2762 = vunpack.c.h.b16 %v2435
        %v2763 = vunpack.c.l.b16 %v2436
        %v2764 = vunpack.c.h.b16 %v2436
        %v2765 = vunpack.c.l.b16 %v2437
        %v2766 = vunpack.c.h.b16 %v2437
        %v2767 = vunpack.c.l.b16 %v2438
        %v2768 = vunpack.c.h.b16 %v2438
        %v2769 = vunpack.c.l.b16 %v2439
        %v2770 = vunpack.c.h.b16 %v2439
        %v2771 = vunpack.c.l.b16 %v2440
        %v2772 = vunpack.c.h.b16 %v2440
        %v2773 = vunpack.c.l.b16 %v2441
        %v2774 = vunpack.c.h.b16 %v2441
        %v2775 = vunpack.c.l.b16 %v2442
        %v2776 = vunpack.c.h.b16 %v2442
        %v2777 = vunpack.c.l.b16 %v2443
        %v2778 = vunpack.c.h.b16 %v2443
        %v2779 = vunpack.c.l.b16 %v2444
        %v2780 = vunpack.c.h.b16 %v2444
        %v2781 = vunpack.c.l.b16 %v2445
        %v2782 = vunpack.c.h.b16 %v2445
        %v2783 = vunpack.c.l.b16 %v2446
        %v2784 = vunpack.c.h.b16 %v2446
        %v2785 = vunpack.c.l.b16 %v2447
        %v2786 = vunpack.c.h.b16 %v2447
        %v2787 = vunpack.c.l.b16 %v2448
        %v2788 = vunpack.c.h.b16 %v2448
        %v2789 = vunpack.c.l.b16 %v2449
        %v2790 = vunpack.c.h.b16 %v2449
        %v2791 = vunpack.c.l.b16 %v2450
        %v2792 = vunpack.c.h.b16 %v2450
        %v2793 = vunpack.c.l.b16 %v2451
        %v2794 = vunpack.c.h.b16 %v2451
        %v2795 = vunpack.c.l.b16 %v2452
        %v2796 = vunpack.c.h.b16 %v2452
        %v2797 = vunpack.c.l.b16 %v2453
        %v2798 = vunpack.c.h.b16 %v2453
        %v2799 = vunpack.c.l.b16 %v2454
        %v2800 = vunpack.c.h.b16 %v2454
        %v2801 = vunpack.c.l.b16 %v2455
        %v2802 = vunpack.c.h.b16 %v2455
        %v2803 = vunpack.c.l.b16 %v2456
        %v2804 = vunpack.c.h.b16 %v2456
        %v2805 = vunpack.c.l.b16 %v2457
        %v2806 = vunpack.c.h.b16 %v2457
        %v2807 = vunpack.c.l.b16 %v2458
        %v2808 = vunpack.c.h.b16 %v2458
        %v2809 = vunpack.c.l.b16 %v2459
        %v2810 = vunpack.c.h.b16 %v2459
        %v2811 = vunpack.c.l.b16 %v2460
        %v2812 = vunpack.c.h.b16 %v2460
        %v2813 = vunpack.c.l.b16 %v2461
        %v2814 = vunpack.c.h.b16 %v2461
        %v2815 = vunpack.c.l.b16 %v2462
        %v2816 = vunpack.c.h.b16 %v2462
        %v2817 = vpack.c.b16 %v2755, %v2753
        %v2818 = vpack.c.b16 %v2756, %v2754
        %v2819 = vpack.c.b16 %v2759, %v2757
        %v2820 = vpack.c.b16 %v2760, %v2758
        %v2821 = vpack.c.b16 %v2763, %v2761
        %v2822 = vpack.c.b16 %v2764, %v2762
        %v2823 = vpack.c.b16 %v2767, %v2765
        %v2824 = vpack.c.b16 %v2768, %v2766
        %v2825 = vpack.c.b16 %v2771, %v2769
        %v2826 = vpack.c.b16 %v2772, %v2770
        %v2827 = vpack.c.b16 %v2775, %v2773
        %v2828 = vpack.c.b16 %v2776, %v2774
        %v2829 = vpack.c.b16 %v2779, %v2777
        %v2830 = vpack.c.b16 %v2780, %v2778
        %v2831 = vpack.c.b16 %v2783, %v2781
        %v2832 = vpack.c.b16 %v2784, %v2782
        %v2833 = vpack.c.b16 %v2787, %v2785
        %v2834 = vpack.c.b16 %v2788, %v2786
        %v2835 = vpack.c.b16 %v2791, %v2789
        %v2836 = vpack.c.b16 %v2792, %v2790
        %v2837 = vpack.c.b16 %v2795, %v2793
        %v2838 = vpack.c.b16 %v2796, %v2794
        %v2839 = vpack.c.b16 %v2799, %v2797
        %v2840 = vpack.c.b16 %v2800, %v2798
        %v2841 = vpack.c.b16 %v2803, %v2801
        %v2842 = vpack.c.b16 %v2804, %v2802
        %v2843 = vpack.c.b16 %v2807, %v2805
        %v2844 = vpack.c.b16 %v2808, %v2806
        %v2845 = vpack.c.b16 %v2811, %v2809
        %v2846 = vpack.c.b16 %v2812, %v2810
        %v2847 = vpack.c.b16 %v2815, %v2813
        %v2848 = vpack.c.b16 %v2816, %v2814
        %2881 = vmatprep.subr.bf16.mxu0 %v2818
        %2882 = vmatpush1.bf16.msra.mxu0 %v2817
        %2883 = vmatprep.subr.bf16.mxu0 %v2820
        %2884 = vmatpush1.bf16.msra.mxu0 %v2819
        %2885 = vmatprep.subr.bf16.mxu0 %v2822
        %2886 = vmatpush1.bf16.msra.mxu0 %v2821
        %2887 = vmatprep.subr.bf16.mxu0 %v2824
        %2888 = vmatpush1.bf16.msra.mxu0 %v2823
        %2889 = vmatprep.subr.bf16.mxu0 %v2826
        %2890 = vmatpush1.bf16.msra.mxu0 %v2825
        %2891 = vmatprep.subr.bf16.mxu0 %v2828
        %2892 = vmatpush1.bf16.msra.mxu0 %v2827
        %2893 = vmatprep.subr.bf16.mxu0 %v2830
        %2894 = vmatpush1.bf16.msra.mxu0 %v2829
        %2895 = vmatprep.subr.bf16.mxu0 %v2832
        %2896 = vmatpush1.bf16.msra.mxu0 %v2831
        %2897 = vmatprep.subr.bf16.mxu0 %v2834
        %2898 = vmatpush1.bf16.msra.mxu0 %v2833
        %2899 = vmatprep.subr.bf16.mxu0 %v2836
        %2900 = vmatpush1.bf16.msra.mxu0 %v2835
        %2901 = vmatprep.subr.bf16.mxu0 %v2838
        %2902 = vmatpush1.bf16.msra.mxu0 %v2837
        %2903 = vmatprep.subr.bf16.mxu0 %v2840
        %2904 = vmatpush1.bf16.msra.mxu0 %v2839
        %2905 = vmatprep.subr.bf16.mxu0 %v2842
        %2906 = vmatpush1.bf16.msra.mxu0 %v2841
        %2907 = vmatprep.subr.bf16.mxu0 %v2844
        %2908 = vmatpush1.bf16.msra.mxu0 %v2843
        %2909 = vmatprep.subr.bf16.mxu0 %v2846
        %2910 = vmatpush1.bf16.msra.mxu0 %v2845
        %2911 = vmatprep.subr.bf16.mxu0 %v2848
        %2912 = vmatpush1.bf16.msra.mxu0 %v2847
        %2913 = vmatprep.mubr.bf16.mxu0 %v2690
        %2914 = vmatmul.mubr.bf16.gmra.mrb[0].mxu0 %v2689
        %v2915 = vpop.f32.mrb[0].mxu0
        %v2916 = vadd.f32 0.0, %v2915
        %v2917 = vpop.f32.mrb[0].mxu0
        %v2918 = vadd.f32 0.0, %v2917
        %v2919 = vpop.f32.mrb[0].mxu0
        %v2920 = vadd.f32 0.0, %v2919
        %v2921 = vpop.f32.mrb[0].mxu0
        %v2922 = vadd.f32 0.0, %v2921
        %2923 = vmatprep.mubr.bf16.mxu0 %v2692
        %2924 = vmatmul.mubr.bf16.gmra.mrb[0].mxu0 %v2691
        %v2925 = vpop.f32.mrb[0].mxu0
        %v2926 = vadd.f32 0.0, %v2925
        %v2927 = vpop.f32.mrb[0].mxu0
        %v2928 = vadd.f32 0.0, %v2927
        %v2929 = vpop.f32.mrb[0].mxu0
        %v2930 = vadd.f32 0.0, %v2929
        %v2931 = vpop.f32.mrb[0].mxu0
        %v2932 = vadd.f32 0.0, %v2931
        %2933 = vmatprep.mubr.bf16.mxu0 %v2694
        %2934 = vmatmul.mubr.bf16.gmra.mrb[0].mxu0 %v2693
        %v2935 = vpop.f32.mrb[0].mxu0
        %v2936 = vadd.f32 0.0, %v2935
        %v2937 = vpop.f32.mrb[0].mxu0
        %v2938 = vadd.f32 0.0, %v2937
        %v2939 = vpop.f32.mrb[0].mxu0
        %v2940 = vadd.f32 0.0, %v2939
        %v2941 = vpop.f32.mrb[0].mxu0
        %v2942 = vadd.f32 0.0, %v2941
        %2943 = vmatprep.mubr.bf16.mxu0 %v2696
        %2944 = vmatmul.mubr.bf16.gmra.mrb[0].mxu0 %v2695
        %v2945 = vpop.f32.mrb[0].mxu0
        %v2946 = vadd.f32 0.0, %v2945
        %v2947 = vpop.f32.mrb[0].mxu0
        %v2948 = vadd.f32 0.0, %v2947
        %v2949 = vpop.f32.mrb[0].mxu0
        %v2950 = vadd.f32 0.0, %v2949
        %v2951 = vpop.f32.mrb[0].mxu0
        %v2952 = vadd.f32 0.0, %v2951
        %2953 = vmatprep.mubr.bf16.mxu0 %v2698
        %2954 = vmatmul.mubr.bf16.gmra.mrb[0].mxu0 %v2697
        %v2955 = vpop.f32.mrb[0].mxu0
        %v2956 = vadd.f32 0.0, %v2955
        %v2957 = vpop.f32.mrb[0].mxu0
        %v2958 = vadd.f32 0.0, %v2957
        %v2959 = vpop.f32.mrb[0].mxu0
        %v2960 = vadd.f32 0.0, %v2959
        %v2961 = vpop.f32.mrb[0].mxu0
        %v2962 = vadd.f32 0.0, %v2961
        %2963 = vmatprep.mubr.bf16.mxu0 %v2700
        %2964 = vmatmul.mubr.bf16.gmra.mrb[0].mxu0 %v2699
        %v2965 = vpop.f32.mrb[0].mxu0
        %v2966 = vadd.f32 0.0, %v2965
        %v2967 = vpop.f32.mrb[0].mxu0
        %v2968 = vadd.f32 0.0, %v2967
        %v2969 = vpop.f32.mrb[0].mxu0
        %v2970 = vadd.f32 0.0, %v2969
        %v2971 = vpop.f32.mrb[0].mxu0
        %v2972 = vadd.f32 0.0, %v2971
        %2973 = vmatprep.mubr.bf16.mxu0 %v2702
        %2974 = vmatmul.mubr.bf16.gmra.mrb[0].mxu0 %v2701
        %v2975 = vpop.f32.mrb[0].mxu0
        %v2976 = vadd.f32 0.0, %v2975
        %v2977 = vpop.f32.mrb[0].mxu0
        %v2978 = vadd.f32 0.0, %v2977
        %v2979 = vpop.f32.mrb[0].mxu0
        %v2980 = vadd.f32 0.0, %v2979
        %v2981 = vpop.f32.mrb[0].mxu0
        %v2982 = vadd.f32 0.0, %v2981
        %2983 = vmatprep.mubr.bf16.mxu0 %v2704
        %2984 = vmatmul.mubr.bf16.gmra.mrb[0].mxu0 %v2703
        %v2985 = vpop.f32.mrb[0].mxu0
        %v2986 = vadd.f32 0.0, %v2985
        %v2987 = vpop.f32.mrb[0].mxu0
        %v2988 = vadd.f32 0.0, %v2987
        %v2989 = vpop.f32.mrb[0].mxu0
        %v2990 = vadd.f32 0.0, %v2989
        %v2991 = vpop.f32.mrb[0].mxu0
        %v2992 = vadd.f32 0.0, %v2991
        %2993 = vmatprep.mubr.bf16.mxu0 %v2706
        %2994 = vmatmul.mubr.bf16.gmra.mrb[0].mxu0 %v2705
        %v2995 = vpop.f32.mrb[0].mxu0
        %v2996 = vadd.f32 0.0, %v2995
        %v2997 = vpop.f32.mrb[0].mxu0
        %v2998 = vadd.f32 0.0, %v2997
        %v2999 = vpop.f32.mrb[0].mxu0
        %v3000 = vadd.f32 0.0, %v2999
        %v3001 = vpop.f32.mrb[0].mxu0
        %v3002 = vadd.f32 0.0, %v3001
        %3003 = vmatprep.mubr.bf16.mxu0 %v2708
        %3004 = vmatmul.mubr.bf16.gmra.mrb[0].mxu0 %v2707
        %v3005 = vpop.f32.mrb[0].mxu0
        %v3006 = vadd.f32 0.0, %v3005
        %v3007 = vpop.f32.mrb[0].mxu0
        %v3008 = vadd.f32 0.0, %v3007
        %v3009 = vpop.f32.mrb[0].mxu0
        %v3010 = vadd.f32 0.0, %v3009
        %v3011 = vpop.f32.mrb[0].mxu0
        %v3012 = vadd.f32 0.0, %v3011
        %3013 = vmatprep.mubr.bf16.mxu0 %v2710
        %3014 = vmatmul.mubr.bf16.gmra.mrb[0].mxu0 %v2709
        %v3015 = vpop.f32.mrb[0].mxu0
        %v3016 = vadd.f32 0.0, %v3015
        %v3017 = vpop.f32.mrb[0].mxu0
        %v3018 = vadd.f32 0.0, %v3017
        %v3019 = vpop.f32.mrb[0].mxu0
        %v3020 = vadd.f32 0.0, %v3019
        %v3021 = vpop.f32.mrb[0].mxu0
        %v3022 = vadd.f32 0.0, %v3021
        %3023 = vmatprep.mubr.bf16.mxu0 %v2712
        %3024 = vmatmul.mubr.bf16.gmra.mrb[0].mxu0 %v2711
        %v3025 = vpop.f32.mrb[0].mxu0
        %v3026 = vadd.f32 0.0, %v3025
        %v3027 = vpop.f32.mrb[0].mxu0
        %v3028 = vadd.f32 0.0, %v3027
        %v3029 = vpop.f32.mrb[0].mxu0
        %v3030 = vadd.f32 0.0, %v3029
        %v3031 = vpop.f32.mrb[0].mxu0
        %v3032 = vadd.f32 0.0, %v3031
        %3033 = vmatprep.mubr.bf16.mxu0 %v2714
        %3034 = vmatmul.mubr.bf16.gmra.mrb[0].mxu0 %v2713
        %v3035 = vpop.f32.mrb[0].mxu0
        %v3036 = vadd.f32 0.0, %v3035
        %v3037 = vpop.f32.mrb[0].mxu0
        %v3038 = vadd.f32 0.0, %v3037
        %v3039 = vpop.f32.mrb[0].mxu0
        %v3040 = vadd.f32 0.0, %v3039
        %v3041 = vpop.f32.mrb[0].mxu0
        %v3042 = vadd.f32 0.0, %v3041
        %3043 = vmatprep.mubr.bf16.mxu0 %v2716
        %3044 = vmatmul.mubr.bf16.gmra.mrb[0].mxu0 %v2715
        %v3045 = vpop.f32.mrb[0].mxu0
        %v3046 = vadd.f32 0.0, %v3045
        %v3047 = vpop.f32.mrb[0].mxu0
        %v3048 = vadd.f32 0.0, %v3047
        %v3049 = vpop.f32.mrb[0].mxu0
        %v3050 = vadd.f32 0.0, %v3049
        %v3051 = vpop.f32.mrb[0].mxu0
        %v3052 = vadd.f32 0.0, %v3051
        %3053 = vmatprep.mubr.bf16.mxu0 %v2718
        %3054 = vmatmul.mubr.bf16.gmra.mrb[0].mxu0 %v2717
        %v3055 = vpop.f32.mrb[0].mxu0
        %v3056 = vadd.f32 0.0, %v3055
        %v3057 = vpop.f32.mrb[0].mxu0
        %v3058 = vadd.f32 0.0, %v3057
        %v3059 = vpop.f32.mrb[0].mxu0
        %v3060 = vadd.f32 0.0, %v3059
        %v3061 = vpop.f32.mrb[0].mxu0
        %v3062 = vadd.f32 0.0, %v3061
        %3063 = vmatprep.mubr.bf16.mxu0 %v2720
        %3064 = vmatmul.mubr.bf16.gmra.mrb[0].mxu0 %v2719
        %v3065 = vpop.f32.mrb[0].mxu0
        %v3066 = vadd.f32 0.0, %v3065
        %v3067 = vpop.f32.mrb[0].mxu0
        %v3068 = vadd.f32 0.0, %v3067
        %v3069 = vpop.f32.mrb[0].mxu0
        %v3070 = vadd.f32 0.0, %v3069
        %v3071 = vpop.f32.mrb[0].mxu0
        %v3072 = vadd.f32 0.0, %v3071
        %3073 = vdwg.mxu0
        %v3074 = vmul.f32 %v1622, %v2916
        %v3075 = vmul.f32 %v1622, %v2918
        %v3076 = vmul.f32 %v1627, %v2920
        %v3077 = vmul.f32 %v1627, %v2922
        %v3078 = vmul.f32 %v1632, %v2926
        %v3079 = vmul.f32 %v1632, %v2928
        %v3080 = vmul.f32 %v1637, %v2930
        %v3081 = vmul.f32 %v1637, %v2932
        %v3082 = vmul.f32 %v1642, %v2936
        %v3083 = vmul.f32 %v1642, %v2938
        %v3084 = vmul.f32 %v1647, %v2940
        %v3085 = vmul.f32 %v1647, %v2942
        %v3086 = vmul.f32 %v1652, %v2946
        %v3087 = vmul.f32 %v1652, %v2948
        %v3088 = vmul.f32 %v1657, %v2950
        %v3089 = vmul.f32 %v1657, %v2952
        %v3090 = vmul.f32 %v1662, %v2956
        %v3091 = vmul.f32 %v1662, %v2958
        %v3092 = vmul.f32 %v1667, %v2960
        %v3093 = vmul.f32 %v1667, %v2962
        %v3094 = vmul.f32 %v1672, %v2966
        %v3095 = vmul.f32 %v1672, %v2968
        %v3096 = vmul.f32 %v1677, %v2970
        %v3097 = vmul.f32 %v1677, %v2972
        %v3098 = vmul.f32 %v1682, %v2976
        %v3099 = vmul.f32 %v1682, %v2978
        %v3100 = vmul.f32 %v1687, %v2980
        %v3101 = vmul.f32 %v1687, %v2982
        %v3102 = vmul.f32 %v1692, %v2986
        %v3103 = vmul.f32 %v1692, %v2988
        %v3104 = vmul.f32 %v1697, %v2990
        %v3105 = vmul.f32 %v1697, %v2992
        %v3106 = vmul.f32 %v1702, %v2996
        %v3107 = vmul.f32 %v1702, %v2998
        %v3108 = vmul.f32 %v1707, %v3000
        %v3109 = vmul.f32 %v1707, %v3002
        %v3110 = vmul.f32 %v1712, %v3006
        %v3111 = vmul.f32 %v1712, %v3008
        %v3112 = vmul.f32 %v1717, %v3010
        %v3113 = vmul.f32 %v1717, %v3012
        %v3114 = vmul.f32 %v1722, %v3016
        %v3115 = vmul.f32 %v1722, %v3018
        %v3116 = vmul.f32 %v1727, %v3020
        %v3117 = vmul.f32 %v1727, %v3022
        %v3118 = vmul.f32 %v1732, %v3026
        %v3119 = vmul.f32 %v1732, %v3028
        %v3120 = vmul.f32 %v1737, %v3030
        %v3121 = vmul.f32 %v1737, %v3032
        %v3122 = vmul.f32 %v1742, %v3036
        %v3123 = vmul.f32 %v1742, %v3038
        %v3124 = vmul.f32 %v1747, %v3040
        %v3125 = vmul.f32 %v1747, %v3042
        %v3126 = vmul.f32 %v1752, %v3046
        %v3127 = vmul.f32 %v1752, %v3048
        %v3128 = vmul.f32 %v1757, %v3050
        %v3129 = vmul.f32 %v1757, %v3052
        %v3130 = vmul.f32 %v1762, %v3056
        %v3131 = vmul.f32 %v1762, %v3058
        %v3132 = vmul.f32 %v1767, %v3060
        %v3133 = vmul.f32 %v1767, %v3062
        %v3134 = vmul.f32 %v1772, %v3066
        %v3135 = vmul.f32 %v1772, %v3068
        %v3136 = vmul.f32 %v1777, %v3070
        %v3137 = vmul.f32 %v1777, %v3072
        %v3170 = vunpack.c.l.b16 %v2463
        %v3171 = vunpack.c.h.b16 %v2463
        %v3172 = vunpack.c.l.b16 %v2464
        %v3173 = vunpack.c.h.b16 %v2464
        %v3174 = vunpack.c.l.b16 %v2465
        %v3175 = vunpack.c.h.b16 %v2465
        %v3176 = vunpack.c.l.b16 %v2466
        %v3177 = vunpack.c.h.b16 %v2466
        %v3178 = vunpack.c.l.b16 %v2467
        %v3179 = vunpack.c.h.b16 %v2467
        %v3180 = vunpack.c.l.b16 %v2468
        %v3181 = vunpack.c.h.b16 %v2468
        %v3182 = vunpack.c.l.b16 %v2469
        %v3183 = vunpack.c.h.b16 %v2469
        %v3184 = vunpack.c.l.b16 %v2470
        %v3185 = vunpack.c.h.b16 %v2470
        %v3186 = vunpack.c.l.b16 %v2471
        %v3187 = vunpack.c.h.b16 %v2471
        %v3188 = vunpack.c.l.b16 %v2472
        %v3189 = vunpack.c.h.b16 %v2472
        %v3190 = vunpack.c.l.b16 %v2473
        %v3191 = vunpack.c.h.b16 %v2473
        %v3192 = vunpack.c.l.b16 %v2474
        %v3193 = vunpack.c.h.b16 %v2474
        %v3194 = vunpack.c.l.b16 %v2475
        %v3195 = vunpack.c.h.b16 %v2475
        %v3196 = vunpack.c.l.b16 %v2476
        %v3197 = vunpack.c.h.b16 %v2476
        %v3198 = vunpack.c.l.b16 %v2477
        %v3199 = vunpack.c.h.b16 %v2477
        %v3200 = vunpack.c.l.b16 %v2478
        %v3201 = vunpack.c.h.b16 %v2478
        %v3202 = vunpack.c.l.b16 %v2479
        %v3203 = vunpack.c.h.b16 %v2479
        %v3204 = vunpack.c.l.b16 %v2480
        %v3205 = vunpack.c.h.b16 %v2480
        %v3206 = vunpack.c.l.b16 %v2481
        %v3207 = vunpack.c.h.b16 %v2481
        %v3208 = vunpack.c.l.b16 %v2482
        %v3209 = vunpack.c.h.b16 %v2482
        %v3210 = vunpack.c.l.b16 %v2483
        %v3211 = vunpack.c.h.b16 %v2483
        %v3212 = vunpack.c.l.b16 %v2484
        %v3213 = vunpack.c.h.b16 %v2484
        %v3214 = vunpack.c.l.b16 %v2485
        %v3215 = vunpack.c.h.b16 %v2485
        %v3216 = vunpack.c.l.b16 %v2486
        %v3217 = vunpack.c.h.b16 %v2486
        %v3218 = vunpack.c.l.b16 %v2487
        %v3219 = vunpack.c.h.b16 %v2487
        %v3220 = vunpack.c.l.b16 %v2488
        %v3221 = vunpack.c.h.b16 %v2488
        %v3222 = vunpack.c.l.b16 %v2489
        %v3223 = vunpack.c.h.b16 %v2489
        %v3224 = vunpack.c.l.b16 %v2490
        %v3225 = vunpack.c.h.b16 %v2490
        %v3226 = vunpack.c.l.b16 %v2491
        %v3227 = vunpack.c.h.b16 %v2491
        %v3228 = vunpack.c.l.b16 %v2492
        %v3229 = vunpack.c.h.b16 %v2492
        %v3230 = vunpack.c.l.b16 %v2493
        %v3231 = vunpack.c.h.b16 %v2493
        %v3232 = vunpack.c.l.b16 %v2494
        %v3233 = vunpack.c.h.b16 %v2494
        %v3234 = vpack.c.b16 %v3172, %v3170
        %v3235 = vpack.c.b16 %v3173, %v3171
        %v3236 = vpack.c.b16 %v3176, %v3174
        %v3237 = vpack.c.b16 %v3177, %v3175
        %v3238 = vpack.c.b16 %v3180, %v3178
        %v3239 = vpack.c.b16 %v3181, %v3179
        %v3240 = vpack.c.b16 %v3184, %v3182
        %v3241 = vpack.c.b16 %v3185, %v3183
        %v3242 = vpack.c.b16 %v3188, %v3186
        %v3243 = vpack.c.b16 %v3189, %v3187
        %v3244 = vpack.c.b16 %v3192, %v3190
        %v3245 = vpack.c.b16 %v3193, %v3191
        %v3246 = vpack.c.b16 %v3196, %v3194
        %v3247 = vpack.c.b16 %v3197, %v3195
        %v3248 = vpack.c.b16 %v3200, %v3198
        %v3249 = vpack.c.b16 %v3201, %v3199
        %v3250 = vpack.c.b16 %v3204, %v3202
        %v3251 = vpack.c.b16 %v3205, %v3203
        %v3252 = vpack.c.b16 %v3208, %v3206
        %v3253 = vpack.c.b16 %v3209, %v3207
        %v3254 = vpack.c.b16 %v3212, %v3210
        %v3255 = vpack.c.b16 %v3213, %v3211
        %v3256 = vpack.c.b16 %v3216, %v3214
        %v3257 = vpack.c.b16 %v3217, %v3215
        %v3258 = vpack.c.b16 %v3220, %v3218
        %v3259 = vpack.c.b16 %v3221, %v3219
        %v3260 = vpack.c.b16 %v3224, %v3222
        %v3261 = vpack.c.b16 %v3225, %v3223
        %v3262 = vpack.c.b16 %v3228, %v3226
        %v3263 = vpack.c.b16 %v3229, %v3227
        %v3264 = vpack.c.b16 %v3232, %v3230
        %v3265 = vpack.c.b16 %v3233, %v3231
        %3298 = vmatprep.subr.bf16.mxu0 %v3235
        %3299 = vmatpush1.bf16.msra.mxu0 %v3234
        %3300 = vmatprep.subr.bf16.mxu0 %v3237
        %3301 = vmatpush1.bf16.msra.mxu0 %v3236
        %3302 = vmatprep.subr.bf16.mxu0 %v3239
        %3303 = vmatpush1.bf16.msra.mxu0 %v3238
        %3304 = vmatprep.subr.bf16.mxu0 %v3241
        %3305 = vmatpush1.bf16.msra.mxu0 %v3240
        %3306 = vmatprep.subr.bf16.mxu0 %v3243
        %3307 = vmatpush1.bf16.msra.mxu0 %v3242
        %3308 = vmatprep.subr.bf16.mxu0 %v3245
        %3309 = vmatpush1.bf16.msra.mxu0 %v3244
        %3310 = vmatprep.subr.bf16.mxu0 %v3247
        %3311 = vmatpush1.bf16.msra.mxu0 %v3246
        %3312 = vmatprep.subr.bf16.mxu0 %v3249
        %3313 = vmatpush1.bf16.msra.mxu0 %v3248
        %3314 = vmatprep.subr.bf16.mxu0 %v3251
        %3315 = vmatpush1.bf16.msra.mxu0 %v3250
        %3316 = vmatprep.subr.bf16.mxu0 %v3253
        %3317 = vmatpush1.bf16.msra.mxu0 %v3252
        %3318 = vmatprep.subr.bf16.mxu0 %v3255
        %3319 = vmatpush1.bf16.msra.mxu0 %v3254
        %3320 = vmatprep.subr.bf16.mxu0 %v3257
        %3321 = vmatpush1.bf16.msra.mxu0 %v3256
        %3322 = vmatprep.subr.bf16.mxu0 %v3259
        %3323 = vmatpush1.bf16.msra.mxu0 %v3258
        %3324 = vmatprep.subr.bf16.mxu0 %v3261
        %3325 = vmatpush1.bf16.msra.mxu0 %v3260
        %3326 = vmatprep.subr.bf16.mxu0 %v3263
        %3327 = vmatpush1.bf16.msra.mxu0 %v3262
        %3328 = vmatprep.subr.bf16.mxu0 %v3265
        %3329 = vmatpush1.bf16.msra.mxu0 %v3264
        %3330 = vmatprep.mubr.bf16.mxu0 %v2400
        %3331 = vmatmul.mubr.bf16.gmra.mrb[0].mxu0 %v2399
        %v3332 = vpop.f32.mrb[0].mxu0
        %v3333 = vadd.f32 0.0, %v3332
        %v3334 = vpop.f32.mrb[0].mxu0
        %v3335 = vadd.f32 0.0, %v3334
        %v3336 = vpop.f32.mrb[0].mxu0
        %v3337 = vadd.f32 0.0, %v3336
        %v3338 = vpop.f32.mrb[0].mxu0
        %v3339 = vadd.f32 0.0, %v3338
        %3340 = vmatprep.mubr.bf16.mxu0 %v2402
        %3341 = vmatmul.mubr.bf16.gmra.mrb[0].mxu0 %v2401
        %v3342 = vpop.f32.mrb[0].mxu0
        %v3343 = vadd.f32 0.0, %v3342
        %v3344 = vpop.f32.mrb[0].mxu0
        %v3345 = vadd.f32 0.0, %v3344
        %v3346 = vpop.f32.mrb[0].mxu0
        %v3347 = vadd.f32 0.0, %v3346
        %v3348 = vpop.f32.mrb[0].mxu0
        %v3349 = vadd.f32 0.0, %v3348
        %3350 = vmatprep.mubr.bf16.mxu0 %v2404
        %3351 = vmatmul.mubr.bf16.gmra.mrb[0].mxu0 %v2403
        %v3352 = vpop.f32.mrb[0].mxu0
        %v3353 = vadd.f32 0.0, %v3352
        %v3354 = vpop.f32.mrb[0].mxu0
        %v3355 = vadd.f32 0.0, %v3354
        %v3356 = vpop.f32.mrb[0].mxu0
        %v3357 = vadd.f32 0.0, %v3356
        %v3358 = vpop.f32.mrb[0].mxu0
        %v3359 = vadd.f32 0.0, %v3358
        %3360 = vmatprep.mubr.bf16.mxu0 %v2406
        %3361 = vmatmul.mubr.bf16.gmra.mrb[0].mxu0 %v2405
        %v3362 = vpop.f32.mrb[0].mxu0
        %v3363 = vadd.f32 0.0, %v3362
        %v3364 = vpop.f32.mrb[0].mxu0
        %v3365 = vadd.f32 0.0, %v3364
        %v3366 = vpop.f32.mrb[0].mxu0
        %v3367 = vadd.f32 0.0, %v3366
        %v3368 = vpop.f32.mrb[0].mxu0
        %v3369 = vadd.f32 0.0, %v3368
        %3370 = vmatprep.mubr.bf16.mxu0 %v2408
        %3371 = vmatmul.mubr.bf16.gmra.mrb[0].mxu0 %v2407
        %v3372 = vpop.f32.mrb[0].mxu0
        %v3373 = vadd.f32 0.0, %v3372
        %v3374 = vpop.f32.mrb[0].mxu0
        %v3375 = vadd.f32 0.0, %v3374
        %v3376 = vpop.f32.mrb[0].mxu0
        %v3377 = vadd.f32 0.0, %v3376
        %v3378 = vpop.f32.mrb[0].mxu0
        %v3379 = vadd.f32 0.0, %v3378
        %3380 = vmatprep.mubr.bf16.mxu0 %v2410
        %3381 = vmatmul.mubr.bf16.gmra.mrb[0].mxu0 %v2409
        %v3382 = vpop.f32.mrb[0].mxu0
        %v3383 = vadd.f32 0.0, %v3382
        %v3384 = vpop.f32.mrb[0].mxu0
        %v3385 = vadd.f32 0.0, %v3384
        %v3386 = vpop.f32.mrb[0].mxu0
        %v3387 = vadd.f32 0.0, %v3386
        %v3388 = vpop.f32.mrb[0].mxu0
        %v3389 = vadd.f32 0.0, %v3388
        %3390 = vmatprep.mubr.bf16.mxu0 %v2412
        %3391 = vmatmul.mubr.bf16.gmra.mrb[0].mxu0 %v2411
        %v3392 = vpop.f32.mrb[0].mxu0
        %v3393 = vadd.f32 0.0, %v3392
        %v3394 = vpop.f32.mrb[0].mxu0
        %v3395 = vadd.f32 0.0, %v3394
        %v3396 = vpop.f32.mrb[0].mxu0
        %v3397 = vadd.f32 0.0, %v3396
        %v3398 = vpop.f32.mrb[0].mxu0
        %v3399 = vadd.f32 0.0, %v3398
        %3400 = vmatprep.mubr.bf16.mxu0 %v2414
        %3401 = vmatmul.mubr.bf16.gmra.mrb[0].mxu0 %v2413
        %v3402 = vpop.f32.mrb[0].mxu0
        %v3403 = vadd.f32 0.0, %v3402
        %v3404 = vpop.f32.mrb[0].mxu0
        %v3405 = vadd.f32 0.0, %v3404
        %v3406 = vpop.f32.mrb[0].mxu0
        %v3407 = vadd.f32 0.0, %v3406
        %v3408 = vpop.f32.mrb[0].mxu0
        %v3409 = vadd.f32 0.0, %v3408
        %3410 = vmatprep.mubr.bf16.mxu0 %v2416
        %3411 = vmatmul.mubr.bf16.gmra.mrb[0].mxu0 %v2415
        %v3412 = vpop.f32.mrb[0].mxu0
        %v3413 = vadd.f32 0.0, %v3412
        %v3414 = vpop.f32.mrb[0].mxu0
        %v3415 = vadd.f32 0.0, %v3414
        %v3416 = vpop.f32.mrb[0].mxu0
        %v3417 = vadd.f32 0.0, %v3416
        %v3418 = vpop.f32.mrb[0].mxu0
        %v3419 = vadd.f32 0.0, %v3418
        %3420 = vmatprep.mubr.bf16.mxu0 %v2418
        %3421 = vmatmul.mubr.bf16.gmra.mrb[0].mxu0 %v2417
        %v3422 = vpop.f32.mrb[0].mxu0
        %v3423 = vadd.f32 0.0, %v3422
        %v3424 = vpop.f32.mrb[0].mxu0
        %v3425 = vadd.f32 0.0, %v3424
        %v3426 = vpop.f32.mrb[0].mxu0
        %v3427 = vadd.f32 0.0, %v3426
        %v3428 = vpop.f32.mrb[0].mxu0
        %v3429 = vadd.f32 0.0, %v3428
        %3430 = vmatprep.mubr.bf16.mxu0 %v2420
        %3431 = vmatmul.mubr.bf16.gmra.mrb[0].mxu0 %v2419
        %v3432 = vpop.f32.mrb[0].mxu0
        %v3433 = vadd.f32 0.0, %v3432
        %v3434 = vpop.f32.mrb[0].mxu0
        %v3435 = vadd.f32 0.0, %v3434
        %v3436 = vpop.f32.mrb[0].mxu0
        %v3437 = vadd.f32 0.0, %v3436
        %v3438 = vpop.f32.mrb[0].mxu0
        %v3439 = vadd.f32 0.0, %v3438
        %3440 = vmatprep.mubr.bf16.mxu0 %v2422
        %3441 = vmatmul.mubr.bf16.gmra.mrb[0].mxu0 %v2421
        %v3442 = vpop.f32.mrb[0].mxu0
        %v3443 = vadd.f32 0.0, %v3442
        %v3444 = vpop.f32.mrb[0].mxu0
        %v3445 = vadd.f32 0.0, %v3444
        %v3446 = vpop.f32.mrb[0].mxu0
        %v3447 = vadd.f32 0.0, %v3446
        %v3448 = vpop.f32.mrb[0].mxu0
        %v3449 = vadd.f32 0.0, %v3448
        %3450 = vmatprep.mubr.bf16.mxu0 %v2424
        %3451 = vmatmul.mubr.bf16.gmra.mrb[0].mxu0 %v2423
        %v3452 = vpop.f32.mrb[0].mxu0
        %v3453 = vadd.f32 0.0, %v3452
        %v3454 = vpop.f32.mrb[0].mxu0
        %v3455 = vadd.f32 0.0, %v3454
        %v3456 = vpop.f32.mrb[0].mxu0
        %v3457 = vadd.f32 0.0, %v3456
        %v3458 = vpop.f32.mrb[0].mxu0
        %v3459 = vadd.f32 0.0, %v3458
        %3460 = vmatprep.mubr.bf16.mxu0 %v2426
        %3461 = vmatmul.mubr.bf16.gmra.mrb[0].mxu0 %v2425
        %v3462 = vpop.f32.mrb[0].mxu0
        %v3463 = vadd.f32 0.0, %v3462
        %v3464 = vpop.f32.mrb[0].mxu0
        %v3465 = vadd.f32 0.0, %v3464
        %v3466 = vpop.f32.mrb[0].mxu0
        %v3467 = vadd.f32 0.0, %v3466
        %v3468 = vpop.f32.mrb[0].mxu0
        %v3469 = vadd.f32 0.0, %v3468
        %3470 = vmatprep.mubr.bf16.mxu0 %v2428
        %3471 = vmatmul.mubr.bf16.gmra.mrb[0].mxu0 %v2427
        %v3472 = vpop.f32.mrb[0].mxu0
        %v3473 = vadd.f32 0.0, %v3472
        %v3474 = vpop.f32.mrb[0].mxu0
        %v3475 = vadd.f32 0.0, %v3474
        %v3476 = vpop.f32.mrb[0].mxu0
        %v3477 = vadd.f32 0.0, %v3476
        %v3478 = vpop.f32.mrb[0].mxu0
        %v3479 = vadd.f32 0.0, %v3478
        %3480 = vmatprep.mubr.bf16.mxu0 %v2430
        %3481 = vmatmul.mubr.bf16.gmra.mrb[0].mxu0 %v2429
        %v3482 = vpop.f32.mrb[0].mxu0
        %v3483 = vadd.f32 0.0, %v3482
        %v3484 = vpop.f32.mrb[0].mxu0
        %v3485 = vadd.f32 0.0, %v3484
        %v3486 = vpop.f32.mrb[0].mxu0
        %v3487 = vadd.f32 0.0, %v3486
        %v3488 = vpop.f32.mrb[0].mxu0
        %v3489 = vadd.f32 0.0, %v3488
        %3490 = vdwg.mxu0
        %v3491 = vadd.f32 %v3074, %v3333
        %v3492 = vadd.f32 %v3075, %v3335
        %v3493 = vadd.f32 %v3076, %v3337
        %v3494 = vadd.f32 %v3077, %v3339
        %v3495 = vadd.f32 %v3078, %v3343
        %v3496 = vadd.f32 %v3079, %v3345
        %v3497 = vadd.f32 %v3080, %v3347
        %v3498 = vadd.f32 %v3081, %v3349
        %v3499 = vadd.f32 %v3082, %v3353
        %v3500 = vadd.f32 %v3083, %v3355
        %v3501 = vadd.f32 %v3084, %v3357
        %v3502 = vadd.f32 %v3085, %v3359
        %v3503 = vadd.f32 %v3086, %v3363
        %v3504 = vadd.f32 %v3087, %v3365
        %v3505 = vadd.f32 %v3088, %v3367
        %v3506 = vadd.f32 %v3089, %v3369
        %v3507 = vadd.f32 %v3090, %v3373
        %v3508 = vadd.f32 %v3091, %v3375
        %v3509 = vadd.f32 %v3092, %v3377
        %v3510 = vadd.f32 %v3093, %v3379
        %v3511 = vadd.f32 %v3094, %v3383
        %v3512 = vadd.f32 %v3095, %v3385
        %v3513 = vadd.f32 %v3096, %v3387
        %v3514 = vadd.f32 %v3097, %v3389
        %v3515 = vadd.f32 %v3098, %v3393
        %v3516 = vadd.f32 %v3099, %v3395
        %v3517 = vadd.f32 %v3100, %v3397
        %v3518 = vadd.f32 %v3101, %v3399
        %v3519 = vadd.f32 %v3102, %v3403
        %v3520 = vadd.f32 %v3103, %v3405
        %v3521 = vadd.f32 %v3104, %v3407
        %v3522 = vadd.f32 %v3105, %v3409
        %v3523 = vadd.f32 %v3106, %v3413
        %v3524 = vadd.f32 %v3107, %v3415
        %v3525 = vadd.f32 %v3108, %v3417
        %v3526 = vadd.f32 %v3109, %v3419
        %v3527 = vadd.f32 %v3110, %v3423
        %v3528 = vadd.f32 %v3111, %v3425
        %v3529 = vadd.f32 %v3112, %v3427
        %v3530 = vadd.f32 %v3113, %v3429
        %v3531 = vadd.f32 %v3114, %v3433
        %v3532 = vadd.f32 %v3115, %v3435
        %v3533 = vadd.f32 %v3116, %v3437
        %v3534 = vadd.f32 %v3117, %v3439
        %v3535 = vadd.f32 %v3118, %v3443
        %v3536 = vadd.f32 %v3119, %v3445
        %v3537 = vadd.f32 %v3120, %v3447
        %v3538 = vadd.f32 %v3121, %v3449
        %v3539 = vadd.f32 %v3122, %v3453
        %v3540 = vadd.f32 %v3123, %v3455
        %v3541 = vadd.f32 %v3124, %v3457
        %v3542 = vadd.f32 %v3125, %v3459
        %v3543 = vadd.f32 %v3126, %v3463
        %v3544 = vadd.f32 %v3127, %v3465
        %v3545 = vadd.f32 %v3128, %v3467
        %v3546 = vadd.f32 %v3129, %v3469
        %v3547 = vadd.f32 %v3130, %v3473
        %v3548 = vadd.f32 %v3131, %v3475
        %v3549 = vadd.f32 %v3132, %v3477
        %v3550 = vadd.f32 %v3133, %v3479
        %v3551 = vadd.f32 %v3134, %v3483
        %v3552 = vadd.f32 %v3135, %v3485
        %v3553 = vadd.f32 %v3136, %v3487
        %v3554 = vadd.f32 %v3137, %v3489
        %v3556 = vlaneseq
        %v3557 = vshrl.u32 %v3556, 7
        %v3558 = vsub.s32 0, %v3557
        %v3559 = vrot.slane %v2495, %v3558
        %v3560 = vlaneseq
        %v3561 = vshrl.u32 %v3560, 7
        %v3562 = vsub.s32 1, %v3561
        %v3563 = vrot.slane %v2495, %v3562
        %v3566 = vadd.f32 %v3491, %v3559
        %v3567 = vadd.f32 %v3492, %v3563
        %v3568 = vadd.f32 %v3493, %v3559
        %v3569 = vadd.f32 %v3494, %v3563
        %v3570 = vadd.f32 %v3495, %v3559
        %v3571 = vadd.f32 %v3496, %v3563
        %v3572 = vadd.f32 %v3497, %v3559
        %v3573 = vadd.f32 %v3498, %v3563
        %v3574 = vadd.f32 %v3499, %v3559
        %v3575 = vadd.f32 %v3500, %v3563
        %v3576 = vadd.f32 %v3501, %v3559
        %v3577 = vadd.f32 %v3502, %v3563
        %v3578 = vadd.f32 %v3503, %v3559
        %v3579 = vadd.f32 %v3504, %v3563
        %v3580 = vadd.f32 %v3505, %v3559
        %v3581 = vadd.f32 %v3506, %v3563
        %v3582 = vadd.f32 %v3507, %v3559
        %v3583 = vadd.f32 %v3508, %v3563
        %v3584 = vadd.f32 %v3509, %v3559
        %v3585 = vadd.f32 %v3510, %v3563
        %v3586 = vadd.f32 %v3511, %v3559
        %v3587 = vadd.f32 %v3512, %v3563
        %v3588 = vadd.f32 %v3513, %v3559
        %v3589 = vadd.f32 %v3514, %v3563
        %v3590 = vadd.f32 %v3515, %v3559
        %v3591 = vadd.f32 %v3516, %v3563
        %v3592 = vadd.f32 %v3517, %v3559
        %v3593 = vadd.f32 %v3518, %v3563
        %v3594 = vadd.f32 %v3519, %v3559
        %v3595 = vadd.f32 %v3520, %v3563
        %v3596 = vadd.f32 %v3521, %v3559
        %v3597 = vadd.f32 %v3522, %v3563
        %v3598 = vadd.f32 %v3523, %v3559
        %v3599 = vadd.f32 %v3524, %v3563
        %v3600 = vadd.f32 %v3525, %v3559
        %v3601 = vadd.f32 %v3526, %v3563
        %v3602 = vadd.f32 %v3527, %v3559
        %v3603 = vadd.f32 %v3528, %v3563
        %v3604 = vadd.f32 %v3529, %v3559
        %v3605 = vadd.f32 %v3530, %v3563
        %v3606 = vadd.f32 %v3531, %v3559
        %v3607 = vadd.f32 %v3532, %v3563
        %v3608 = vadd.f32 %v3533, %v3559
        %v3609 = vadd.f32 %v3534, %v3563
        %v3610 = vadd.f32 %v3535, %v3559
        %v3611 = vadd.f32 %v3536, %v3563
        %v3612 = vadd.f32 %v3537, %v3559
        %v3613 = vadd.f32 %v3538, %v3563
        %v3614 = vadd.f32 %v3539, %v3559
        %v3615 = vadd.f32 %v3540, %v3563
        %v3616 = vadd.f32 %v3541, %v3559
        %v3617 = vadd.f32 %v3542, %v3563
        %v3618 = vadd.f32 %v3543, %v3559
        %v3619 = vadd.f32 %v3544, %v3563
        %v3620 = vadd.f32 %v3545, %v3559
        %v3621 = vadd.f32 %v3546, %v3563
        %v3622 = vadd.f32 %v3547, %v3559
        %v3623 = vadd.f32 %v3548, %v3563
        %v3624 = vadd.f32 %v3549, %v3559
        %v3625 = vadd.f32 %v3550, %v3563
        %v3626 = vadd.f32 %v3551, %v3559
        %v3627 = vadd.f32 %v3552, %v3563
        %v3628 = vadd.f32 %v3553, %v3559
        %v3629 = vadd.f32 %v3554, %v3563
        %v3630 = vmax.f32 %v3566, 0.0
        %v3631 = vmax.f32 %v3567, 0.0
        %v3632 = vmax.f32 %v3568, 0.0
        %v3633 = vmax.f32 %v3569, 0.0
        %v3634 = vmax.f32 %v3570, 0.0
        %v3635 = vmax.f32 %v3571, 0.0
        %v3636 = vmax.f32 %v3572, 0.0
        %v3637 = vmax.f32 %v3573, 0.0
        %v3638 = vmax.f32 %v3574, 0.0
        %v3639 = vmax.f32 %v3575, 0.0
        %v3640 = vmax.f32 %v3576, 0.0
        %v3641 = vmax.f32 %v3577, 0.0
        %v3642 = vmax.f32 %v3578, 0.0
        %v3643 = vmax.f32 %v3579, 0.0
        %v3644 = vmax.f32 %v3580, 0.0
        %v3645 = vmax.f32 %v3581, 0.0
        %v3646 = vmax.f32 %v3582, 0.0
        %v3647 = vmax.f32 %v3583, 0.0
        %v3648 = vmax.f32 %v3584, 0.0
        %v3649 = vmax.f32 %v3585, 0.0
        %v3650 = vmax.f32 %v3586, 0.0
        %v3651 = vmax.f32 %v3587, 0.0
        %v3652 = vmax.f32 %v3588, 0.0
        %v3653 = vmax.f32 %v3589, 0.0
        %v3654 = vmax.f32 %v3590, 0.0
        %v3655 = vmax.f32 %v3591, 0.0
        %v3656 = vmax.f32 %v3592, 0.0
        %v3657 = vmax.f32 %v3593, 0.0
        %v3658 = vmax.f32 %v3594, 0.0
        %v3659 = vmax.f32 %v3595, 0.0
        %v3660 = vmax.f32 %v3596, 0.0
        %v3661 = vmax.f32 %v3597, 0.0
        %v3662 = vmax.f32 %v3598, 0.0
        %v3663 = vmax.f32 %v3599, 0.0
        %v3664 = vmax.f32 %v3600, 0.0
        %v3665 = vmax.f32 %v3601, 0.0
        %v3666 = vmax.f32 %v3602, 0.0
        %v3667 = vmax.f32 %v3603, 0.0
        %v3668 = vmax.f32 %v3604, 0.0
        %v3669 = vmax.f32 %v3605, 0.0
        %v3670 = vmax.f32 %v3606, 0.0
        %v3671 = vmax.f32 %v3607, 0.0
        %v3672 = vmax.f32 %v3608, 0.0
        %v3673 = vmax.f32 %v3609, 0.0
        %v3674 = vmax.f32 %v3610, 0.0
        %v3675 = vmax.f32 %v3611, 0.0
        %v3676 = vmax.f32 %v3612, 0.0
        %v3677 = vmax.f32 %v3613, 0.0
        %v3678 = vmax.f32 %v3614, 0.0
        %v3679 = vmax.f32 %v3615, 0.0
        %v3680 = vmax.f32 %v3616, 0.0
        %v3681 = vmax.f32 %v3617, 0.0
        %v3682 = vmax.f32 %v3618, 0.0
        %v3683 = vmax.f32 %v3619, 0.0
        %v3684 = vmax.f32 %v3620, 0.0
        %v3685 = vmax.f32 %v3621, 0.0
        %v3686 = vmax.f32 %v3622, 0.0
        %v3687 = vmax.f32 %v3623, 0.0
        %v3688 = vmax.f32 %v3624, 0.0
        %v3689 = vmax.f32 %v3625, 0.0
        %v3690 = vmax.f32 %v3626, 0.0
        %v3691 = vmax.f32 %v3627, 0.0
        %v3692 = vmax.f32 %v3628, 0.0
        %v3693 = vmax.f32 %v3629, 0.0
        %v3694 = vpack.c.bf16 %v3632, %v3630
        %v3695 = vpack.c.bf16 %v3633, %v3631
        %v3696 = vpack.c.bf16 %v3636, %v3634
        %v3697 = vpack.c.bf16 %v3637, %v3635
        %v3698 = vpack.c.bf16 %v3640, %v3638
        %v3699 = vpack.c.bf16 %v3641, %v3639
        %v3700 = vpack.c.bf16 %v3644, %v3642
        %v3701 = vpack.c.bf16 %v3645, %v3643
        %v3702 = vpack.c.bf16 %v3648, %v3646
        %v3703 = vpack.c.bf16 %v3649, %v3647
        %v3704 = vpack.c.bf16 %v3652, %v3650
        %v3705 = vpack.c.bf16 %v3653, %v3651
        %v3706 = vpack.c.bf16 %v3656, %v3654
        %v3707 = vpack.c.bf16 %v3657, %v3655
        %v3708 = vpack.c.bf16 %v3660, %v3658
        %v3709 = vpack.c.bf16 %v3661, %v3659
        %v3710 = vpack.c.bf16 %v3664, %v3662
        %v3711 = vpack.c.bf16 %v3665, %v3663
        %v3712 = vpack.c.bf16 %v3668, %v3666
        %v3713 = vpack.c.bf16 %v3669, %v3667
        %v3714 = vpack.c.bf16 %v3672, %v3670
        %v3715 = vpack.c.bf16 %v3673, %v3671
        %v3716 = vpack.c.bf16 %v3676, %v3674
        %v3717 = vpack.c.bf16 %v3677, %v3675
        %v3718 = vpack.c.bf16 %v3680, %v3678
        %v3719 = vpack.c.bf16 %v3681, %v3679
        %v3720 = vpack.c.bf16 %v3684, %v3682
        %v3721 = vpack.c.bf16 %v3685, %v3683
        %v3722 = vpack.c.bf16 %v3688, %v3686
        %v3723 = vpack.c.bf16 %v3689, %v3687
        %v3724 = vpack.c.bf16 %v3692, %v3690
        %v3725 = vpack.c.bf16 %v3693, %v3691
        %v3726 = vld [vmem:[#allocation11] sm:$0xf]
        %v3727 = vld [vmem:[#allocation11 + $0x4] sm:$0xf]
        %v3728 = vld [vmem:[#allocation11 + $0x8] sm:$0xf]
        %v3729 = vld [vmem:[#allocation11 + $0xc] sm:$0xf]
        %v3730 = vld [vmem:[#allocation11 + $0x10] sm:$0xf]
        %v3731 = vld [vmem:[#allocation11 + $0x14] sm:$0xf]
        %v3732 = vld [vmem:[#allocation11 + $0x18] sm:$0xf]
        %v3733 = vld [vmem:[#allocation11 + $0x1c] sm:$0xf]
        %v3734 = vld [vmem:[#allocation11 + $0x20] sm:$0xf]
        %v3735 = vld [vmem:[#allocation11 + $0x24] sm:$0xf]
        %v3736 = vld [vmem:[#allocation11 + $0x28] sm:$0xf]
        %v3737 = vld [vmem:[#allocation11 + $0x2c] sm:$0xf]
        %v3738 = vld [vmem:[#allocation11 + $0x30] sm:$0xf]
        %v3739 = vld [vmem:[#allocation11 + $0x34] sm:$0xf]
        %v3740 = vld [vmem:[#allocation11 + $0x38] sm:$0xf]
        %v3741 = vld [vmem:[#allocation11 + $0x3c] sm:$0xf]
        %v3742 = vld [vmem:[#allocation11 + $0x40] sm:$0xf]
        %v3743 = vld [vmem:[#allocation11 + $0x44] sm:$0xf]
        %v3744 = vld [vmem:[#allocation11 + $0x48] sm:$0xf]
        %v3745 = vld [vmem:[#allocation11 + $0x4c] sm:$0xf]
        %v3746 = vld [vmem:[#allocation11 + $0x50] sm:$0xf]
        %v3747 = vld [vmem:[#allocation11 + $0x54] sm:$0xf]
        %v3748 = vld [vmem:[#allocation11 + $0x58] sm:$0xf]
        %v3749 = vld [vmem:[#allocation11 + $0x5c] sm:$0xf]
        %v3750 = vld [vmem:[#allocation11 + $0x60] sm:$0xf]
        %v3751 = vld [vmem:[#allocation11 + $0x64] sm:$0xf]
        %v3752 = vld [vmem:[#allocation11 + $0x68] sm:$0xf]
        %v3753 = vld [vmem:[#allocation11 + $0x6c] sm:$0xf]
        %v3754 = vld [vmem:[#allocation11 + $0x70] sm:$0xf]
        %v3755 = vld [vmem:[#allocation11 + $0x74] sm:$0xf]
        %v3756 = vld [vmem:[#allocation11 + $0x78] sm:$0xf]
        %v3757 = vld [vmem:[#allocation11 + $0x7c] sm:$0xf]
        %v3758 = vld [vmem:[#allocation13] sm:$0xf]
        %v3759 = vld [vmem:[#allocation13 + $0x4] sm:$0xf]
        %v3760 = vld [vmem:[#allocation13 + $0x8] sm:$0xf]
        %v3761 = vld [vmem:[#allocation13 + $0xc] sm:$0xf]
        %v3762 = vld [vmem:[#allocation13 + $0x10] sm:$0xf]
        %v3763 = vld [vmem:[#allocation13 + $0x14] sm:$0xf]
        %v3764 = vld [vmem:[#allocation13 + $0x18] sm:$0xf]
        %v3765 = vld [vmem:[#allocation13 + $0x1c] sm:$0xf]
        %v3766 = vld [vmem:[#allocation13 + $0x20] sm:$0xf]
        %v3767 = vld [vmem:[#allocation13 + $0x24] sm:$0xf]
        %v3768 = vld [vmem:[#allocation13 + $0x28] sm:$0xf]
        %v3769 = vld [vmem:[#allocation13 + $0x2c] sm:$0xf]
        %v3770 = vld [vmem:[#allocation13 + $0x30] sm:$0xf]
        %v3771 = vld [vmem:[#allocation13 + $0x34] sm:$0xf]
        %v3772 = vld [vmem:[#allocation13 + $0x38] sm:$0xf]
        %v3773 = vld [vmem:[#allocation13 + $0x3c] sm:$0xf]
        %v3774 = vld [vmem:[#allocation13 + $0x40] sm:$0xf]
        %v3775 = vld [vmem:[#allocation13 + $0x44] sm:$0xf]
        %v3776 = vld [vmem:[#allocation13 + $0x48] sm:$0xf]
        %v3777 = vld [vmem:[#allocation13 + $0x4c] sm:$0xf]
        %v3778 = vld [vmem:[#allocation13 + $0x50] sm:$0xf]
        %v3779 = vld [vmem:[#allocation13 + $0x54] sm:$0xf]
        %v3780 = vld [vmem:[#allocation13 + $0x58] sm:$0xf]
        %v3781 = vld [vmem:[#allocation13 + $0x5c] sm:$0xf]
        %v3782 = vld [vmem:[#allocation13 + $0x60] sm:$0xf]
        %v3783 = vld [vmem:[#allocation13 + $0x64] sm:$0xf]
        %v3784 = vld [vmem:[#allocation13 + $0x68] sm:$0xf]
        %v3785 = vld [vmem:[#allocation13 + $0x6c] sm:$0xf]
        %v3786 = vld [vmem:[#allocation13 + $0x70] sm:$0xf]
        %v3787 = vld [vmem:[#allocation13 + $0x74] sm:$0xf]
        %v3788 = vld [vmem:[#allocation13 + $0x78] sm:$0xf]
        %v3789 = vld [vmem:[#allocation13 + $0x7c] sm:$0xf]
        %v3790 = vld [vmem:[%s11] sm:$0x1]
        %v3823 = vunpack.c.l.b16 %v3726
        %v3824 = vunpack.c.l.b16 %v3727
        %v3825 = vunpack.c.l.b16 %v3728
        %v3826 = vunpack.c.l.b16 %v3729
        %v3827 = vunpack.c.l.b16 %v3730
        %v3828 = vunpack.c.l.b16 %v3731
        %v3829 = vunpack.c.l.b16 %v3732
        %v3830 = vunpack.c.l.b16 %v3733
        %v3831 = vunpack.c.l.b16 %v3734
        %v3832 = vunpack.c.l.b16 %v3735
        %v3833 = vunpack.c.l.b16 %v3736
        %v3834 = vunpack.c.l.b16 %v3737
        %v3835 = vunpack.c.l.b16 %v3738
        %v3836 = vunpack.c.l.b16 %v3739
        %v3837 = vunpack.c.l.b16 %v3740
        %v3838 = vunpack.c.l.b16 %v3741
        %v3839 = vunpack.c.l.b16 %v3742
        %v3840 = vunpack.c.l.b16 %v3743
        %v3841 = vunpack.c.l.b16 %v3744
        %v3842 = vunpack.c.l.b16 %v3745
        %v3843 = vunpack.c.l.b16 %v3746
        %v3844 = vunpack.c.l.b16 %v3747
        %v3845 = vunpack.c.l.b16 %v3748
        %v3846 = vunpack.c.l.b16 %v3749
        %v3847 = vunpack.c.l.b16 %v3750
        %v3848 = vunpack.c.l.b16 %v3751
        %v3849 = vunpack.c.l.b16 %v3752
        %v3850 = vunpack.c.l.b16 %v3753
        %v3851 = vunpack.c.l.b16 %v3754
        %v3852 = vunpack.c.l.b16 %v3755
        %v3853 = vunpack.c.l.b16 %v3756
        %v3854 = vunpack.c.l.b16 %v3757
        %v3855 = vpack.c.b16 %v3824, %v3823
        %v3856 = vpack.c.b16 %v3826, %v3825
        %v3857 = vpack.c.b16 %v3828, %v3827
        %v3858 = vpack.c.b16 %v3830, %v3829
        %v3859 = vpack.c.b16 %v3832, %v3831
        %v3860 = vpack.c.b16 %v3834, %v3833
        %v3861 = vpack.c.b16 %v3836, %v3835
        %v3862 = vpack.c.b16 %v3838, %v3837
        %v3863 = vpack.c.b16 %v3840, %v3839
        %v3864 = vpack.c.b16 %v3842, %v3841
        %v3865 = vpack.c.b16 %v3844, %v3843
        %v3866 = vpack.c.b16 %v3846, %v3845
        %v3867 = vpack.c.b16 %v3848, %v3847
        %v3868 = vpack.c.b16 %v3850, %v3849
        %v3869 = vpack.c.b16 %v3852, %v3851
        %v3870 = vpack.c.b16 %v3854, %v3853
        %3887 = vmatprep.subr.bf16.mxu0 0
        %3888 = vmatpush1.bf16.msra.mxu0 %v3855
        %3889 = vmatprep.subr.bf16.mxu0 0
        %3890 = vmatpush1.bf16.msra.mxu0 %v3856
        %3891 = vmatprep.subr.bf16.mxu0 0
        %3892 = vmatpush1.bf16.msra.mxu0 %v3857
        %3893 = vmatprep.subr.bf16.mxu0 0
        %3894 = vmatpush1.bf16.msra.mxu0 %v3858
        %3895 = vmatprep.subr.bf16.mxu0 0
        %3896 = vmatpush1.bf16.msra.mxu0 %v3859
        %3897 = vmatprep.subr.bf16.mxu0 0
        %3898 = vmatpush1.bf16.msra.mxu0 %v3860
        %3899 = vmatprep.subr.bf16.mxu0 0
        %3900 = vmatpush1.bf16.msra.mxu0 %v3861
        %3901 = vmatprep.subr.bf16.mxu0 0
        %3902 = vmatpush1.bf16.msra.mxu0 %v3862
        %3903 = vmatprep.subr.bf16.mxu0 0
        %3904 = vmatpush1.bf16.msra.mxu0 %v3863
        %3905 = vmatprep.subr.bf16.mxu0 0
        %3906 = vmatpush1.bf16.msra.mxu0 %v3864
        %3907 = vmatprep.subr.bf16.mxu0 0
        %3908 = vmatpush1.bf16.msra.mxu0 %v3865
        %3909 = vmatprep.subr.bf16.mxu0 0
        %3910 = vmatpush1.bf16.msra.mxu0 %v3866
        %3911 = vmatprep.subr.bf16.mxu0 0
        %3912 = vmatpush1.bf16.msra.mxu0 %v3867
        %3913 = vmatprep.subr.bf16.mxu0 0
        %3914 = vmatpush1.bf16.msra.mxu0 %v3868
        %3915 = vmatprep.subr.bf16.mxu0 0
        %3916 = vmatpush1.bf16.msra.mxu0 %v3869
        %3917 = vmatprep.subr.bf16.mxu0 0
        %3918 = vmatpush1.bf16.msra.mxu0 %v3870
        %3919 = vmatprep.mubr.bf16.mxu0 %v3695
        %3920 = vmatmul.mubr.bf16.gmra.mrb[0].mxu0 %v3694
        %v3921 = vpop.f32.mrb[0].mxu0
        %v3922 = vadd.f32 0.0, %v3921
        %v3923 = vpop.f32.mrb[0].mxu0
        %v3924 = vpop.f32.mrb[0].mxu0
        %v3925 = vadd.f32 0.0, %v3924
        %v3926 = vpop.f32.mrb[0].mxu0
        %3927 = vmatprep.mubr.bf16.mxu0 %v3697
        %3928 = vmatmul.mubr.bf16.gmra.mrb[0].mxu0 %v3696
        %v3929 = vpop.f32.mrb[0].mxu0
        %v3930 = vadd.f32 0.0, %v3929
        %v3931 = vpop.f32.mrb[0].mxu0
        %v3932 = vpop.f32.mrb[0].mxu0
        %v3933 = vadd.f32 0.0, %v3932
        %v3934 = vpop.f32.mrb[0].mxu0
        %3935 = vmatprep.mubr.bf16.mxu0 %v3699
        %3936 = vmatmul.mubr.bf16.gmra.mrb[0].mxu0 %v3698
        %v3937 = vpop.f32.mrb[0].mxu0
        %v3938 = vadd.f32 0.0, %v3937
        %v3939 = vpop.f32.mrb[0].mxu0
        %v3940 = vpop.f32.mrb[0].mxu0
        %v3941 = vadd.f32 0.0, %v3940
        %v3942 = vpop.f32.mrb[0].mxu0
        %3943 = vmatprep.mubr.bf16.mxu0 %v3701
        %3944 = vmatmul.mubr.bf16.gmra.mrb[0].mxu0 %v3700
        %v3945 = vpop.f32.mrb[0].mxu0
        %v3946 = vadd.f32 0.0, %v3945
        %v3947 = vpop.f32.mrb[0].mxu0
        %v3948 = vpop.f32.mrb[0].mxu0
        %v3949 = vadd.f32 0.0, %v3948
        %v3950 = vpop.f32.mrb[0].mxu0
        %3951 = vmatprep.mubr.bf16.mxu0 %v3703
        %3952 = vmatmul.mubr.bf16.gmra.mrb[0].mxu0 %v3702
        %v3953 = vpop.f32.mrb[0].mxu0
        %v3954 = vadd.f32 0.0, %v3953
        %v3955 = vpop.f32.mrb[0].mxu0
        %v3956 = vpop.f32.mrb[0].mxu0
        %v3957 = vadd.f32 0.0, %v3956
        %v3958 = vpop.f32.mrb[0].mxu0
        %3959 = vmatprep.mubr.bf16.mxu0 %v3705
        %3960 = vmatmul.mubr.bf16.gmra.mrb[0].mxu0 %v3704
        %v3961 = vpop.f32.mrb[0].mxu0
        %v3962 = vadd.f32 0.0, %v3961
        %v3963 = vpop.f32.mrb[0].mxu0
        %v3964 = vpop.f32.mrb[0].mxu0
        %v3965 = vadd.f32 0.0, %v3964
        %v3966 = vpop.f32.mrb[0].mxu0
        %3967 = vmatprep.mubr.bf16.mxu0 %v3707
        %3968 = vmatmul.mubr.bf16.gmra.mrb[0].mxu0 %v3706
        %v3969 = vpop.f32.mrb[0].mxu0
        %v3970 = vadd.f32 0.0, %v3969
        %v3971 = vpop.f32.mrb[0].mxu0
        %v3972 = vpop.f32.mrb[0].mxu0
        %v3973 = vadd.f32 0.0, %v3972
        %v3974 = vpop.f32.mrb[0].mxu0
        %3975 = vmatprep.mubr.bf16.mxu0 %v3709
        %3976 = vmatmul.mubr.bf16.gmra.mrb[0].mxu0 %v3708
        %v3977 = vpop.f32.mrb[0].mxu0
        %v3978 = vadd.f32 0.0, %v3977
        %v3979 = vpop.f32.mrb[0].mxu0
        %v3980 = vpop.f32.mrb[0].mxu0
        %v3981 = vadd.f32 0.0, %v3980
        %v3982 = vpop.f32.mrb[0].mxu0
        %3983 = vmatprep.mubr.bf16.mxu0 %v3711
        %3984 = vmatmul.mubr.bf16.gmra.mrb[0].mxu0 %v3710
        %v3985 = vpop.f32.mrb[0].mxu0
        %v3986 = vadd.f32 0.0, %v3985
        %v3987 = vpop.f32.mrb[0].mxu0
        %v3988 = vpop.f32.mrb[0].mxu0
        %v3989 = vadd.f32 0.0, %v3988
        %v3990 = vpop.f32.mrb[0].mxu0
        %3991 = vmatprep.mubr.bf16.mxu0 %v3713
        %3992 = vmatmul.mubr.bf16.gmra.mrb[0].mxu0 %v3712
        %v3993 = vpop.f32.mrb[0].mxu0
        %v3994 = vadd.f32 0.0, %v3993
        %v3995 = vpop.f32.mrb[0].mxu0
        %v3996 = vpop.f32.mrb[0].mxu0
        %v3997 = vadd.f32 0.0, %v3996
        %v3998 = vpop.f32.mrb[0].mxu0
        %3999 = vmatprep.mubr.bf16.mxu0 %v3715
        %4000 = vmatmul.mubr.bf16.gmra.mrb[0].mxu0 %v3714
        %v4001 = vpop.f32.mrb[0].mxu0
        %v4002 = vadd.f32 0.0, %v4001
        %v4003 = vpop.f32.mrb[0].mxu0
        %v4004 = vpop.f32.mrb[0].mxu0
        %v4005 = vadd.f32 0.0, %v4004
        %v4006 = vpop.f32.mrb[0].mxu0
        %4007 = vmatprep.mubr.bf16.mxu0 %v3717
        %4008 = vmatmul.mubr.bf16.gmra.mrb[0].mxu0 %v3716
        %v4009 = vpop.f32.mrb[0].mxu0
        %v4010 = vadd.f32 0.0, %v4009
        %v4011 = vpop.f32.mrb[0].mxu0
        %v4012 = vpop.f32.mrb[0].mxu0
        %v4013 = vadd.f32 0.0, %v4012
        %v4014 = vpop.f32.mrb[0].mxu0
        %4015 = vmatprep.mubr.bf16.mxu0 %v3719
        %4016 = vmatmul.mubr.bf16.gmra.mrb[0].mxu0 %v3718
        %v4017 = vpop.f32.mrb[0].mxu0
        %v4018 = vadd.f32 0.0, %v4017
        %v4019 = vpop.f32.mrb[0].mxu0
        %v4020 = vpop.f32.mrb[0].mxu0
        %v4021 = vadd.f32 0.0, %v4020
        %v4022 = vpop.f32.mrb[0].mxu0
        %4023 = vmatprep.mubr.bf16.mxu0 %v3721
        %4024 = vmatmul.mubr.bf16.gmra.mrb[0].mxu0 %v3720
        %v4025 = vpop.f32.mrb[0].mxu0
        %v4026 = vadd.f32 0.0, %v4025
        %v4027 = vpop.f32.mrb[0].mxu0
        %v4028 = vpop.f32.mrb[0].mxu0
        %v4029 = vadd.f32 0.0, %v4028
        %v4030 = vpop.f32.mrb[0].mxu0
        %4031 = vmatprep.mubr.bf16.mxu0 %v3723
        %4032 = vmatmul.mubr.bf16.gmra.mrb[0].mxu0 %v3722
        %v4033 = vpop.f32.mrb[0].mxu0
        %v4034 = vadd.f32 0.0, %v4033
        %v4035 = vpop.f32.mrb[0].mxu0
        %v4036 = vpop.f32.mrb[0].mxu0
        %v4037 = vadd.f32 0.0, %v4036
        %v4038 = vpop.f32.mrb[0].mxu0
        %4039 = vmatprep.mubr.bf16.mxu0 %v3725
        %4040 = vmatmul.mubr.bf16.gmra.mrb[0].mxu0 %v3724
        %v4041 = vpop.f32.mrb[0].mxu0
        %v4042 = vadd.f32 0.0, %v4041
        %v4043 = vpop.f32.mrb[0].mxu0
        %v4044 = vpop.f32.mrb[0].mxu0
        %v4045 = vadd.f32 0.0, %v4044
        %v4046 = vpop.f32.mrb[0].mxu0
        %4047 = vdwg.mxu0
        %v4048 = vpack.c.bf16 %v3925, %v3922
        %v4049 = vpack.c.bf16 %v3933, %v3930
        %v4050 = vpack.c.bf16 %v3941, %v3938
        %v4051 = vpack.c.bf16 %v3949, %v3946
        %v4052 = vpack.c.bf16 %v3957, %v3954
        %v4053 = vpack.c.bf16 %v3965, %v3962
        %v4054 = vpack.c.bf16 %v3973, %v3970
        %v4055 = vpack.c.bf16 %v3981, %v3978
        %v4056 = vpack.c.bf16 %v3989, %v3986
        %v4057 = vpack.c.bf16 %v3997, %v3994
        %v4058 = vpack.c.bf16 %v4005, %v4002
        %v4059 = vpack.c.bf16 %v4013, %v4010
        %v4060 = vpack.c.bf16 %v4021, %v4018
        %v4061 = vpack.c.bf16 %v4029, %v4026
        %v4062 = vpack.c.bf16 %v4037, %v4034
        %v4063 = vpack.c.bf16 %v4045, %v4042
        %4064 = vmatprep.subr.bf16.mxu0 0
        %4065 = vmatpush1.bf16.msra.mxu0 %v4048
        %4066 = vmatprep.subr.bf16.mxu0 0
        %4067 = vmatpush1.bf16.msra.mxu0 %v4049
        %4068 = vmatprep.subr.bf16.mxu0 0
        %4069 = vmatpush1.bf16.msra.mxu0 %v4050
        %4070 = vmatprep.subr.bf16.mxu0 0
        %4071 = vmatpush1.bf16.msra.mxu0 %v4051
        %4072 = vmatprep.subr.bf16.mxu0 0
        %4073 = vmatpush1.bf16.msra.mxu0 %v4052
        %4074 = vmatprep.subr.bf16.mxu0 0
        %4075 = vmatpush1.bf16.msra.mxu0 %v4053
        %4076 = vmatprep.subr.bf16.mxu0 0
        %4077 = vmatpush1.bf16.msra.mxu0 %v4054
        %4078 = vmatprep.subr.bf16.mxu0 0
        %4079 = vmatpush1.bf16.msra.mxu0 %v4055
        %4080 = vmatprep.subr.bf16.mxu0 0
        %4081 = vmatpush1.bf16.msra.mxu0 %v4056
        %4082 = vmatprep.subr.bf16.mxu0 0
        %4083 = vmatpush1.bf16.msra.mxu0 %v4057
        %4084 = vmatprep.subr.bf16.mxu0 0
        %4085 = vmatpush1.bf16.msra.mxu0 %v4058
        %4086 = vmatprep.subr.bf16.mxu0 0
        %4087 = vmatpush1.bf16.msra.mxu0 %v4059
        %4088 = vmatprep.subr.bf16.mxu0 0
        %4089 = vmatpush1.bf16.msra.mxu0 %v4060
        %4090 = vmatprep.subr.bf16.mxu0 0
        %4091 = vmatpush1.bf16.msra.mxu0 %v4061
        %4092 = vmatprep.subr.bf16.mxu0 0
        %4093 = vmatpush1.bf16.msra.mxu0 %v4062
        %4094 = vmatprep.subr.bf16.mxu0 0
        %4095 = vmatpush1.bf16.msra.mxu0 %v4063
        %4096 = vmatprep.mubr.bf16.mxu0 %v818
        %4097 = vmatmul.mubr.bf16.gmra.mrb[0].mxu0 %v817
        %v4098 = vpop.f32.mrb[0].mxu0
        %v4099 = vadd.f32 0.0, %v4098
        %v4100 = vpop.f32.mrb[0].mxu0
        %v4101 = vpop.f32.mrb[0].mxu0
        %v4102 = vadd.f32 0.0, %v4101
        %v4103 = vpop.f32.mrb[0].mxu0
        %4104 = vmatprep.mubr.bf16.mxu0 %v820
        %4105 = vmatmul.mubr.bf16.gmra.mrb[0].mxu0 %v819
        %v4106 = vpop.f32.mrb[0].mxu0
        %v4107 = vadd.f32 0.0, %v4106
        %v4108 = vpop.f32.mrb[0].mxu0
        %v4109 = vpop.f32.mrb[0].mxu0
        %v4110 = vadd.f32 0.0, %v4109
        %v4111 = vpop.f32.mrb[0].mxu0
        %4112 = vmatprep.mubr.bf16.mxu0 %v822
        %4113 = vmatmul.mubr.bf16.gmra.mrb[0].mxu0 %v821
        %v4114 = vpop.f32.mrb[0].mxu0
        %v4115 = vadd.f32 0.0, %v4114
        %v4116 = vpop.f32.mrb[0].mxu0
        %v4117 = vpop.f32.mrb[0].mxu0
        %v4118 = vadd.f32 0.0, %v4117
        %v4119 = vpop.f32.mrb[0].mxu0
        %4120 = vmatprep.mubr.bf16.mxu0 %v824
        %4121 = vmatmul.mubr.bf16.gmra.mrb[0].mxu0 %v823
        %v4122 = vpop.f32.mrb[0].mxu0
        %v4123 = vadd.f32 0.0, %v4122
        %v4124 = vpop.f32.mrb[0].mxu0
        %v4125 = vpop.f32.mrb[0].mxu0
        %v4126 = vadd.f32 0.0, %v4125
        %v4127 = vpop.f32.mrb[0].mxu0
        %4128 = vmatprep.mubr.bf16.mxu0 %v826
        %4129 = vmatmul.mubr.bf16.gmra.mrb[0].mxu0 %v825
        %v4130 = vpop.f32.mrb[0].mxu0
        %v4131 = vadd.f32 0.0, %v4130
        %v4132 = vpop.f32.mrb[0].mxu0
        %v4133 = vpop.f32.mrb[0].mxu0
        %v4134 = vadd.f32 0.0, %v4133
        %v4135 = vpop.f32.mrb[0].mxu0
        %4136 = vmatprep.mubr.bf16.mxu0 %v828
        %4137 = vmatmul.mubr.bf16.gmra.mrb[0].mxu0 %v827
        %v4138 = vpop.f32.mrb[0].mxu0
        %v4139 = vadd.f32 0.0, %v4138
        %v4140 = vpop.f32.mrb[0].mxu0
        %v4141 = vpop.f32.mrb[0].mxu0
        %v4142 = vadd.f32 0.0, %v4141
        %v4143 = vpop.f32.mrb[0].mxu0
        %4144 = vmatprep.mubr.bf16.mxu0 %v830
        %4145 = vmatmul.mubr.bf16.gmra.mrb[0].mxu0 %v829
        %v4146 = vpop.f32.mrb[0].mxu0
        %v4147 = vadd.f32 0.0, %v4146
        %v4148 = vpop.f32.mrb[0].mxu0
        %v4149 = vpop.f32.mrb[0].mxu0
        %v4150 = vadd.f32 0.0, %v4149
        %v4151 = vpop.f32.mrb[0].mxu0
        %4152 = vmatprep.mubr.bf16.mxu0 %v832
        %4153 = vmatmul.mubr.bf16.gmra.mrb[0].mxu0 %v831
        %v4154 = vpop.f32.mrb[0].mxu0
        %v4155 = vadd.f32 0.0, %v4154
        %v4156 = vpop.f32.mrb[0].mxu0
        %v4157 = vpop.f32.mrb[0].mxu0
        %v4158 = vadd.f32 0.0, %v4157
        %v4159 = vpop.f32.mrb[0].mxu0
        %4160 = vmatprep.mubr.bf16.mxu0 %v834
        %4161 = vmatmul.mubr.bf16.gmra.mrb[0].mxu0 %v833
        %v4162 = vpop.f32.mrb[0].mxu0
        %v4163 = vadd.f32 0.0, %v4162
        %v4164 = vpop.f32.mrb[0].mxu0
        %v4165 = vpop.f32.mrb[0].mxu0
        %v4166 = vadd.f32 0.0, %v4165
        %v4167 = vpop.f32.mrb[0].mxu0
        %4168 = vmatprep.mubr.bf16.mxu0 %v836
        %4169 = vmatmul.mubr.bf16.gmra.mrb[0].mxu0 %v835
        %v4170 = vpop.f32.mrb[0].mxu0
        %v4171 = vadd.f32 0.0, %v4170
        %v4172 = vpop.f32.mrb[0].mxu0
        %v4173 = vpop.f32.mrb[0].mxu0
        %v4174 = vadd.f32 0.0, %v4173
        %v4175 = vpop.f32.mrb[0].mxu0
        %4176 = vmatprep.mubr.bf16.mxu0 %v838
        %4177 = vmatmul.mubr.bf16.gmra.mrb[0].mxu0 %v837
        %v4178 = vpop.f32.mrb[0].mxu0
        %v4179 = vadd.f32 0.0, %v4178
        %v4180 = vpop.f32.mrb[0].mxu0
        %v4181 = vpop.f32.mrb[0].mxu0
        %v4182 = vadd.f32 0.0, %v4181
        %v4183 = vpop.f32.mrb[0].mxu0
        %4184 = vmatprep.mubr.bf16.mxu0 %v840
        %4185 = vmatmul.mubr.bf16.gmra.mrb[0].mxu0 %v839
        %v4186 = vpop.f32.mrb[0].mxu0
        %v4187 = vadd.f32 0.0, %v4186
        %v4188 = vpop.f32.mrb[0].mxu0
        %v4189 = vpop.f32.mrb[0].mxu0
        %v4190 = vadd.f32 0.0, %v4189
        %v4191 = vpop.f32.mrb[0].mxu0
        %4192 = vmatprep.mubr.bf16.mxu0 %v842
        %4193 = vmatmul.mubr.bf16.gmra.mrb[0].mxu0 %v841
        %v4194 = vpop.f32.mrb[0].mxu0
        %v4195 = vadd.f32 0.0, %v4194
        %v4196 = vpop.f32.mrb[0].mxu0
        %v4197 = vpop.f32.mrb[0].mxu0
        %v4198 = vadd.f32 0.0, %v4197
        %v4199 = vpop.f32.mrb[0].mxu0
        %4200 = vmatprep.mubr.bf16.mxu0 %v844
        %4201 = vmatmul.mubr.bf16.gmra.mrb[0].mxu0 %v843
        %v4202 = vpop.f32.mrb[0].mxu0
        %v4203 = vadd.f32 0.0, %v4202
        %v4204 = vpop.f32.mrb[0].mxu0
        %v4205 = vpop.f32.mrb[0].mxu0
        %v4206 = vadd.f32 0.0, %v4205
        %v4207 = vpop.f32.mrb[0].mxu0
        %4208 = vmatprep.mubr.bf16.mxu0 %v846
        %4209 = vmatmul.mubr.bf16.gmra.mrb[0].mxu0 %v845
        %v4210 = vpop.f32.mrb[0].mxu0
        %v4211 = vadd.f32 0.0, %v4210
        %v4212 = vpop.f32.mrb[0].mxu0
        %v4213 = vpop.f32.mrb[0].mxu0
        %v4214 = vadd.f32 0.0, %v4213
        %v4215 = vpop.f32.mrb[0].mxu0
        %4216 = vmatprep.mubr.bf16.mxu0 %v848
        %4217 = vmatmul.mubr.bf16.gmra.mrb[0].mxu0 %v847
        %v4218 = vpop.f32.mrb[0].mxu0
        %v4219 = vadd.f32 0.0, %v4218
        %v4220 = vpop.f32.mrb[0].mxu0
        %v4221 = vpop.f32.mrb[0].mxu0
        %v4222 = vadd.f32 0.0, %v4221
        %v4223 = vpop.f32.mrb[0].mxu0
        %4224 = vdwg.mxu0
        %v4225 = vmul.f32 %v1622, %v4099
        %v4226 = vmul.f32 %v1627, %v4102
        %v4227 = vmul.f32 %v1632, %v4107
        %v4228 = vmul.f32 %v1637, %v4110
        %v4229 = vmul.f32 %v1642, %v4115
        %v4230 = vmul.f32 %v1647, %v4118
        %v4231 = vmul.f32 %v1652, %v4123
        %v4232 = vmul.f32 %v1657, %v4126
        %v4233 = vmul.f32 %v1662, %v4131
        %v4234 = vmul.f32 %v1667, %v4134
        %v4235 = vmul.f32 %v1672, %v4139
        %v4236 = vmul.f32 %v1677, %v4142
        %v4237 = vmul.f32 %v1682, %v4147
        %v4238 = vmul.f32 %v1687, %v4150
        %v4239 = vmul.f32 %v1692, %v4155
        %v4240 = vmul.f32 %v1697, %v4158
        %v4241 = vmul.f32 %v1702, %v4163
        %v4242 = vmul.f32 %v1707, %v4166
        %v4243 = vmul.f32 %v1712, %v4171
        %v4244 = vmul.f32 %v1717, %v4174
        %v4245 = vmul.f32 %v1722, %v4179
        %v4246 = vmul.f32 %v1727, %v4182
        %v4247 = vmul.f32 %v1732, %v4187
        %v4248 = vmul.f32 %v1737, %v4190
        %v4249 = vmul.f32 %v1742, %v4195
        %v4250 = vmul.f32 %v1747, %v4198
        %v4251 = vmul.f32 %v1752, %v4203
        %v4252 = vmul.f32 %v1757, %v4206
        %v4253 = vmul.f32 %v1762, %v4211
        %v4254 = vmul.f32 %v1767, %v4214
        %v4255 = vmul.f32 %v1772, %v4219
        %v4256 = vmul.f32 %v1777, %v4222
        %v4289 = vunpack.c.l.b16 %v3758
        %v4290 = vunpack.c.l.b16 %v3759
        %v4291 = vunpack.c.l.b16 %v3760
        %v4292 = vunpack.c.l.b16 %v3761
        %v4293 = vunpack.c.l.b16 %v3762
        %v4294 = vunpack.c.l.b16 %v3763
        %v4295 = vunpack.c.l.b16 %v3764
        %v4296 = vunpack.c.l.b16 %v3765
        %v4297 = vunpack.c.l.b16 %v3766
        %v4298 = vunpack.c.l.b16 %v3767
        %v4299 = vunpack.c.l.b16 %v3768
        %v4300 = vunpack.c.l.b16 %v3769
        %v4301 = vunpack.c.l.b16 %v3770
        %v4302 = vunpack.c.l.b16 %v3771
        %v4303 = vunpack.c.l.b16 %v3772
        %v4304 = vunpack.c.l.b16 %v3773
        %v4305 = vunpack.c.l.b16 %v3774
        %v4306 = vunpack.c.l.b16 %v3775
        %v4307 = vunpack.c.l.b16 %v3776
        %v4308 = vunpack.c.l.b16 %v3777
        %v4309 = vunpack.c.l.b16 %v3778
        %v4310 = vunpack.c.l.b16 %v3779
        %v4311 = vunpack.c.l.b16 %v3780
        %v4312 = vunpack.c.l.b16 %v3781
        %v4313 = vunpack.c.l.b16 %v3782
        %v4314 = vunpack.c.l.b16 %v3783
        %v4315 = vunpack.c.l.b16 %v3784
        %v4316 = vunpack.c.l.b16 %v3785
        %v4317 = vunpack.c.l.b16 %v3786
        %v4318 = vunpack.c.l.b16 %v3787
        %v4319 = vunpack.c.l.b16 %v3788
        %v4320 = vunpack.c.l.b16 %v3789
        %v4321 = vpack.c.b16 %v4290, %v4289
        %v4322 = vpack.c.b16 %v4292, %v4291
        %v4323 = vpack.c.b16 %v4294, %v4293
        %v4324 = vpack.c.b16 %v4296, %v4295
        %v4325 = vpack.c.b16 %v4298, %v4297
        %v4326 = vpack.c.b16 %v4300, %v4299
        %v4327 = vpack.c.b16 %v4302, %v4301
        %v4328 = vpack.c.b16 %v4304, %v4303
        %v4329 = vpack.c.b16 %v4306, %v4305
        %v4330 = vpack.c.b16 %v4308, %v4307
        %v4331 = vpack.c.b16 %v4310, %v4309
        %v4332 = vpack.c.b16 %v4312, %v4311
        %v4333 = vpack.c.b16 %v4314, %v4313
        %v4334 = vpack.c.b16 %v4316, %v4315
        %v4335 = vpack.c.b16 %v4318, %v4317
        %v4336 = vpack.c.b16 %v4320, %v4319
        %4353 = vmatprep.subr.bf16.mxu0 0
        %4354 = vmatpush1.bf16.msra.mxu0 %v4321
        %4355 = vmatprep.subr.bf16.mxu0 0
        %4356 = vmatpush1.bf16.msra.mxu0 %v4322
        %4357 = vmatprep.subr.bf16.mxu0 0
        %4358 = vmatpush1.bf16.msra.mxu0 %v4323
        %4359 = vmatprep.subr.bf16.mxu0 0
        %4360 = vmatpush1.bf16.msra.mxu0 %v4324
        %4361 = vmatprep.subr.bf16.mxu0 0
        %4362 = vmatpush1.bf16.msra.mxu0 %v4325
        %4363 = vmatprep.subr.bf16.mxu0 0
        %4364 = vmatpush1.bf16.msra.mxu0 %v4326
        %4365 = vmatprep.subr.bf16.mxu0 0
        %4366 = vmatpush1.bf16.msra.mxu0 %v4327
        %4367 = vmatprep.subr.bf16.mxu0 0
        %4368 = vmatpush1.bf16.msra.mxu0 %v4328
        %4369 = vmatprep.subr.bf16.mxu0 0
        %4370 = vmatpush1.bf16.msra.mxu0 %v4329
        %4371 = vmatprep.subr.bf16.mxu0 0
        %4372 = vmatpush1.bf16.msra.mxu0 %v4330
        %4373 = vmatprep.subr.bf16.mxu0 0
        %4374 = vmatpush1.bf16.msra.mxu0 %v4331
        %4375 = vmatprep.subr.bf16.mxu0 0
        %4376 = vmatpush1.bf16.msra.mxu0 %v4332
        %4377 = vmatprep.subr.bf16.mxu0 0
        %4378 = vmatpush1.bf16.msra.mxu0 %v4333
        %4379 = vmatprep.subr.bf16.mxu0 0
        %4380 = vmatpush1.bf16.msra.mxu0 %v4334
        %4381 = vmatprep.subr.bf16.mxu0 0
        %4382 = vmatpush1.bf16.msra.mxu0 %v4335
        %4383 = vmatprep.subr.bf16.mxu0 0
        %4384 = vmatpush1.bf16.msra.mxu0 %v4336
        %4385 = vmatprep.mubr.bf16.mxu0 %v3695
        %4386 = vmatmul.mubr.bf16.gmra.mrb[0].mxu0 %v3694
        %v4387 = vpop.f32.mrb[0].mxu0
        %v4388 = vadd.f32 0.0, %v4387
        %v4389 = vpop.f32.mrb[0].mxu0
        %v4390 = vpop.f32.mrb[0].mxu0
        %v4391 = vadd.f32 0.0, %v4390
        %v4392 = vpop.f32.mrb[0].mxu0
        %4393 = vmatprep.mubr.bf16.mxu0 %v3697
        %4394 = vmatmul.mubr.bf16.gmra.mrb[0].mxu0 %v3696
        %v4395 = vpop.f32.mrb[0].mxu0
        %v4396 = vadd.f32 0.0, %v4395
        %v4397 = vpop.f32.mrb[0].mxu0
        %v4398 = vpop.f32.mrb[0].mxu0
        %v4399 = vadd.f32 0.0, %v4398
        %v4400 = vpop.f32.mrb[0].mxu0
        %4401 = vmatprep.mubr.bf16.mxu0 %v3699
        %4402 = vmatmul.mubr.bf16.gmra.mrb[0].mxu0 %v3698
        %v4403 = vpop.f32.mrb[0].mxu0
        %v4404 = vadd.f32 0.0, %v4403
        %v4405 = vpop.f32.mrb[0].mxu0
        %v4406 = vpop.f32.mrb[0].mxu0
        %v4407 = vadd.f32 0.0, %v4406
        %v4408 = vpop.f32.mrb[0].mxu0
        %4409 = vmatprep.mubr.bf16.mxu0 %v3701
        %4410 = vmatmul.mubr.bf16.gmra.mrb[0].mxu0 %v3700
        %v4411 = vpop.f32.mrb[0].mxu0
        %v4412 = vadd.f32 0.0, %v4411
        %v4413 = vpop.f32.mrb[0].mxu0
        %v4414 = vpop.f32.mrb[0].mxu0
        %v4415 = vadd.f32 0.0, %v4414
        %v4416 = vpop.f32.mrb[0].mxu0
        %4417 = vmatprep.mubr.bf16.mxu0 %v3703
        %4418 = vmatmul.mubr.bf16.gmra.mrb[0].mxu0 %v3702
        %v4419 = vpop.f32.mrb[0].mxu0
        %v4420 = vadd.f32 0.0, %v4419
        %v4421 = vpop.f32.mrb[0].mxu0
        %v4422 = vpop.f32.mrb[0].mxu0
        %v4423 = vadd.f32 0.0, %v4422
        %v4424 = vpop.f32.mrb[0].mxu0
        %4425 = vmatprep.mubr.bf16.mxu0 %v3705
        %4426 = vmatmul.mubr.bf16.gmra.mrb[0].mxu0 %v3704
        %v4427 = vpop.f32.mrb[0].mxu0
        %v4428 = vadd.f32 0.0, %v4427
        %v4429 = vpop.f32.mrb[0].mxu0
        %v4430 = vpop.f32.mrb[0].mxu0
        %v4431 = vadd.f32 0.0, %v4430
        %v4432 = vpop.f32.mrb[0].mxu0
        %4433 = vmatprep.mubr.bf16.mxu0 %v3707
        %4434 = vmatmul.mubr.bf16.gmra.mrb[0].mxu0 %v3706
        %v4435 = vpop.f32.mrb[0].mxu0
        %v4436 = vadd.f32 0.0, %v4435
        %v4437 = vpop.f32.mrb[0].mxu0
        %v4438 = vpop.f32.mrb[0].mxu0
        %v4439 = vadd.f32 0.0, %v4438
        %v4440 = vpop.f32.mrb[0].mxu0
        %4441 = vmatprep.mubr.bf16.mxu0 %v3709
        %4442 = vmatmul.mubr.bf16.gmra.mrb[0].mxu0 %v3708
        %v4443 = vpop.f32.mrb[0].mxu0
        %v4444 = vadd.f32 0.0, %v4443
        %v4445 = vpop.f32.mrb[0].mxu0
        %v4446 = vpop.f32.mrb[0].mxu0
        %v4447 = vadd.f32 0.0, %v4446
        %v4448 = vpop.f32.mrb[0].mxu0
        %4449 = vmatprep.mubr.bf16.mxu0 %v3711
        %4450 = vmatmul.mubr.bf16.gmra.mrb[0].mxu0 %v3710
        %v4451 = vpop.f32.mrb[0].mxu0
        %v4452 = vadd.f32 0.0, %v4451
        %v4453 = vpop.f32.mrb[0].mxu0
        %v4454 = vpop.f32.mrb[0].mxu0
        %v4455 = vadd.f32 0.0, %v4454
        %v4456 = vpop.f32.mrb[0].mxu0
        %4457 = vmatprep.mubr.bf16.mxu0 %v3713
        %4458 = vmatmul.mubr.bf16.gmra.mrb[0].mxu0 %v3712
        %v4459 = vpop.f32.mrb[0].mxu0
        %v4460 = vadd.f32 0.0, %v4459
        %v4461 = vpop.f32.mrb[0].mxu0
        %v4462 = vpop.f32.mrb[0].mxu0
        %v4463 = vadd.f32 0.0, %v4462
        %v4464 = vpop.f32.mrb[0].mxu0
        %4465 = vmatprep.mubr.bf16.mxu0 %v3715
        %4466 = vmatmul.mubr.bf16.gmra.mrb[0].mxu0 %v3714
        %v4467 = vpop.f32.mrb[0].mxu0
        %v4468 = vadd.f32 0.0, %v4467
        %v4469 = vpop.f32.mrb[0].mxu0
        %v4470 = vpop.f32.mrb[0].mxu0
        %v4471 = vadd.f32 0.0, %v4470
        %v4472 = vpop.f32.mrb[0].mxu0
        %4473 = vmatprep.mubr.bf16.mxu0 %v3717
        %4474 = vmatmul.mubr.bf16.gmra.mrb[0].mxu0 %v3716
        %v4475 = vpop.f32.mrb[0].mxu0
        %v4476 = vadd.f32 0.0, %v4475
        %v4477 = vpop.f32.mrb[0].mxu0
        %v4478 = vpop.f32.mrb[0].mxu0
        %v4479 = vadd.f32 0.0, %v4478
        %v4480 = vpop.f32.mrb[0].mxu0
        %4481 = vmatprep.mubr.bf16.mxu0 %v3719
        %4482 = vmatmul.mubr.bf16.gmra.mrb[0].mxu0 %v3718
        %v4483 = vpop.f32.mrb[0].mxu0
        %v4484 = vadd.f32 0.0, %v4483
        %v4485 = vpop.f32.mrb[0].mxu0
        %v4486 = vpop.f32.mrb[0].mxu0
        %v4487 = vadd.f32 0.0, %v4486
        %v4488 = vpop.f32.mrb[0].mxu0
        %4489 = vmatprep.mubr.bf16.mxu0 %v3721
        %4490 = vmatmul.mubr.bf16.gmra.mrb[0].mxu0 %v3720
        %v4491 = vpop.f32.mrb[0].mxu0
        %v4492 = vadd.f32 0.0, %v4491
        %v4493 = vpop.f32.mrb[0].mxu0
        %v4494 = vpop.f32.mrb[0].mxu0
        %v4495 = vadd.f32 0.0, %v4494
        %v4496 = vpop.f32.mrb[0].mxu0
        %4497 = vmatprep.mubr.bf16.mxu0 %v3723
        %4498 = vmatmul.mubr.bf16.gmra.mrb[0].mxu0 %v3722
        %v4499 = vpop.f32.mrb[0].mxu0
        %v4500 = vadd.f32 0.0, %v4499
        %v4501 = vpop.f32.mrb[0].mxu0
        %v4502 = vpop.f32.mrb[0].mxu0
        %v4503 = vadd.f32 0.0, %v4502
        %v4504 = vpop.f32.mrb[0].mxu0
        %4505 = vmatprep.mubr.bf16.mxu0 %v3725
        %4506 = vmatmul.mubr.bf16.gmra.mrb[0].mxu0 %v3724
        %v4507 = vpop.f32.mrb[0].mxu0
        %v4508 = vadd.f32 0.0, %v4507
        %v4509 = vpop.f32.mrb[0].mxu0
        %v4510 = vpop.f32.mrb[0].mxu0
        %v4511 = vadd.f32 0.0, %v4510
        %v4512 = vpop.f32.mrb[0].mxu0
        %4513 = vdwg.mxu0
        %v4514 = vadd.f32 %v4225, %v4388
        %v4515 = vadd.f32 %v4226, %v4391
        %v4516 = vadd.f32 %v4227, %v4396
        %v4517 = vadd.f32 %v4228, %v4399
        %v4518 = vadd.f32 %v4229, %v4404
        %v4519 = vadd.f32 %v4230, %v4407
        %v4520 = vadd.f32 %v4231, %v4412
        %v4521 = vadd.f32 %v4232, %v4415
        %v4522 = vadd.f32 %v4233, %v4420
        %v4523 = vadd.f32 %v4234, %v4423
        %v4524 = vadd.f32 %v4235, %v4428
        %v4525 = vadd.f32 %v4236, %v4431
        %v4526 = vadd.f32 %v4237, %v4436
        %v4527 = vadd.f32 %v4238, %v4439
        %v4528 = vadd.f32 %v4239, %v4444
        %v4529 = vadd.f32 %v4240, %v4447
        %v4530 = vadd.f32 %v4241, %v4452
        %v4531 = vadd.f32 %v4242, %v4455
        %v4532 = vadd.f32 %v4243, %v4460
        %v4533 = vadd.f32 %v4244, %v4463
        %v4534 = vadd.f32 %v4245, %v4468
        %v4535 = vadd.f32 %v4246, %v4471
        %v4536 = vadd.f32 %v4247, %v4476
        %v4537 = vadd.f32 %v4248, %v4479
        %v4538 = vadd.f32 %v4249, %v4484
        %v4539 = vadd.f32 %v4250, %v4487
        %v4540 = vadd.f32 %v4251, %v4492
        %v4541 = vadd.f32 %v4252, %v4495
        %v4542 = vadd.f32 %v4253, %v4500
        %v4543 = vadd.f32 %v4254, %v4503
        %v4544 = vadd.f32 %v4255, %v4508
        %v4545 = vadd.f32 %v4256, %v4511
        %v4547 = vlaneseq
        %v4548 = vshrl.u32 %v4547, 7
        %v4549 = vsub.s32 0, %v4548
        %v4550 = vrot.slane %v3790, %v4549
        %v4552 = vadd.f32 %v4514, %v4550
        %v4553 = vadd.f32 %v4515, %v4550
        %v4554 = vadd.f32 %v4516, %v4550
        %v4555 = vadd.f32 %v4517, %v4550
        %v4556 = vadd.f32 %v4518, %v4550
        %v4557 = vadd.f32 %v4519, %v4550
        %v4558 = vadd.f32 %v4520, %v4550
        %v4559 = vadd.f32 %v4521, %v4550
        %v4560 = vadd.f32 %v4522, %v4550
        %v4561 = vadd.f32 %v4523, %v4550
        %v4562 = vadd.f32 %v4524, %v4550
        %v4563 = vadd.f32 %v4525, %v4550
        %v4564 = vadd.f32 %v4526, %v4550
        %v4565 = vadd.f32 %v4527, %v4550
        %v4566 = vadd.f32 %v4528, %v4550
        %v4567 = vadd.f32 %v4529, %v4550
        %v4568 = vadd.f32 %v4530, %v4550
        %v4569 = vadd.f32 %v4531, %v4550
        %v4570 = vadd.f32 %v4532, %v4550
        %v4571 = vadd.f32 %v4533, %v4550
        %v4572 = vadd.f32 %v4534, %v4550
        %v4573 = vadd.f32 %v4535, %v4550
        %v4574 = vadd.f32 %v4536, %v4550
        %v4575 = vadd.f32 %v4537, %v4550
        %v4576 = vadd.f32 %v4538, %v4550
        %v4577 = vadd.f32 %v4539, %v4550
        %v4578 = vadd.f32 %v4540, %v4550
        %v4579 = vadd.f32 %v4541, %v4550
        %v4580 = vadd.f32 %v4542, %v4550
        %v4581 = vadd.f32 %v4543, %v4550
        %v4582 = vadd.f32 %v4544, %v4550
        %v4583 = vadd.f32 %v4545, %v4550
        %4584 = vst [vmem:[%s548] sm:$0xff] %v4552
        %4585 = vst [vmem:[%s548 + $0x8] sm:$0xff] %v4553
        %4586 = vst [vmem:[%s548 + $0x10] sm:$0xff] %v4554
        %4587 = vst [vmem:[%s548 + $0x18] sm:$0xff] %v4555
        %4588 = vst [vmem:[%s548 + $0x20] sm:$0xff] %v4556
        %4589 = vst [vmem:[%s548 + $0x28] sm:$0xff] %v4557
        %4590 = vst [vmem:[%s548 + $0x30] sm:$0xff] %v4558
        %4591 = vst [vmem:[%s548 + $0x38] sm:$0xff] %v4559
        %4592 = vst [vmem:[%s548 + $0x40] sm:$0xff] %v4560
        %4593 = vst [vmem:[%s548 + $0x48] sm:$0xff] %v4561
        %4594 = vst [vmem:[%s548 + $0x50] sm:$0xff] %v4562
        %4595 = vst [vmem:[%s548 + $0x58] sm:$0xff] %v4563
        %4596 = vst [vmem:[%s548 + $0x60] sm:$0xff] %v4564
        %4597 = vst [vmem:[%s548 + $0x68] sm:$0xff] %v4565
        %4598 = vst [vmem:[%s548 + $0x70] sm:$0xff] %v4566
        %4599 = vst [vmem:[%s548 + $0x78] sm:$0xff] %v4567
        %4600 = vst [vmem:[%s548 + $0x80] sm:$0xff] %v4568
        %4601 = vst [vmem:[%s548 + $0x88] sm:$0xff] %v4569
        %4602 = vst [vmem:[%s548 + $0x90] sm:$0xff] %v4570
        %4603 = vst [vmem:[%s548 + $0x98] sm:$0xff] %v4571
        %4604 = vst [vmem:[%s548 + $0xa0] sm:$0xff] %v4572
        %4605 = vst [vmem:[%s548 + $0xa8] sm:$0xff] %v4573
        %4606 = vst [vmem:[%s548 + $0xb0] sm:$0xff] %v4574
        %4607 = vst [vmem:[%s548 + $0xb8] sm:$0xff] %v4575
        %4608 = vst [vmem:[%s548 + $0xc0] sm:$0xff] %v4576
        %4609 = vst [vmem:[%s548 + $0xc8] sm:$0xff] %v4577
        %4610 = vst [vmem:[%s548 + $0xd0] sm:$0xff] %v4578
        %4611 = vst [vmem:[%s548 + $0xd8] sm:$0xff] %v4579
        %4612 = vst [vmem:[%s548 + $0xe0] sm:$0xff] %v4580
        %4613 = vst [vmem:[%s548 + $0xe8] sm:$0xff] %v4581
        %4614 = vst [vmem:[%s548 + $0xf0] sm:$0xff] %v4582
        %4615 = vst [vmem:[%s548 + $0xf8] sm:$0xff] %v4583
        %s4616 = sand.u32 %s307, 1
        %s4617 = scalar_lea.sflag [#allocation4], %s4616
        %s4618 = sand.u32 %s307, 1
        %s4619 = smul.addr %s4618, 256
        %s4620 = scalar_lea.vmem [#allocation14], %s4619
        // Predicated region
        $region97: #{tpu_custom_call.1} parent=67 // pred_check
          %p4621 = pneg %p317
        $region98: #{tpu_custom_call.1} parent=67 // pred_check_branch
          %4623 = sbr.rel (%p4621) target = $region100
        $region99: #{tpu_custom_call.1} parent=67 // pred_region
          %s4625 = ssub.s32 4096, 4096
          %4626 = vsyncadd %s4617, %s4625
          %s4627 = smul.addr %s32, 32
          %s4628 = smul.addr %s4627, 128
          %s4629 = scalar_lea.hbm %s12, %s4628
          %s4630 = sshll.u32 %s4620, 4
          %s4631 = int_to_ptr.vmem [resolvable:$true] %s4630
          %4636 = dma.vmem_to_hbm [thread:$0]  %s4631, 4096, %s4629, %s4617, 128, 128, 8
        $region100: #{tpu_custom_call.1} parent=67 // pred_fallthru
          _
      $region68: #{tpu_custom_call.1} parent=5 // pred_fallthru
        _
      %p4637 = scmp.le.s32.totalorder 2, %s27
      // Predicated region
      $region101: #{tpu_custom_call.1} parent=5 // pred_check
        %p4638 = pneg %p4637
      $region102: #{tpu_custom_call.1} parent=5 // pred_check_branch
        %4640 = sbr.rel (%p4638) target = $region104
      $region103: #{tpu_custom_call.1} parent=5 // pred_region
        %s4641 = ssub.s32 %s27, 2
        // Predicated region
        $region105: #{tpu_custom_call.1} parent=103 // pred_check
          %p4642 = pneg %p323
        $region106: #{tpu_custom_call.1} parent=103 // pred_check_branch
          %4644 = sbr.rel (%p4642) target = $region108
        $region107: #{tpu_custom_call.1} parent=103 // pred_region
          %s4645 = sand.u32 %s308, 1
          %s4646 = scalar_lea.sflag [#allocation4], %s4645
          %s4647 = sand.u32 %s308, 1
          %s4648 = smul.addr %s4647, 256
          %s4649 = scalar_lea.vmem [#allocation14], %s4648
          %4650 = dma.done %s4646, 4096
        $region108: #{tpu_custom_call.1} parent=103 // pred_fallthru
          _
      $region104: #{tpu_custom_call.1} parent=5 // pred_fallthru
        _
    $region6: #{tpu_custom_call.1} parent=1 // loop_footer
      %s31 = sadd.s32 1, %s27
    $region7: #{tpu_custom_call.1} parent=1 // loop_footer_branch
      %26 = sbr.rel target = $region3
    $region8: #{tpu_custom_call.1} parent=1 // loop_exit
      _
    %4651 = vsyncpa [#allocation3], 1
    %s4652 = scalar_lea.sflag [#allocation3], 1
    %4653 = vsyncpa %s4652, 1
    %4654 = vsyncpa [#allocation6], 1
    %4655 = vsyncpa [#allocation9], 1
    %4656 = vsyncpa [#allocation12], 1
    %4657 = vsyncpa [#allocation4], 1
    %s4658 = scalar_lea.sflag [#allocation4], 1
    %4659 = vsyncpa %s4658, 1

</llo_original>
